<compile_context>
chip_gen: v7x
topology: tpu7x:2x2x1
jax: 0.10.0
libtpu: 0.0.40
codegen_flags: <defaults>
</compile_context>

<pallas_src>
import jax
import jax.numpy as jnp
import numpy as np
from jax.experimental import pallas as pl
from jax.experimental.pallas import tpu as pltpu

# PDE hyper-parameters (defaults of Model_PDE_3.__init__)
B_, C_, SIGMA, B_F, C_F, GAMMA = 0.5, 0.5, 1.0, 0.5, 0.9, 0.1

N_HIDDEN = 20          # hidden width
N_MID_LAYERS = 8       # h1_h2 ... h8_h9 (Linear(20,20)+Tanh) layers
BLOCK_N = 1024         # batch lanes per grid step (multiple of 128) — sweep 512..2048


def _make_kernel(nb):
    """Kernel body specialized to a static lane-block size nb (multiple of 128)."""

    def pde_kernel(x_ref, w1_ref, b1_ref, wh_ref, bh_ref, wo_ref, bo_ref,
                   out_ref, s_ref):
        # Feature-major: everything is (features, nb) with the batch on the lane axis.
        x = x_ref[...]                                   # (2, nb) f32
        x_t = x[0:1, :]                                  # (1, nb) time coordinate
        x_x = x[1:2, :]                                  # (1, nb) space coordinate

        w1 = w1_ref[...]                                 # (20, 2)
        b1 = b1_ref[...]                                 # (20, 1)
        w1t = w1[:, 0:1]                                 # (20, 1) d/dt seed column
        w1x = w1[:, 1:2]                                 # (20, 1) d/dx seed column
        neg2w1x = -2.0 * w1x                             # (20, 1) hoisted constant

        # ---- first layer: Linear(2, 20) + Tanh (tangent matmuls eliminated) ------
        # value path as two rank-1 broadcasts on the VPU (K=2 is too small for MXU)
        v_lin = w1t * x_t + w1x * x_x + b1               # (20, nb)
        y = jnp.tanh(v_lin)
        d = 1.0 - y * y                                  # tanh'(v)
        u1 = d * w1x                                     # d/dx stream ((20,1) bcast)
        # write the 4 streams [value | d/dt | d/dx | d2/dx2] into the fused slab
        s_ref[:, 0 * nb:1 * nb] = y
        s_ref[:, 1 * nb:2 * nb] = d * w1t
        s_ref[:, 2 * nb:3 * nb] = u1
        s_ref[:, 3 * nb:4 * nb] = (y * u1) * neg2w1x     # == -2*y*d*W1[:,1]^2

        # ---- 8 x (Linear(20,20) + Tanh): all 4 streams in ONE matmul per layer ----
        for i in range(N_MID_LAYERS):
            W = wh_ref[i]                                # (20, 20) torch (out, in)
            b = bh_ref[i]                                # (20, 1)
            L = jnp.dot(W, s_ref[...],
                        preferred_element_type=jnp.float32)   # (20, 4*nb), one push
            lv = L[:, 0 * nb:1 * nb] + b                 # bias only on value stream
            lu0 = L[:, 1 * nb:2 * nb]
            lu1 = L[:, 2 * nb:3 * nb]
            lw2 = L[:, 3 * nb:4 * nb]
            y = jnp.tanh(lv)
            d = 1.0 - y * y
            u1 = d * lu1
            s_ref[:, 0 * nb:1 * nb] = y
            s_ref[:, 1 * nb:2 * nb] = d * lu0
            s_ref[:, 2 * nb:3 * nb] = u1
            # d2/dx2 tanh(a(x)) = tanh''(a)(a')^2 + tanh'(a) a''   (u1 == d*lu1 reused)
            s_ref[:, 3 * nb:4 * nb] = d * lw2 - (2.0 * y) * (u1 * lu1)

        # ---- output layer: Linear(20, 1), no activation --------------------------
        wo = wo_ref[...]                                 # (1, 20)
        bo = bo_ref[...]                                 # (1, 1)
        L = jnp.dot(wo, s_ref[...], preferred_element_type=jnp.float32)  # (1, 4*nb)
        f = L[:, 0 * nb:1 * nb] + bo                     # network output
        df_dt = L[:, 1 * nb:2 * nb]
        df_dx = L[:, 2 * nb:3 * nb]
        df_dxdx = L[:, 3 * nb:4 * nb]

        pde = (B_F * x_x * x_x
               + df_dt
               + 0.5 * SIGMA * SIGMA * df_dxdx
               + B_ * x_x * df_dx
               - (C_ * C_) / (4.0 * C_F) * (df_dx * df_dx))

        # single merged (2, nb) lane-dense output: row 0 = f, row 1 = pde residual
        out_ref[0:1, :] = f
        out_ref[1:2, :] = pde

    return pde_kernel


def _pick_block(n, max_block=BLOCK_N):
    """Multiple-of-128 lane block; shrink for small N, prefer >=2 grid steps (v7x)."""
    n128 = ((n + 127) // 128) * 128
    bn = min(max_block, n128)
    if n128 >= 256 and n128 // bn < 2:
        bn = max(128, ((n128 // 2) // 128) * 128)
    return bn


def model_pde_3(x, params, block_n=None):
    """x: (N, 2) float32, params in torch (out, in) layout.  Returns ((N,1), (N,))."""
    W1, b1, Wh, bh, Wo, bo = params
    N = x.shape[0]
    bn = _pick_block(N) if block_n is None else block_n
    n_pad = ((N + bn - 1) // bn) * bn
    # feature-major input slab, zero-padded on the lane axis
    x_fm = jnp.zeros((2, n_pad), jnp.float32).at[:, :N].set(x.astype(jnp.float32).T)

    def const_spec(shape):
        ndim = len(shape)
        return pl.BlockSpec(shape, lambda i, _nd=ndim: (0,) * _nd)

    merged = pl.pallas_call(
        _make_kernel(bn),
        out_shape=jax.ShapeDtypeStruct((2, n_pad), jnp.float32),
        grid=(n_pad // bn,),
        in_specs=[
            pl.BlockSpec((2, bn), lambda i: (0, i)),                 # x (feature-major)
            const_spec((N_HIDDEN, 2)),                               # W1 (resident)
            const_spec((N_HIDDEN, 1)),                               # b1
            const_spec((N_MID_LAYERS, N_HIDDEN, N_HIDDEN)),          # Wh (resident)
            const_spec((N_MID_LAYERS, N_HIDDEN, 1)),                 # bh
            const_spec((1, N_HIDDEN)),                               # Wo
            const_spec((1, 1)),                                      # bo
        ],
        out_specs=pl.BlockSpec((2, bn), lambda i: (0, i)),           # merged f|pde slab
        scratch_shapes=[pltpu.VMEM((N_HIDDEN, 4 * bn), jnp.float32)],  # fused stream slab
        compiler_params=pltpu.CompilerParams(
            dimension_semantics=("parallel",)),                      # megacore on v7x
    )(x_fm, W1, b1, Wh, bh, Wo, bo)

    # slice off the padding and restore the PyTorch shapes: (N,1) and (N,)
    return merged[0:1, :N].T, merged[1, :N]


def init_params(key):
    """Deterministic nn.Linear-style init, torch (out, in) layout, bias (out, 1)."""
    def linear_init(k, fan_in, fan_out):
        k1, k2 = jax.random.split(k)
        bound = 1.0 / np.sqrt(fan_in)
        W = jax.random.uniform(k1, (fan_out, fan_in), jnp.float32, -bound, bound)
        b = jax.random.uniform(k2, (fan_out, 1), jnp.float32, -bound, bound)
        return W, b

    keys = jax.random.split(key, 10)
    W1, b1 = linear_init(keys[0], 2, N_HIDDEN)
    whs, bhs = [], []
    for i in range(N_MID_LAYERS):
        W, b = linear_init(keys[1 + i], N_HIDDEN, N_HIDDEN)
        whs.append(W)
        bhs.append(b)
    Wh = jnp.stack(whs)                              # (8, 20, 20)
    bh = jnp.stack(bhs)                              # (8, 20, 1)
    Wo, bo = linear_init(keys[9], N_HIDDEN, 1)       # (1, 20), (1, 1)
    return W1, b1, Wh, bh, Wo, bo


def _reference(x, params):
    """Pure-JAX reference using autodiff (mirrors the torch.autograd.grad loops)."""
    W1, b1, Wh, bh, Wo, bo = params

    def f(xi):                                       # scalar MLP for one sample
        h = jnp.tanh(W1 @ xi + b1[:, 0])
        for i in range(N_MID_LAYERS):
            h = jnp.tanh(Wh[i] @ h + bh[i, :, 0])
        return (Wo @ h + bo[:, 0])[0]

    out = jax.vmap(f)(x)[:, None]
    grad = jax.vmap(jax.grad(f))(x)                  # (N, 2)
    hess = jax.vmap(jax.hessian(f))(x)               # (N, 2, 2)
    df_dt, df_dx, df_dxdx = grad[:, 0], grad[:, 1], hess[:, 1, 1]
    pde = (B_F * x[:, 1] ** 2 + df_dt + 0.5 * SIGMA ** 2 * df_dxdx
           + B_ * x[:, 1] * df_dx - C_ ** 2 / (4 * C_F) * df_dx ** 2)
    return out, pde


if __name__ == "__main__":
    key = jax.random.PRNGKey(0)
    kx, kp = jax.random.split(key)

    N = 20                                           # matches torch.randn(20, 2) in the spec
    x = jax.random.normal(kx, (N, 2), jnp.float32)
    params = init_params(kp)

    out, pde = model_pde_3(x, params)
    jax.block_until_ready((out, pde))

    out_ref, pde_ref = _reference(x, params)
    np.testing.assert_allclose(np.asarray(out), np.asarray(out_ref), rtol=1e-4, atol=1e-4)
    np.testing.assert_allclose(np.asarray(pde), np.asarray(pde_ref), rtol=1e-4, atol=1e-4)

    print("KERNEL_OK")
</pallas_src>

<mosaic_0001>
module attributes {stable_mosaic.version = 11 : i64} {
  func.func @pde_kernel(%arg0: i32, %arg1: memref<2x128xf32, #tpu.memory_space<vmem>>, %arg2: memref<20x2xf32, #tpu.memory_space<vmem>>, %arg3: memref<20x1xf32, #tpu.memory_space<vmem>>, %arg4: memref<8x20x20xf32, #tpu.memory_space<vmem>>, %arg5: memref<8x20x1xf32, #tpu.memory_space<vmem>>, %arg6: memref<1x20xf32, #tpu.memory_space<vmem>>, %arg7: memref<1x1xf32, #tpu.memory_space<vmem>>, %arg8: memref<2x128xf32, #tpu.memory_space<vmem>>, %arg9: memref<20x512xf32, #tpu.memory_space<vmem>>) attributes {dimension_semantics = [#tpu.dimension_semantics<parallel>], iteration_bounds = array<i64: 1>, scalar_prefetch = 0 : i64, scratch_operands = 1 : i64, tpu.core_type = #tpu.core_type<tc>, window_params = [{transform_indices = @transform_0, window_bounds = array<i64: 2, 128>}, {pipeline_mode = #tpu.pipeline_mode<synchronous>, transform_indices = @transform_1, window_bounds = array<i64: 20, 2>}, {pipeline_mode = #tpu.pipeline_mode<synchronous>, transform_indices = @transform_2, window_bounds = array<i64: 20, 1>}, {pipeline_mode = #tpu.pipeline_mode<synchronous>, transform_indices = @transform_3, window_bounds = array<i64: 8, 20, 20>}, {pipeline_mode = #tpu.pipeline_mode<synchronous>, transform_indices = @transform_4, window_bounds = array<i64: 8, 20, 1>}, {pipeline_mode = #tpu.pipeline_mode<synchronous>, transform_indices = @transform_5, window_bounds = array<i64: 1, 20>}, {pipeline_mode = #tpu.pipeline_mode<synchronous>, transform_indices = @transform_6, window_bounds = array<i64: 1, 1>}, {transform_indices = @transform_7, window_bounds = array<i64: 2, 128>}]} {
    %c0 = arith.constant 0 : index
    %c0_0 = arith.constant 0 : index
    %0 = vector.load %arg1[%c0, %c0_0] : memref<2x128xf32, #tpu.memory_space<vmem>>, vector<2x128xf32>
    %1 = vector.extract_strided_slice %0 {offsets = [0, 0], sizes = [1, 128], strides = [1, 1]} : vector<2x128xf32> to vector<1x128xf32>
    %2 = vector.extract_strided_slice %0 {offsets = [1, 0], sizes = [1, 128], strides = [1, 1]} : vector<2x128xf32> to vector<1x128xf32>
    %c0_1 = arith.constant 0 : index
    %c0_2 = arith.constant 0 : index
    %3 = vector.load %arg2[%c0_1, %c0_2] : memref<20x2xf32, #tpu.memory_space<vmem>>, vector<20x2xf32>
    %c0_3 = arith.constant 0 : index
    %c0_4 = arith.constant 0 : index
    %4 = vector.load %arg3[%c0_3, %c0_4] : memref<20x1xf32, #tpu.memory_space<vmem>>, vector<20x1xf32>
    %5 = vector.extract_strided_slice %3 {offsets = [0, 0], sizes = [20, 1], strides = [1, 1]} : vector<20x2xf32> to vector<20x1xf32>
    %6 = vector.extract_strided_slice %3 {offsets = [0, 1], sizes = [20, 1], strides = [1, 1]} : vector<20x2xf32> to vector<20x1xf32>
    %cst = arith.constant -2.000000e+00 : f32
    %7 = vector.broadcast %cst : f32 to vector<20x1xf32>
    %8 = arith.mulf %7, %6 : vector<20x1xf32>
    %9 = vector.broadcast %5 : vector<20x1xf32> to vector<20x128xf32>
    %10 = vector.broadcast %1 : vector<1x128xf32> to vector<20x128xf32>
    %11 = arith.mulf %9, %10 : vector<20x128xf32>
    %12 = vector.broadcast %6 : vector<20x1xf32> to vector<20x128xf32>
    %13 = vector.broadcast %2 : vector<1x128xf32> to vector<20x128xf32>
    %14 = arith.mulf %12, %13 : vector<20x128xf32>
    %15 = arith.addf %11, %14 : vector<20x128xf32>
    %16 = vector.broadcast %4 : vector<20x1xf32> to vector<20x128xf32>
    %17 = arith.addf %15, %16 : vector<20x128xf32>
    %18 = math.tanh %17 : vector<20x128xf32>
    %19 = arith.mulf %18, %18 : vector<20x128xf32>
    %cst_5 = arith.constant 1.000000e+00 : f32
    %20 = vector.broadcast %cst_5 : f32 to vector<20x128xf32>
    %21 = arith.subf %20, %19 : vector<20x128xf32>
    %22 = vector.broadcast %6 : vector<20x1xf32> to vector<20x128xf32>
    %23 = arith.mulf %21, %22 : vector<20x128xf32>
    %c0_6 = arith.constant 0 : index
    %c0_7 = arith.constant 0 : index
    %24 = vector.load %arg9[%c0_6, %c0_7] : memref<20x512xf32, #tpu.memory_space<vmem>>, vector<20x128xf32>
    tpu.vector_store %arg9[%c0_6, %c0_7], %18 {strides = array<i32>} : memref<20x512xf32, #tpu.memory_space<vmem>>, vector<20x128xf32>,
    %25 = vector.broadcast %5 : vector<20x1xf32> to vector<20x128xf32>
    %26 = arith.mulf %21, %25 : vector<20x128xf32>
    %c0_8 = arith.constant 0 : index
    %c128 = arith.constant 128 : index
    %27 = vector.load %arg9[%c0_8, %c128] : memref<20x512xf32, #tpu.memory_space<vmem>>, vector<20x128xf32>
    tpu.vector_store %arg9[%c0_8, %c128], %26 {strides = array<i32>} : memref<20x512xf32, #tpu.memory_space<vmem>>, vector<20x128xf32>,
    %c0_9 = arith.constant 0 : index
    %c256 = arith.constant 256 : index
    %28 = vector.load %arg9[%c0_9, %c256] : memref<20x512xf32, #tpu.memory_space<vmem>>, vector<20x128xf32>
    tpu.vector_store %arg9[%c0_9, %c256], %23 {strides = array<i32>} : memref<20x512xf32, #tpu.memory_space<vmem>>, vector<20x128xf32>,
    %29 = arith.mulf %18, %23 : vector<20x128xf32>
    %30 = vector.broadcast %8 : vector<20x1xf32> to vector<20x128xf32>
    %31 = arith.mulf %29, %30 : vector<20x128xf32>
    %c0_10 = arith.constant 0 : index
    %c384 = arith.constant 384 : index
    %32 = vector.load %arg9[%c0_10, %c384] : memref<20x512xf32, #tpu.memory_space<vmem>>, vector<20x128xf32>
    tpu.vector_store %arg9[%c0_10, %c384], %31 {strides = array<i32>} : memref<20x512xf32, #tpu.memory_space<vmem>>, vector<20x128xf32>,
    %c0_11 = arith.constant 0 : index
    %c0_12 = arith.constant 0 : index
    %c0_13 = arith.constant 0 : index
    %33 = vector.load %arg4[%c0_11, %c0_12, %c0_13] : memref<8x20x20xf32, #tpu.memory_space<vmem>>, vector<1x20x20xf32>
    %34 = vector.shape_cast %33 : vector<1x20x20xf32> to vector<20x20xf32>
    %c0_14 = arith.constant 0 : index
    %c0_15 = arith.constant 0 : index
    %c0_16 = arith.constant 0 : index
    %35 = vector.load %arg5[%c0_14, %c0_15, %c0_16] : memref<8x20x1xf32, #tpu.memory_space<vmem>>, vector<1x20x1xf32>
    %36 = vector.shape_cast %35 : vector<1x20x1xf32> to vector<20x1xf32>
    %c0_17 = arith.constant 0 : index
    %c0_18 = arith.constant 0 : index
    %37 = vector.load %arg9[%c0_17, %c0_18] : memref<20x512xf32, #tpu.memory_space<vmem>>, vector<20x512xf32>
    %cst_19 = arith.constant dense<0.000000e+00> : vector<20x512xf32>
    %38 = tpu.matmul %34, %37, %cst_19 {dimension_numbers = #tpu.dot_dimension_numbers<[1], [0], [0], [1], [0, 0, 1, 1], [], []>} : vector<20x20xf32>, vector<20x512xf32>, vector<20x512xf32> -> vector<20x512xf32>
    %39 = vector.extract_strided_slice %38 {offsets = [0, 0], sizes = [20, 128], strides = [1, 1]} : vector<20x512xf32> to vector<20x128xf32>
    %40 = vector.broadcast %36 : vector<20x1xf32> to vector<20x128xf32>
    %41 = arith.addf %39, %40 : vector<20x128xf32>
    %42 = vector.extract_strided_slice %38 {offsets = [0, 128], sizes = [20, 128], strides = [1, 1]} : vector<20x512xf32> to vector<20x128xf32>
    %43 = vector.extract_strided_slice %38 {offsets = [0, 256], sizes = [20, 128], strides = [1, 1]} : vector<20x512xf32> to vector<20x128xf32>
    %44 = vector.extract_strided_slice %38 {offsets = [0, 384], sizes = [20, 128], strides = [1, 1]} : vector<20x512xf32> to vector<20x128xf32>
    %45 = math.tanh %41 : vector<20x128xf32>
    %46 = arith.mulf %45, %45 : vector<20x128xf32>
    %cst_20 = arith.constant 1.000000e+00 : f32
    %47 = vector.broadcast %cst_20 : f32 to vector<20x128xf32>
    %48 = arith.subf %47, %46 : vector<20x128xf32>
    %49 = arith.mulf %48, %43 : vector<20x128xf32>
    %c0_21 = arith.constant 0 : index
    %c0_22 = arith.constant 0 : index
    %50 = vector.load %arg9[%c0_21, %c0_22] : memref<20x512xf32, #tpu.memory_space<vmem>>, vector<20x128xf32>
    tpu.vector_store %arg9[%c0_21, %c0_22], %45 {strides = array<i32>} : memref<20x512xf32, #tpu.memory_space<vmem>>, vector<20x128xf32>,
    %51 = arith.mulf %48, %42 : vector<20x128xf32>
    %c0_23 = arith.constant 0 : index
    %c128_24 = arith.constant 128 : index
    %52 = vector.load %arg9[%c0_23, %c128_24] : memref<20x512xf32, #tpu.memory_space<vmem>>, vector<20x128xf32>
    tpu.vector_store %arg9[%c0_23, %c128_24], %51 {strides = array<i32>} : memref<20x512xf32, #tpu.memory_space<vmem>>, vector<20x128xf32>,
    %c0_25 = arith.constant 0 : index
    %c256_26 = arith.constant 256 : index
    %53 = vector.load %arg9[%c0_25, %c256_26] : memref<20x512xf32, #tpu.memory_space<vmem>>, vector<20x128xf32>
    tpu.vector_store %arg9[%c0_25, %c256_26], %49 {strides = array<i32>} : memref<20x512xf32, #tpu.memory_space<vmem>>, vector<20x128xf32>,
    %54 = arith.mulf %48, %44 : vector<20x128xf32>
    %cst_27 = arith.constant 2.000000e+00 : f32
    %55 = vector.broadcast %cst_27 : f32 to vector<20x128xf32>
    %56 = arith.mulf %55, %45 : vector<20x128xf32>
    %57 = arith.mulf %49, %43 : vector<20x128xf32>
    %58 = arith.mulf %56, %57 : vector<20x128xf32>
    %59 = arith.subf %54, %58 : vector<20x128xf32>
    %c0_28 = arith.constant 0 : index
    %c384_29 = arith.constant 384 : index
    %60 = vector.load %arg9[%c0_28, %c384_29] : memref<20x512xf32, #tpu.memory_space<vmem>>, vector<20x128xf32>
    tpu.vector_store %arg9[%c0_28, %c384_29], %59 {strides = array<i32>} : memref<20x512xf32, #tpu.memory_space<vmem>>, vector<20x128xf32>,
    %c1 = arith.constant 1 : index
    %c0_30 = arith.constant 0 : index
    %c0_31 = arith.constant 0 : index
    %61 = vector.load %arg4[%c1, %c0_30, %c0_31] : memref<8x20x20xf32, #tpu.memory_space<vmem>>, vector<1x20x20xf32>
    %62 = vector.shape_cast %61 : vector<1x20x20xf32> to vector<20x20xf32>
    %c1_32 = arith.constant 1 : index
    %c0_33 = arith.constant 0 : index
    %c0_34 = arith.constant 0 : index
    %63 = vector.load %arg5[%c1_32, %c0_33, %c0_34] : memref<8x20x1xf32, #tpu.memory_space<vmem>>, vector<1x20x1xf32>
    %64 = vector.shape_cast %63 : vector<1x20x1xf32> to vector<20x1xf32>
    %c0_35 = arith.constant 0 : index
    %c0_36 = arith.constant 0 : index
    %65 = vector.load %arg9[%c0_35, %c0_36] : memref<20x512xf32, #tpu.memory_space<vmem>>, vector<20x512xf32>
    %cst_37 = arith.constant dense<0.000000e+00> : vector<20x512xf32>
    %66 = tpu.matmul %62, %65, %cst_37 {dimension_numbers = #tpu.dot_dimension_numbers<[1], [0], [0], [1], [0, 0, 1, 1], [], []>} : vector<20x20xf32>, vector<20x512xf32>, vector<20x512xf32> -> vector<20x512xf32>
    %67 = vector.extract_strided_slice %66 {offsets = [0, 0], sizes = [20, 128], strides = [1, 1]} : vector<20x512xf32> to vector<20x128xf32>
    %68 = vector.broadcast %64 : vector<20x1xf32> to vector<20x128xf32>
    %69 = arith.addf %67, %68 : vector<20x128xf32>
    %70 = vector.extract_strided_slice %66 {offsets = [0, 128], sizes = [20, 128], strides = [1, 1]} : vector<20x512xf32> to vector<20x128xf32>
    %71 = vector.extract_strided_slice %66 {offsets = [0, 256], sizes = [20, 128], strides = [1, 1]} : vector<20x512xf32> to vector<20x128xf32>
    %72 = vector.extract_strided_slice %66 {offsets = [0, 384], sizes = [20, 128], strides = [1, 1]} : vector<20x512xf32> to vector<20x128xf32>
    %73 = math.tanh %69 : vector<20x128xf32>
    %74 = arith.mulf %73, %73 : vector<20x128xf32>
    %cst_38 = arith.constant 1.000000e+00 : f32
    %75 = vector.broadcast %cst_38 : f32 to vector<20x128xf32>
    %76 = arith.subf %75, %74 : vector<20x128xf32>
    %77 = arith.mulf %76, %71 : vector<20x128xf32>
    %c0_39 = arith.constant 0 : index
    %c0_40 = arith.constant 0 : index
    %78 = vector.load %arg9[%c0_39, %c0_40] : memref<20x512xf32, #tpu.memory_space<vmem>>, vector<20x128xf32>
    tpu.vector_store %arg9[%c0_39, %c0_40], %73 {strides = array<i32>} : memref<20x512xf32, #tpu.memory_space<vmem>>, vector<20x128xf32>,
    %79 = arith.mulf %76, %70 : vector<20x128xf32>
    %c0_41 = arith.constant 0 : index
    %c128_42 = arith.constant 128 : index
    %80 = vector.load %arg9[%c0_41, %c128_42] : memref<20x512xf32, #tpu.memory_space<vmem>>, vector<20x128xf32>
    tpu.vector_store %arg9[%c0_41, %c128_42], %79 {strides = array<i32>} : memref<20x512xf32, #tpu.memory_space<vmem>>, vector<20x128xf32>,
    %c0_43 = arith.constant 0 : index
    %c256_44 = arith.constant 256 : index
    %81 = vector.load %arg9[%c0_43, %c256_44] : memref<20x512xf32, #tpu.memory_space<vmem>>, vector<20x128xf32>
    tpu.vector_store %arg9[%c0_43, %c256_44], %77 {strides = array<i32>} : memref<20x512xf32, #tpu.memory_space<vmem>>, vector<20x128xf32>,
    %82 = arith.mulf %76, %72 : vector<20x128xf32>
    %cst_45 = arith.constant 2.000000e+00 : f32
    %83 = vector.broadcast %cst_45 : f32 to vector<20x128xf32>
    %84 = arith.mulf %83, %73 : vector<20x128xf32>
    %85 = arith.mulf %77, %71 : vector<20x128xf32>
    %86 = arith.mulf %84, %85 : vector<20x128xf32>
    %87 = arith.subf %82, %86 : vector<20x128xf32>
    %c0_46 = arith.constant 0 : index
    %c384_47 = arith.constant 384 : index
    %88 = vector.load %arg9[%c0_46, %c384_47] : memref<20x512xf32, #tpu.memory_space<vmem>>, vector<20x128xf32>
    tpu.vector_store %arg9[%c0_46, %c384_47], %87 {strides = array<i32>} : memref<20x512xf32, #tpu.memory_space<vmem>>, vector<20x128xf32>,
    %c2 = arith.constant 2 : index
    %c0_48 = arith.constant 0 : index
    %c0_49 = arith.constant 0 : index
    %89 = vector.load %arg4[%c2, %c0_48, %c0_49] : memref<8x20x20xf32, #tpu.memory_space<vmem>>, vector<1x20x20xf32>
    %90 = vector.shape_cast %89 : vector<1x20x20xf32> to vector<20x20xf32>
    %c2_50 = arith.constant 2 : index
    %c0_51 = arith.constant 0 : index
    %c0_52 = arith.constant 0 : index
    %91 = vector.load %arg5[%c2_50, %c0_51, %c0_52] : memref<8x20x1xf32, #tpu.memory_space<vmem>>, vector<1x20x1xf32>
    %92 = vector.shape_cast %91 : vector<1x20x1xf32> to vector<20x1xf32>
    %c0_53 = arith.constant 0 : index
    %c0_54 = arith.constant 0 : index
    %93 = vector.load %arg9[%c0_53, %c0_54] : memref<20x512xf32, #tpu.memory_space<vmem>>, vector<20x512xf32>
    %cst_55 = arith.constant dense<0.000000e+00> : vector<20x512xf32>
    %94 = tpu.matmul %90, %93, %cst_55 {dimension_numbers = #tpu.dot_dimension_numbers<[1], [0], [0], [1], [0, 0, 1, 1], [], []>} : vector<20x20xf32>, vector<20x512xf32>, vector<20x512xf32> -> vector<20x512xf32>
    %95 = vector.extract_strided_slice %94 {offsets = [0, 0], sizes = [20, 128], strides = [1, 1]} : vector<20x512xf32> to vector<20x128xf32>
    %96 = vector.broadcast %92 : vector<20x1xf32> to vector<20x128xf32>
    %97 = arith.addf %95, %96 : vector<20x128xf32>
    %98 = vector.extract_strided_slice %94 {offsets = [0, 128], sizes = [20, 128], strides = [1, 1]} : vector<20x512xf32> to vector<20x128xf32>
    %99 = vector.extract_strided_slice %94 {offsets = [0, 256], sizes = [20, 128], strides = [1, 1]} : vector<20x512xf32> to vector<20x128xf32>
    %100 = vector.extract_strided_slice %94 {offsets = [0, 384], sizes = [20, 128], strides = [1, 1]} : vector<20x512xf32> to vector<20x128xf32>
    %101 = math.tanh %97 : vector<20x128xf32>
    %102 = arith.mulf %101, %101 : vector<20x128xf32>
    %cst_56 = arith.constant 1.000000e+00 : f32
    %103 = vector.broadcast %cst_56 : f32 to vector<20x128xf32>
    %104 = arith.subf %103, %102 : vector<20x128xf32>
    %105 = arith.mulf %104, %99 : vector<20x128xf32>
    %c0_57 = arith.constant 0 : index
    %c0_58 = arith.constant 0 : index
    %106 = vector.load %arg9[%c0_57, %c0_58] : memref<20x512xf32, #tpu.memory_space<vmem>>, vector<20x128xf32>
    tpu.vector_store %arg9[%c0_57, %c0_58], %101 {strides = array<i32>} : memref<20x512xf32, #tpu.memory_space<vmem>>, vector<20x128xf32>,
    %107 = arith.mulf %104, %98 : vector<20x128xf32>
    %c0_59 = arith.constant 0 : index
    %c128_60 = arith.constant 128 : index
    %108 = vector.load %arg9[%c0_59, %c128_60] : memref<20x512xf32, #tpu.memory_space<vmem>>, vector<20x128xf32>
    tpu.vector_store %arg9[%c0_59, %c128_60], %107 {strides = array<i32>} : memref<20x512xf32, #tpu.memory_space<vmem>>, vector<20x128xf32>,
    %c0_61 = arith.constant 0 : index
    %c256_62 = arith.constant 256 : index
    %109 = vector.load %arg9[%c0_61, %c256_62] : memref<20x512xf32, #tpu.memory_space<vmem>>, vector<20x128xf32>
    tpu.vector_store %arg9[%c0_61, %c256_62], %105 {strides = array<i32>} : memref<20x512xf32, #tpu.memory_space<vmem>>, vector<20x128xf32>,
    %110 = arith.mulf %104, %100 : vector<20x128xf32>
    %cst_63 = arith.constant 2.000000e+00 : f32
    %111 = vector.broadcast %cst_63 : f32 to vector<20x128xf32>
    %112 = arith.mulf %111, %101 : vector<20x128xf32>
    %113 = arith.mulf %105, %99 : vector<20x128xf32>
    %114 = arith.mulf %112, %113 : vector<20x128xf32>
    %115 = arith.subf %110, %114 : vector<20x128xf32>
    %c0_64 = arith.constant 0 : index
    %c384_65 = arith.constant 384 : index
    %116 = vector.load %arg9[%c0_64, %c384_65] : memref<20x512xf32, #tpu.memory_space<vmem>>, vector<20x128xf32>
    tpu.vector_store %arg9[%c0_64, %c384_65], %115 {strides = array<i32>} : memref<20x512xf32, #tpu.memory_space<vmem>>, vector<20x128xf32>,
    %c3 = arith.constant 3 : index
    %c0_66 = arith.constant 0 : index
    %c0_67 = arith.constant 0 : index
    %117 = vector.load %arg4[%c3, %c0_66, %c0_67] : memref<8x20x20xf32, #tpu.memory_space<vmem>>, vector<1x20x20xf32>
    %118 = vector.shape_cast %117 : vector<1x20x20xf32> to vector<20x20xf32>
    %c3_68 = arith.constant 3 : index
    %c0_69 = arith.constant 0 : index
    %c0_70 = arith.constant 0 : index
    %119 = vector.load %arg5[%c3_68, %c0_69, %c0_70] : memref<8x20x1xf32, #tpu.memory_space<vmem>>, vector<1x20x1xf32>
    %120 = vector.shape_cast %119 : vector<1x20x1xf32> to vector<20x1xf32>
    %c0_71 = arith.constant 0 : index
    %c0_72 = arith.constant 0 : index
    %121 = vector.load %arg9[%c0_71, %c0_72] : memref<20x512xf32, #tpu.memory_space<vmem>>, vector<20x512xf32>
    %cst_73 = arith.constant dense<0.000000e+00> : vector<20x512xf32>
    %122 = tpu.matmul %118, %121, %cst_73 {dimension_numbers = #tpu.dot_dimension_numbers<[1], [0], [0], [1], [0, 0, 1, 1], [], []>} : vector<20x20xf32>, vector<20x512xf32>, vector<20x512xf32> -> vector<20x512xf32>
    %123 = vector.extract_strided_slice %122 {offsets = [0, 0], sizes = [20, 128], strides = [1, 1]} : vector<20x512xf32> to vector<20x128xf32>
    %124 = vector.broadcast %120 : vector<20x1xf32> to vector<20x128xf32>
    %125 = arith.addf %123, %124 : vector<20x128xf32>
    %126 = vector.extract_strided_slice %122 {offsets = [0, 128], sizes = [20, 128], strides = [1, 1]} : vector<20x512xf32> to vector<20x128xf32>
    %127 = vector.extract_strided_slice %122 {offsets = [0, 256], sizes = [20, 128], strides = [1, 1]} : vector<20x512xf32> to vector<20x128xf32>
    %128 = vector.extract_strided_slice %122 {offsets = [0, 384], sizes = [20, 128], strides = [1, 1]} : vector<20x512xf32> to vector<20x128xf32>
    %129 = math.tanh %125 : vector<20x128xf32>
    %130 = arith.mulf %129, %129 : vector<20x128xf32>
    %cst_74 = arith.constant 1.000000e+00 : f32
    %131 = vector.broadcast %cst_74 : f32 to vector<20x128xf32>
    %132 = arith.subf %131, %130 : vector<20x128xf32>
    %133 = arith.mulf %132, %127 : vector<20x128xf32>
    %c0_75 = arith.constant 0 : index
    %c0_76 = arith.constant 0 : index
    %134 = vector.load %arg9[%c0_75, %c0_76] : memref<20x512xf32, #tpu.memory_space<vmem>>, vector<20x128xf32>
    tpu.vector_store %arg9[%c0_75, %c0_76], %129 {strides = array<i32>} : memref<20x512xf32, #tpu.memory_space<vmem>>, vector<20x128xf32>,
    %135 = arith.mulf %132, %126 : vector<20x128xf32>
    %c0_77 = arith.constant 0 : index
    %c128_78 = arith.constant 128 : index
    %136 = vector.load %arg9[%c0_77, %c128_78] : memref<20x512xf32, #tpu.memory_space<vmem>>, vector<20x128xf32>
    tpu.vector_store %arg9[%c0_77, %c128_78], %135 {strides = array<i32>} : memref<20x512xf32, #tpu.memory_space<vmem>>, vector<20x128xf32>,
    %c0_79 = arith.constant 0 : index
    %c256_80 = arith.constant 256 : index
    %137 = vector.load %arg9[%c0_79, %c256_80] : memref<20x512xf32, #tpu.memory_space<vmem>>, vector<20x128xf32>
    tpu.vector_store %arg9[%c0_79, %c256_80], %133 {strides = array<i32>} : memref<20x512xf32, #tpu.memory_space<vmem>>, vector<20x128xf32>,
    %138 = arith.mulf %132, %128 : vector<20x128xf32>
    %cst_81 = arith.constant 2.000000e+00 : f32
    %139 = vector.broadcast %cst_81 : f32 to vector<20x128xf32>
    %140 = arith.mulf %139, %129 : vector<20x128xf32>
    %141 = arith.mulf %133, %127 : vector<20x128xf32>
    %142 = arith.mulf %140, %141 : vector<20x128xf32>
    %143 = arith.subf %138, %142 : vector<20x128xf32>
    %c0_82 = arith.constant 0 : index
    %c384_83 = arith.constant 384 : index
    %144 = vector.load %arg9[%c0_82, %c384_83] : memref<20x512xf32, #tpu.memory_space<vmem>>, vector<20x128xf32>
    tpu.vector_store %arg9[%c0_82, %c384_83], %143 {strides = array<i32>} : memref<20x512xf32, #tpu.memory_space<vmem>>, vector<20x128xf32>,
    %c4 = arith.constant 4 : index
    %c0_84 = arith.constant 0 : index
    %c0_85 = arith.constant 0 : index
    %145 = vector.load %arg4[%c4, %c0_84, %c0_85] : memref<8x20x20xf32, #tpu.memory_space<vmem>>, vector<1x20x20xf32>
    %146 = vector.shape_cast %145 : vector<1x20x20xf32> to vector<20x20xf32>
    %c4_86 = arith.constant 4 : index
    %c0_87 = arith.constant 0 : index
    %c0_88 = arith.constant 0 : index
    %147 = vector.load %arg5[%c4_86, %c0_87, %c0_88] : memref<8x20x1xf32, #tpu.memory_space<vmem>>, vector<1x20x1xf32>
    %148 = vector.shape_cast %147 : vector<1x20x1xf32> to vector<20x1xf32>
    %c0_89 = arith.constant 0 : index
    %c0_90 = arith.constant 0 : index
    %149 = vector.load %arg9[%c0_89, %c0_90] : memref<20x512xf32, #tpu.memory_space<vmem>>, vector<20x512xf32>
    %cst_91 = arith.constant dense<0.000000e+00> : vector<20x512xf32>
    %150 = tpu.matmul %146, %149, %cst_91 {dimension_numbers = #tpu.dot_dimension_numbers<[1], [0], [0], [1], [0, 0, 1, 1], [], []>} : vector<20x20xf32>, vector<20x512xf32>, vector<20x512xf32> -> vector<20x512xf32>
    %151 = vector.extract_strided_slice %150 {offsets = [0, 0], sizes = [20, 128], strides = [1, 1]} : vector<20x512xf32> to vector<20x128xf32>
    %152 = vector.broadcast %148 : vector<20x1xf32> to vector<20x128xf32>
    %153 = arith.addf %151, %152 : vector<20x128xf32>
    %154 = vector.extract_strided_slice %150 {offsets = [0, 128], sizes = [20, 128], strides = [1, 1]} : vector<20x512xf32> to vector<20x128xf32>
    %155 = vector.extract_strided_slice %150 {offsets = [0, 256], sizes = [20, 128], strides = [1, 1]} : vector<20x512xf32> to vector<20x128xf32>
    %156 = vector.extract_strided_slice %150 {offsets = [0, 384], sizes = [20, 128], strides = [1, 1]} : vector<20x512xf32> to vector<20x128xf32>
    %157 = math.tanh %153 : vector<20x128xf32>
    %158 = arith.mulf %157, %157 : vector<20x128xf32>
    %cst_92 = arith.constant 1.000000e+00 : f32
    %159 = vector.broadcast %cst_92 : f32 to vector<20x128xf32>
    %160 = arith.subf %159, %158 : vector<20x128xf32>
    %161 = arith.mulf %160, %155 : vector<20x128xf32>
    %c0_93 = arith.constant 0 : index
    %c0_94 = arith.constant 0 : index
    %162 = vector.load %arg9[%c0_93, %c0_94] : memref<20x512xf32, #tpu.memory_space<vmem>>, vector<20x128xf32>
    tpu.vector_store %arg9[%c0_93, %c0_94], %157 {strides = array<i32>} : memref<20x512xf32, #tpu.memory_space<vmem>>, vector<20x128xf32>,
    %163 = arith.mulf %160, %154 : vector<20x128xf32>
    %c0_95 = arith.constant 0 : index
    %c128_96 = arith.constant 128 : index
    %164 = vector.load %arg9[%c0_95, %c128_96] : memref<20x512xf32, #tpu.memory_space<vmem>>, vector<20x128xf32>
    tpu.vector_store %arg9[%c0_95, %c128_96], %163 {strides = array<i32>} : memref<20x512xf32, #tpu.memory_space<vmem>>, vector<20x128xf32>,
    %c0_97 = arith.constant 0 : index
    %c256_98 = arith.constant 256 : index
    %165 = vector.load %arg9[%c0_97, %c256_98] : memref<20x512xf32, #tpu.memory_space<vmem>>, vector<20x128xf32>
    tpu.vector_store %arg9[%c0_97, %c256_98], %161 {strides = array<i32>} : memref<20x512xf32, #tpu.memory_space<vmem>>, vector<20x128xf32>,
    %166 = arith.mulf %160, %156 : vector<20x128xf32>
    %cst_99 = arith.constant 2.000000e+00 : f32
    %167 = vector.broadcast %cst_99 : f32 to vector<20x128xf32>
    %168 = arith.mulf %167, %157 : vector<20x128xf32>
    %169 = arith.mulf %161, %155 : vector<20x128xf32>
    %170 = arith.mulf %168, %169 : vector<20x128xf32>
    %171 = arith.subf %166, %170 : vector<20x128xf32>
    %c0_100 = arith.constant 0 : index
    %c384_101 = arith.constant 384 : index
    %172 = vector.load %arg9[%c0_100, %c384_101] : memref<20x512xf32, #tpu.memory_space<vmem>>, vector<20x128xf32>
    tpu.vector_store %arg9[%c0_100, %c384_101], %171 {strides = array<i32>} : memref<20x512xf32, #tpu.memory_space<vmem>>, vector<20x128xf32>,
    %c5 = arith.constant 5 : index
    %c0_102 = arith.constant 0 : index
    %c0_103 = arith.constant 0 : index
    %173 = vector.load %arg4[%c5, %c0_102, %c0_103] : memref<8x20x20xf32, #tpu.memory_space<vmem>>, vector<1x20x20xf32>
    %174 = vector.shape_cast %173 : vector<1x20x20xf32> to vector<20x20xf32>
    %c5_104 = arith.constant 5 : index
    %c0_105 = arith.constant 0 : index
    %c0_106 = arith.constant 0 : index
    %175 = vector.load %arg5[%c5_104, %c0_105, %c0_106] : memref<8x20x1xf32, #tpu.memory_space<vmem>>, vector<1x20x1xf32>
    %176 = vector.shape_cast %175 : vector<1x20x1xf32> to vector<20x1xf32>
    %c0_107 = arith.constant 0 : index
    %c0_108 = arith.constant 0 : index
    %177 = vector.load %arg9[%c0_107, %c0_108] : memref<20x512xf32, #tpu.memory_space<vmem>>, vector<20x512xf32>
    %cst_109 = arith.constant dense<0.000000e+00> : vector<20x512xf32>
    %178 = tpu.matmul %174, %177, %cst_109 {dimension_numbers = #tpu.dot_dimension_numbers<[1], [0], [0], [1], [0, 0, 1, 1], [], []>} : vector<20x20xf32>, vector<20x512xf32>, vector<20x512xf32> -> vector<20x512xf32>
    %179 = vector.extract_strided_slice %178 {offsets = [0, 0], sizes = [20, 128], strides = [1, 1]} : vector<20x512xf32> to vector<20x128xf32>
    %180 = vector.broadcast %176 : vector<20x1xf32> to vector<20x128xf32>
    %181 = arith.addf %179, %180 : vector<20x128xf32>
    %182 = vector.extract_strided_slice %178 {offsets = [0, 128], sizes = [20, 128], strides = [1, 1]} : vector<20x512xf32> to vector<20x128xf32>
    %183 = vector.extract_strided_slice %178 {offsets = [0, 256], sizes = [20, 128], strides = [1, 1]} : vector<20x512xf32> to vector<20x128xf32>
    %184 = vector.extract_strided_slice %178 {offsets = [0, 384], sizes = [20, 128], strides = [1, 1]} : vector<20x512xf32> to vector<20x128xf32>
    %185 = math.tanh %181 : vector<20x128xf32>
    %186 = arith.mulf %185, %185 : vector<20x128xf32>
    %cst_110 = arith.constant 1.000000e+00 : f32
    %187 = vector.broadcast %cst_110 : f32 to vector<20x128xf32>
    %188 = arith.subf %187, %186 : vector<20x128xf32>
    %189 = arith.mulf %188, %183 : vector<20x128xf32>
    %c0_111 = arith.constant 0 : index
    %c0_112 = arith.constant 0 : index
    %190 = vector.load %arg9[%c0_111, %c0_112] : memref<20x512xf32, #tpu.memory_space<vmem>>, vector<20x128xf32>
    tpu.vector_store %arg9[%c0_111, %c0_112], %185 {strides = array<i32>} : memref<20x512xf32, #tpu.memory_space<vmem>>, vector<20x128xf32>,
    %191 = arith.mulf %188, %182 : vector<20x128xf32>
    %c0_113 = arith.constant 0 : index
    %c128_114 = arith.constant 128 : index
    %192 = vector.load %arg9[%c0_113, %c128_114] : memref<20x512xf32, #tpu.memory_space<vmem>>, vector<20x128xf32>
    tpu.vector_store %arg9[%c0_113, %c128_114], %191 {strides = array<i32>} : memref<20x512xf32, #tpu.memory_space<vmem>>, vector<20x128xf32>,
    %c0_115 = arith.constant 0 : index
    %c256_116 = arith.constant 256 : index
    %193 = vector.load %arg9[%c0_115, %c256_116] : memref<20x512xf32, #tpu.memory_space<vmem>>, vector<20x128xf32>
    tpu.vector_store %arg9[%c0_115, %c256_116], %189 {strides = array<i32>} : memref<20x512xf32, #tpu.memory_space<vmem>>, vector<20x128xf32>,
    %194 = arith.mulf %188, %184 : vector<20x128xf32>
    %cst_117 = arith.constant 2.000000e+00 : f32
    %195 = vector.broadcast %cst_117 : f32 to vector<20x128xf32>
    %196 = arith.mulf %195, %185 : vector<20x128xf32>
    %197 = arith.mulf %189, %183 : vector<20x128xf32>
    %198 = arith.mulf %196, %197 : vector<20x128xf32>
    %199 = arith.subf %194, %198 : vector<20x128xf32>
    %c0_118 = arith.constant 0 : index
    %c384_119 = arith.constant 384 : index
    %200 = vector.load %arg9[%c0_118, %c384_119] : memref<20x512xf32, #tpu.memory_space<vmem>>, vector<20x128xf32>
    tpu.vector_store %arg9[%c0_118, %c384_119], %199 {strides = array<i32>} : memref<20x512xf32, #tpu.memory_space<vmem>>, vector<20x128xf32>,
    %c6 = arith.constant 6 : index
    %c0_120 = arith.constant 0 : index
    %c0_121 = arith.constant 0 : index
    %201 = vector.load %arg4[%c6, %c0_120, %c0_121] : memref<8x20x20xf32, #tpu.memory_space<vmem>>, vector<1x20x20xf32>
    %202 = vector.shape_cast %201 : vector<1x20x20xf32> to vector<20x20xf32>
    %c6_122 = arith.constant 6 : index
    %c0_123 = arith.constant 0 : index
    %c0_124 = arith.constant 0 : index
    %203 = vector.load %arg5[%c6_122, %c0_123, %c0_124] : memref<8x20x1xf32, #tpu.memory_space<vmem>>, vector<1x20x1xf32>
    %204 = vector.shape_cast %203 : vector<1x20x1xf32> to vector<20x1xf32>
    %c0_125 = arith.constant 0 : index
    %c0_126 = arith.constant 0 : index
    %205 = vector.load %arg9[%c0_125, %c0_126] : memref<20x512xf32, #tpu.memory_space<vmem>>, vector<20x512xf32>
    %cst_127 = arith.constant dense<0.000000e+00> : vector<20x512xf32>
    %206 = tpu.matmul %202, %205, %cst_127 {dimension_numbers = #tpu.dot_dimension_numbers<[1], [0], [0], [1], [0, 0, 1, 1], [], []>} : vector<20x20xf32>, vector<20x512xf32>, vector<20x512xf32> -> vector<20x512xf32>
    %207 = vector.extract_strided_slice %206 {offsets = [0, 0], sizes = [20, 128], strides = [1, 1]} : vector<20x512xf32> to vector<20x128xf32>
    %208 = vector.broadcast %204 : vector<20x1xf32> to vector<20x128xf32>
    %209 = arith.addf %207, %208 : vector<20x128xf32>
    %210 = vector.extract_strided_slice %206 {offsets = [0, 128], sizes = [20, 128], strides = [1, 1]} : vector<20x512xf32> to vector<20x128xf32>
    %211 = vector.extract_strided_slice %206 {offsets = [0, 256], sizes = [20, 128], strides = [1, 1]} : vector<20x512xf32> to vector<20x128xf32>
    %212 = vector.extract_strided_slice %206 {offsets = [0, 384], sizes = [20, 128], strides = [1, 1]} : vector<20x512xf32> to vector<20x128xf32>
    %213 = math.tanh %209 : vector<20x128xf32>
    %214 = arith.mulf %213, %213 : vector<20x128xf32>
    %cst_128 = arith.constant 1.000000e+00 : f32
    %215 = vector.broadcast %cst_128 : f32 to vector<20x128xf32>
    %216 = arith.subf %215, %214 : vector<20x128xf32>
    %217 = arith.mulf %216, %211 : vector<20x128xf32>
    %c0_129 = arith.constant 0 : index
    %c0_130 = arith.constant 0 : index
    %218 = vector.load %arg9[%c0_129, %c0_130] : memref<20x512xf32, #tpu.memory_space<vmem>>, vector<20x128xf32>
    tpu.vector_store %arg9[%c0_129, %c0_130], %213 {strides = array<i32>} : memref<20x512xf32, #tpu.memory_space<vmem>>, vector<20x128xf32>,
    %219 = arith.mulf %216, %210 : vector<20x128xf32>
    %c0_131 = arith.constant 0 : index
    %c128_132 = arith.constant 128 : index
    %220 = vector.load %arg9[%c0_131, %c128_132] : memref<20x512xf32, #tpu.memory_space<vmem>>, vector<20x128xf32>
    tpu.vector_store %arg9[%c0_131, %c128_132], %219 {strides = array<i32>} : memref<20x512xf32, #tpu.memory_space<vmem>>, vector<20x128xf32>,
    %c0_133 = arith.constant 0 : index
    %c256_134 = arith.constant 256 : index
    %221 = vector.load %arg9[%c0_133, %c256_134] : memref<20x512xf32, #tpu.memory_space<vmem>>, vector<20x128xf32>
    tpu.vector_store %arg9[%c0_133, %c256_134], %217 {strides = array<i32>} : memref<20x512xf32, #tpu.memory_space<vmem>>, vector<20x128xf32>,
    %222 = arith.mulf %216, %212 : vector<20x128xf32>
    %cst_135 = arith.constant 2.000000e+00 : f32
    %223 = vector.broadcast %cst_135 : f32 to vector<20x128xf32>
    %224 = arith.mulf %223, %213 : vector<20x128xf32>
    %225 = arith.mulf %217, %211 : vector<20x128xf32>
    %226 = arith.mulf %224, %225 : vector<20x128xf32>
    %227 = arith.subf %222, %226 : vector<20x128xf32>
    %c0_136 = arith.constant 0 : index
    %c384_137 = arith.constant 384 : index
    %228 = vector.load %arg9[%c0_136, %c384_137] : memref<20x512xf32, #tpu.memory_space<vmem>>, vector<20x128xf32>
    tpu.vector_store %arg9[%c0_136, %c384_137], %227 {strides = array<i32>} : memref<20x512xf32, #tpu.memory_space<vmem>>, vector<20x128xf32>,
    %c7 = arith.constant 7 : index
    %c0_138 = arith.constant 0 : index
    %c0_139 = arith.constant 0 : index
    %229 = vector.load %arg4[%c7, %c0_138, %c0_139] : memref<8x20x20xf32, #tpu.memory_space<vmem>>, vector<1x20x20xf32>
    %230 = vector.shape_cast %229 : vector<1x20x20xf32> to vector<20x20xf32>
    %c7_140 = arith.constant 7 : index
    %c0_141 = arith.constant 0 : index
    %c0_142 = arith.constant 0 : index
    %231 = vector.load %arg5[%c7_140, %c0_141, %c0_142] : memref<8x20x1xf32, #tpu.memory_space<vmem>>, vector<1x20x1xf32>
    %232 = vector.shape_cast %231 : vector<1x20x1xf32> to vector<20x1xf32>
    %c0_143 = arith.constant 0 : index
    %c0_144 = arith.constant 0 : index
    %233 = vector.load %arg9[%c0_143, %c0_144] : memref<20x512xf32, #tpu.memory_space<vmem>>, vector<20x512xf32>
    %cst_145 = arith.constant dense<0.000000e+00> : vector<20x512xf32>
    %234 = tpu.matmul %230, %233, %cst_145 {dimension_numbers = #tpu.dot_dimension_numbers<[1], [0], [0], [1], [0, 0, 1, 1], [], []>} : vector<20x20xf32>, vector<20x512xf32>, vector<20x512xf32> -> vector<20x512xf32>
    %235 = vector.extract_strided_slice %234 {offsets = [0, 0], sizes = [20, 128], strides = [1, 1]} : vector<20x512xf32> to vector<20x128xf32>
    %236 = vector.broadcast %232 : vector<20x1xf32> to vector<20x128xf32>
    %237 = arith.addf %235, %236 : vector<20x128xf32>
    %238 = vector.extract_strided_slice %234 {offsets = [0, 128], sizes = [20, 128], strides = [1, 1]} : vector<20x512xf32> to vector<20x128xf32>
    %239 = vector.extract_strided_slice %234 {offsets = [0, 256], sizes = [20, 128], strides = [1, 1]} : vector<20x512xf32> to vector<20x128xf32>
    %240 = vector.extract_strided_slice %234 {offsets = [0, 384], sizes = [20, 128], strides = [1, 1]} : vector<20x512xf32> to vector<20x128xf32>
    %241 = math.tanh %237 : vector<20x128xf32>
    %242 = arith.mulf %241, %241 : vector<20x128xf32>
    %cst_146 = arith.constant 1.000000e+00 : f32
    %243 = vector.broadcast %cst_146 : f32 to vector<20x128xf32>
    %244 = arith.subf %243, %242 : vector<20x128xf32>
    %245 = arith.mulf %244, %239 : vector<20x128xf32>
    %c0_147 = arith.constant 0 : index
    %c0_148 = arith.constant 0 : index
    %246 = vector.load %arg9[%c0_147, %c0_148] : memref<20x512xf32, #tpu.memory_space<vmem>>, vector<20x128xf32>
    tpu.vector_store %arg9[%c0_147, %c0_148], %241 {strides = array<i32>} : memref<20x512xf32, #tpu.memory_space<vmem>>, vector<20x128xf32>,
    %247 = arith.mulf %244, %238 : vector<20x128xf32>
    %c0_149 = arith.constant 0 : index
    %c128_150 = arith.constant 128 : index
    %248 = vector.load %arg9[%c0_149, %c128_150] : memref<20x512xf32, #tpu.memory_space<vmem>>, vector<20x128xf32>
    tpu.vector_store %arg9[%c0_149, %c128_150], %247 {strides = array<i32>} : memref<20x512xf32, #tpu.memory_space<vmem>>, vector<20x128xf32>,
    %c0_151 = arith.constant 0 : index
    %c256_152 = arith.constant 256 : index
    %249 = vector.load %arg9[%c0_151, %c256_152] : memref<20x512xf32, #tpu.memory_space<vmem>>, vector<20x128xf32>
    tpu.vector_store %arg9[%c0_151, %c256_152], %245 {strides = array<i32>} : memref<20x512xf32, #tpu.memory_space<vmem>>, vector<20x128xf32>,
    %250 = arith.mulf %244, %240 : vector<20x128xf32>
    %cst_153 = arith.constant 2.000000e+00 : f32
    %251 = vector.broadcast %cst_153 : f32 to vector<20x128xf32>
    %252 = arith.mulf %251, %241 : vector<20x128xf32>
    %253 = arith.mulf %245, %239 : vector<20x128xf32>
    %254 = arith.mulf %252, %253 : vector<20x128xf32>
    %255 = arith.subf %250, %254 : vector<20x128xf32>
    %c0_154 = arith.constant 0 : index
    %c384_155 = arith.constant 384 : index
    %256 = vector.load %arg9[%c0_154, %c384_155] : memref<20x512xf32, #tpu.memory_space<vmem>>, vector<20x128xf32>
    tpu.vector_store %arg9[%c0_154, %c384_155], %255 {strides = array<i32>} : memref<20x512xf32, #tpu.memory_space<vmem>>, vector<20x128xf32>,
    %c0_156 = arith.constant 0 : index
    %c0_157 = arith.constant 0 : index
    %257 = vector.load %arg6[%c0_156, %c0_157] : memref<1x20xf32, #tpu.memory_space<vmem>>, vector<1x20xf32>
    %c0_158 = arith.constant 0 : index
    %c0_159 = arith.constant 0 : index
    %258 = vector.load %arg7[%c0_158, %c0_159] : memref<1x1xf32, #tpu.memory_space<vmem>>, vector<1x1xf32>
    %c0_160 = arith.constant 0 : index
    %c0_161 = arith.constant 0 : index
    %259 = vector.load %arg9[%c0_160, %c0_161] : memref<20x512xf32, #tpu.memory_space<vmem>>, vector<20x512xf32>
    %cst_162 = arith.constant dense<0.000000e+00> : vector<1x512xf32>
    %260 = tpu.matmul %257, %259, %cst_162 {dimension_numbers = #tpu.dot_dimension_numbers<[1], [0], [0], [1], [0, 0, 1, 1], [], []>} : vector<1x20xf32>, vector<20x512xf32>, vector<1x512xf32> -> vector<1x512xf32>
    %261 = vector.extract_strided_slice %260 {offsets = [0, 0], sizes = [1, 128], strides = [1, 1]} : vector<1x512xf32> to vector<1x128xf32>
    %262 = vector.broadcast %258 : vector<1x1xf32> to vector<1x128xf32>
    %263 = arith.addf %261, %262 : vector<1x128xf32>
    %264 = vector.extract_strided_slice %260 {offsets = [0, 128], sizes = [1, 128], strides = [1, 1]} : vector<1x512xf32> to vector<1x128xf32>
    %265 = vector.extract_strided_slice %260 {offsets = [0, 256], sizes = [1, 128], strides = [1, 1]} : vector<1x512xf32> to vector<1x128xf32>
    %266 = vector.extract_strided_slice %260 {offsets = [0, 384], sizes = [1, 128], strides = [1, 1]} : vector<1x512xf32> to vector<1x128xf32>
    %cst_163 = arith.constant 5.000000e-01 : f32
    %267 = vector.broadcast %cst_163 : f32 to vector<1x128xf32>
    %268 = arith.mulf %267, %2 : vector<1x128xf32>
    %269 = arith.mulf %268, %2 : vector<1x128xf32>
    %270 = arith.addf %269, %264 : vector<1x128xf32>
    %cst_164 = arith.constant 5.000000e-01 : f32
    %271 = vector.broadcast %cst_164 : f32 to vector<1x128xf32>
    %272 = arith.mulf %271, %266 : vector<1x128xf32>
    %273 = arith.addf %270, %272 : vector<1x128xf32>
    %cst_165 = arith.constant 5.000000e-01 : f32
    %274 = vector.broadcast %cst_165 : f32 to vector<1x128xf32>
    %275 = arith.mulf %274, %2 : vector<1x128xf32>
    %276 = arith.mulf %275, %265 : vector<1x128xf32>
    %277 = arith.addf %273, %276 : vector<1x128xf32>
    %278 = arith.mulf %265, %265 : vector<1x128xf32>
    %cst_166 = arith.constant 0.0694444477 : f32
    %279 = vector.broadcast %cst_166 : f32 to vector<1x128xf32>
    %280 = arith.mulf %279, %278 : vector<1x128xf32>
    %281 = arith.subf %277, %280 : vector<1x128xf32>
    %c0_167 = arith.constant 0 : index
    %c0_168 = arith.constant 0 : index
    %282 = vector.load %arg8[%c0_167, %c0_168] : memref<2x128xf32, #tpu.memory_space<vmem>>, vector<1x128xf32>
    tpu.vector_store %arg8[%c0_167, %c0_168], %263 {strides = array<i32>} : memref<2x128xf32, #tpu.memory_space<vmem>>, vector<1x128xf32>,
    %c1_169 = arith.constant 1 : index
    %c0_170 = arith.constant 0 : index
    %283 = vector.load %arg8[%c1_169, %c0_170] : memref<2x128xf32, #tpu.memory_space<vmem>>, vector<1x128xf32>
    tpu.vector_store %arg8[%c1_169, %c0_170], %281 {strides = array<i32>} : memref<2x128xf32, #tpu.memory_space<vmem>>, vector<1x128xf32>,
    return
  }
  func.func @transform_0(%arg0: i32) -> (i32, i32) {
    %c0_i32 = arith.constant 0 : i32
    %c0_i32_0 = arith.constant 0 : i32
    return %c0_i32, %arg0 : i32, i32
  }
  func.func @transform_1(%arg0: i32) -> (i32, i32) {
    %c0_i32 = arith.constant 0 : i32
    %c0_i32_0 = arith.constant 0 : i32
    %c0_i32_1 = arith.constant 0 : i32
    return %c0_i32, %c0_i32_0 : i32, i32
  }
  func.func @transform_2(%arg0: i32) -> (i32, i32) {
    %c0_i32 = arith.constant 0 : i32
    %c0_i32_0 = arith.constant 0 : i32
    %c0_i32_1 = arith.constant 0 : i32
    return %c0_i32, %c0_i32_0 : i32, i32
  }
  func.func @transform_3(%arg0: i32) -> (i32, i32, i32) {
    %c0_i32 = arith.constant 0 : i32
    %c0_i32_0 = arith.constant 0 : i32
    %c0_i32_1 = arith.constant 0 : i32
    %c0_i32_2 = arith.constant 0 : i32
    return %c0_i32, %c0_i32_0, %c0_i32_1 : i32, i32, i32
  }
  func.func @transform_4(%arg0: i32) -> (i32, i32, i32) {
    %c0_i32 = arith.constant 0 : i32
    %c0_i32_0 = arith.constant 0 : i32
    %c0_i32_1 = arith.constant 0 : i32
    %c0_i32_2 = arith.constant 0 : i32
    return %c0_i32, %c0_i32_0, %c0_i32_1 : i32, i32, i32
  }
  func.func @transform_5(%arg0: i32) -> (i32, i32) {
    %c0_i32 = arith.constant 0 : i32
    %c0_i32_0 = arith.constant 0 : i32
    %c0_i32_1 = arith.constant 0 : i32
    return %c0_i32, %c0_i32_0 : i32, i32
  }
  func.func @transform_6(%arg0: i32) -> (i32, i32) {
    %c0_i32 = arith.constant 0 : i32
    %c0_i32_0 = arith.constant 0 : i32
    %c0_i32_1 = arith.constant 0 : i32
    return %c0_i32, %c0_i32_0 : i32, i32
  }
  func.func @transform_7(%arg0: i32) -> (i32, i32) {
    %c0_i32 = arith.constant 0 : i32
    %c0_i32_0 = arith.constant 0 : i32
    return %c0_i32, %arg0 : i32, i32
  }
}

</mosaic_0001>

<llo_original>
// kernel: tpu_custom_call.1
$region0: #{tpu_custom_call.1}
  #allocation0 [shape = 'u32[]', space=smem, size = 0x4, offset = 0x4, fixed_abs, tag = 'smem constant byte address 0x4 - core index']
  #allocation1 [shape = 'u32[144,128]{1,0:T(1,128)}', space=vmem, size = 0x12000, scoped, tag = 'internal scratch']
  #allocation2 [shape = 'f32[20,512]{1,0:T(8,128)}', space=vmem, size = 0xc000, scoped, tag = 'scratch operand']
  #allocation3 [shape = 'f32[1,1]{1,0:T(1,128)S(1)}', space=vmem, size = 0x200, scoped, tag = 'scoped memory for tpu_custom_call.1']
  %s0 = inlined_call_operand.vmem [shape: f32[2,128], index: 0, kind: input, shape index: {}]
  %s1 = inlined_call_operand.vmem [shape: f32[20,2], index: 1, kind: input, shape index: {}]
  %s2 = inlined_call_operand.vmem [shape: f32[20,1], index: 2, kind: input, shape index: {}]
  %s3 = inlined_call_operand.vmem [shape: f32[8,20,20], index: 3, kind: input, shape index: {}]
  %s4 = inlined_call_operand.vmem [shape: f32[8,20,1], index: 4, kind: input, shape index: {}]
  %s5 = inlined_call_operand.vmem [shape: f32[1,20], index: 5, kind: input, shape index: {}]
  %s6 = inlined_call_operand.<no memory space> [shape: f32[1,1], index: 6, kind: input, shape index: {}]
  %s7 = inlined_call_operand.hbm [shape: f32[2,128], index: 7, kind: output, shape index: {}]
  %s8 = sld [smem:[#allocation0]]
  $region38: #{tpu_custom_call.1} parent=0
    _
  %s10 = ssub.s32 1, %s8
  %s11 = scalar_select 0, %s10, %s8
  %v12 = vstv %s6
  %13 = vst [vmem:[#allocation3] sm:$0x1] %v12
  $region1: #{tpu_custom_call.1} parent=0
    #allocation4 [shape = 'u8[1024]{0}', space=vmem, size = 0x400, scoped, tag = 'output window, operand 0, single buffered']
    #allocation5 [shape = 's32[1]{0}', space=sflag, size = 0x4, scoped, tag = 'scoped memory for tpu_custom_call.1']
    %14 = vsyncpa [#allocation5], 0
    // Predicated region
    $region2: #{tpu_custom_call.1} parent=1 // pred_check
      _
    $region3: #{tpu_custom_call.1} parent=1 // pred_check_branch
      %16 = sbr.rel (0) target = $region5
    $region4: #{tpu_custom_call.1} parent=1 // pred_region
      _
    $region5: #{tpu_custom_call.1} parent=1 // pred_fallthru
      _
    // Predicated region
    $region6: #{tpu_custom_call.1} parent=1 // pred_check
      _
    $region7: #{tpu_custom_call.1} parent=1 // pred_check_branch
      %18 = sbr.rel (0) target = $region9
    $region8: #{tpu_custom_call.1} parent=1 // pred_region
      _
    $region9: #{tpu_custom_call.1} parent=1 // pred_fallthru
      _
    // Predicated region
    $region10: #{tpu_custom_call.1} parent=1 // pred_check
      _
    $region11: #{tpu_custom_call.1} parent=1 // pred_check_branch
      %20 = sbr.rel (0) target = $region13
    $region12: #{tpu_custom_call.1} parent=1 // pred_region
      _
    $region13: #{tpu_custom_call.1} parent=1 // pred_fallthru
      _
    // Predicated region
    $region14: #{tpu_custom_call.1} parent=1 // pred_check
      _
    $region15: #{tpu_custom_call.1} parent=1 // pred_check_branch
      %22 = sbr.rel (0) target = $region17
    $region16: #{tpu_custom_call.1} parent=1 // pred_region
      _
    $region17: #{tpu_custom_call.1} parent=1 // pred_fallthru
      _
    // Predicated region
    $region18: #{tpu_custom_call.1} parent=1 // pred_check
      _
    $region19: #{tpu_custom_call.1} parent=1 // pred_check_branch
      %24 = sbr.rel (0) target = $region21
    $region20: #{tpu_custom_call.1} parent=1 // pred_region
      _
    $region21: #{tpu_custom_call.1} parent=1 // pred_fallthru
      _
    // Predicated region
    $region22: #{tpu_custom_call.1} parent=1 // pred_check
      _
    $region23: #{tpu_custom_call.1} parent=1 // pred_check_branch
      %26 = sbr.rel (0) target = $region25
    $region24: #{tpu_custom_call.1} parent=1 // pred_region
      _
    $region25: #{tpu_custom_call.1} parent=1 // pred_fallthru
      _
    // Predicated region
    $region26: #{tpu_custom_call.1} parent=1 // pred_check
      _
    $region27: #{tpu_custom_call.1} parent=1 // pred_check_branch
      %28 = sbr.rel (0) target = $region29
    $region28: #{tpu_custom_call.1} parent=1 // pred_region
      _
    $region29: #{tpu_custom_call.1} parent=1 // pred_fallthru
      _
    %v29 = vld [vmem:[%s0] sm:$0x3]
    %v30 = vld [vmem:[%s1] sm:$0xff]
    %v31 = vld [vmem:[%s1 + $0x8] sm:$0xff]
    %v32 = vld [vmem:[%s1 + $0x10] sm:$0xf]
    %v33 = vld [vmem:[%s2] sm:$0xff]
    %v34 = vld [vmem:[%s2 + $0x8] sm:$0xff]
    %v35 = vld [vmem:[%s2 + $0x10] sm:$0xf]
    %v36 = vmul.f32 %v30, -2.0
    %v37 = vmul.f32 %v31, -2.0
    %v38 = vmul.f32 %v32, -2.0
    %40 = vset.pattern.permute.xlu0 0
    %41 = vperm.xlu0 %40, %v30
    %v42 = vpop.permute.xlu0 %41
    %45 = vset.pattern.permute.xlu0 0
    %46 = vperm.xlu0 %45, %v31
    %v47 = vpop.permute.xlu0 %46
    %50 = vset.pattern.permute.xlu0 0
    %51 = vperm.xlu0 %50, %v32
    %v52 = vpop.permute.xlu0 %51
    %v54 = vlaneseq
    %v55 = vshrl.u32 %v54, 7
    %v56 = vsub.s32 0, %v55
    %v57 = vrot.slane %v29, %v56
    %v58 = vmul.f32 %v42, %v57
    %v59 = vmul.f32 %v47, %v57
    %v60 = vmul.f32 %v52, %v57
    %61 = vset.pattern.permute.xlu0 1
    %62 = vperm.xlu0 %61, %v30
    %v63 = vpop.permute.xlu0 %62
    %65 = vset.pattern.permute.xlu0 1
    %66 = vperm.xlu0 %65, %v31
    %v67 = vpop.permute.xlu0 %66
    %69 = vset.pattern.permute.xlu0 1
    %70 = vperm.xlu0 %69, %v32
    %v71 = vpop.permute.xlu0 %70
    %v73 = vlaneseq
    %v74 = vshrl.u32 %v73, 7
    %v75 = vsub.s32 1, %v74
    %v76 = vrot.slane %v29, %v75
    %v77 = vmul.f32 %v63, %v76
    %v78 = vmul.f32 %v67, %v76
    %v79 = vmul.f32 %v71, %v76
    %v80 = vadd.f32 %v58, %v77
    %v81 = vadd.f32 %v59, %v78
    %v82 = vadd.f32 %v60, %v79
    %84 = vset.pattern.permute.xlu0 0
    %85 = vperm.xlu0 %84, %v33
    %v86 = vpop.permute.xlu0 %85
    %89 = vset.pattern.permute.xlu0 0
    %90 = vperm.xlu0 %89, %v34
    %v91 = vpop.permute.xlu0 %90
    %94 = vset.pattern.permute.xlu0 0
    %95 = vperm.xlu0 %94, %v35
    %v96 = vpop.permute.xlu0 %95
    %v98 = vadd.f32 %v80, %v86
    %v99 = vadd.f32 %v81, %v91
    %v100 = vadd.f32 %v82, %v96
    %v101 = vtanh.pop %v98
    %v102 = vtanh.pop %v99
    %v103 = vtanh.pop %v100
    %v104 = vmul.f32 %v101, %v101
    %v105 = vmul.f32 %v102, %v102
    %v106 = vmul.f32 %v103, %v103
    %v107 = vsub.f32 1.0, %v104
    %v108 = vsub.f32 1.0, %v105
    %v109 = vsub.f32 1.0, %v106
    %v110 = vmul.f32 %v107, %v63
    %v111 = vmul.f32 %v108, %v67
    %v112 = vmul.f32 %v109, %v71
    %113 = vst [vmem:[#allocation2] sm:$0xff] %v101
    %114 = vst [vmem:[#allocation2 + $0x20] sm:$0xff] %v102
    %115 = vst [vmem:[#allocation2 + $0x40] sm:$0xf] %v103
    %v116 = vmul.f32 %v107, %v42
    %v117 = vmul.f32 %v108, %v47
    %v118 = vmul.f32 %v109, %v52
    %119 = vst [vmem:[#allocation2 + $0x8] sm:$0xff] %v116
    %120 = vst [vmem:[#allocation2 + $0x28] sm:$0xff] %v117
    %121 = vst [vmem:[#allocation2 + $0x48] sm:$0xf] %v118
    %122 = vst [vmem:[#allocation2 + $0x10] sm:$0xff] %v110
    %123 = vst [vmem:[#allocation2 + $0x30] sm:$0xff] %v111
    %124 = vst [vmem:[#allocation2 + $0x50] sm:$0xf] %v112
    %v125 = vmul.f32 %v101, %v110
    %v126 = vmul.f32 %v102, %v111
    %v127 = vmul.f32 %v103, %v112
    %129 = vset.pattern.permute.xlu0 1
    %130 = vperm.xlu0 %129, %v36
    %v131 = vpop.permute.xlu0 %130
    %134 = vset.pattern.permute.xlu0 1
    %135 = vperm.xlu0 %134, %v37
    %v136 = vpop.permute.xlu0 %135
    %139 = vset.pattern.permute.xlu0 1
    %140 = vperm.xlu0 %139, %v38
    %v141 = vpop.permute.xlu0 %140
    %v143 = vmul.f32 %v125, %v131
    %v144 = vmul.f32 %v126, %v136
    %v145 = vmul.f32 %v127, %v141
    %146 = vst [vmem:[#allocation2 + $0x18] sm:$0xff] %v143
    %147 = vst [vmem:[#allocation2 + $0x38] sm:$0xff] %v144
    %148 = vst [vmem:[#allocation2 + $0x58] sm:$0xf] %v145
    %v149 = vld [vmem:[%s3] sm:$0xff]
    %v150 = vld [vmem:[%s3 + $0x8] sm:$0xff]
    %v151 = vld [vmem:[%s3 + $0x10] sm:$0xf]
    %v152 = vld [vmem:[%s4] sm:$0xff]
    %v153 = vld [vmem:[%s4 + $0x8] sm:$0xff]
    %v154 = vld [vmem:[%s4 + $0x10] sm:$0xf]
    %v155 = vld [vmem:[#allocation2] sm:$0xff]
    %v156 = vld [vmem:[#allocation2 + $0x8] sm:$0xff]
    %v157 = vld [vmem:[#allocation2 + $0x10] sm:$0xff]
    %v158 = vld [vmem:[#allocation2 + $0x18] sm:$0xff]
    %v159 = vld [vmem:[#allocation2 + $0x20] sm:$0xff]
    %v160 = vld [vmem:[#allocation2 + $0x28] sm:$0xff]
    %v161 = vld [vmem:[#allocation2 + $0x30] sm:$0xff]
    %v162 = vld [vmem:[#allocation2 + $0x38] sm:$0xff]
    %v163 = vld [vmem:[#allocation2 + $0x40] sm:$0xf]
    %v164 = vld [vmem:[#allocation2 + $0x48] sm:$0xf]
    %v165 = vld [vmem:[#allocation2 + $0x50] sm:$0xf]
    %v166 = vld [vmem:[#allocation2 + $0x58] sm:$0xf]
    %vm167 = vcmask 162816
    %v169 = vsel %vm167, %v149, 0
    %v172 = vsel %vm167, %v150, 0
    %v175 = vsel %vm167, %v151, 0
    %vm177 = vcmask 1043456
    %v179 = vsel %vm177, %v163, 0
    %v182 = vsel %vm177, %v164, 0
    %v185 = vsel %vm177, %v165, 0
    %v188 = vsel %vm177, %v166, 0
    %190 = vmatprep.subr.mxu0 %v156
    %191 = vmatpush1.msra.mxu0 %v155
    %192 = vmatprep.subr.mxu0 %v160
    %193 = vmatpush1.msra.mxu0 %v159
    %194 = vmatprep.subr.mxu0 %v182
    %195 = vmatpush1.msra.mxu0 %v179
    %196 = vmatprep.subr.mxu0 0.0
    %197 = vmatpush1.msra.mxu0 0.0
    %198 = vmatprep.subr.mxu0 0.0
    %199 = vmatpush1.msra.mxu0 0.0
    %200 = vmatprep.subr.mxu0 0.0
    %201 = vmatpush1.msra.mxu0 0.0
    %202 = vmatprep.subr.mxu0 0.0
    %203 = vmatpush1.msra.mxu0 0.0
    %204 = vmatprep.subr.mxu0 0.0
    %205 = vmatpush1.msra.mxu0 0.0
    %206 = vmatprep.subr.mxu0 0.0
    %207 = vmatpush1.msra.mxu0 0.0
    %208 = vmatprep.subr.mxu0 0.0
    %209 = vmatpush1.msra.mxu0 0.0
    %210 = vmatprep.subr.mxu0 0.0
    %211 = vmatpush1.msra.mxu0 0.0
    %212 = vmatprep.subr.mxu0 0.0
    %213 = vmatpush1.msra.mxu0 0.0
    %214 = vmatprep.subr.mxu0 0.0
    %215 = vmatpush1.msra.mxu0 0.0
    %216 = vmatprep.subr.mxu0 0.0
    %217 = vmatpush1.msra.mxu0 0.0
    %218 = vmatprep.subr.mxu0 0.0
    %219 = vmatpush1.msra.mxu0 0.0
    %220 = vmatprep.subr.mxu0 0.0
    %221 = vmatpush1.msra.mxu0 0.0
    %222 = vmatprep.subr.mxu0 0.0
    %223 = vmatpush1.msra.mxu0 0.0
    %224 = vmatprep.subr.mxu0 0.0
    %225 = vmatpush1.msra.mxu0 0.0
    %226 = vmatprep.subr.mxu0 0.0
    %227 = vmatpush1.msra.mxu0 0.0
    %228 = vmatprep.subr.mxu0 0.0
    %229 = vmatpush1.msra.mxu0 0.0
    %230 = vmatprep.subr.mxu0 0.0
    %231 = vmatpush1.msra.mxu0 0.0
    %232 = vmatprep.subr.mxu0 0.0
    %233 = vmatpush1.msra.mxu0 0.0
    %234 = vmatprep.subr.mxu0 0.0
    %235 = vmatpush1.msra.mxu0 0.0
    %236 = vmatprep.subr.mxu0 0.0
    %237 = vmatpush1.msra.mxu0 0.0
    %238 = vmatprep.subr.mxu0 0.0
    %239 = vmatpush1.msra.mxu0 0.0
    %240 = vmatprep.subr.mxu0 0.0
    %241 = vmatpush1.msra.mxu0 0.0
    %242 = vmatprep.subr.mxu0 0.0
    %243 = vmatpush1.msra.mxu0 0.0
    %244 = vmatprep.subr.mxu0 0.0
    %245 = vmatpush1.msra.mxu0 0.0
    %246 = vmatprep.subr.mxu0 0.0
    %247 = vmatpush1.msra.mxu0 0.0
    %248 = vmatprep.subr.mxu0 0.0
    %249 = vmatpush1.msra.mxu0 0.0
    %250 = vmatprep.subr.mxu0 0.0
    %251 = vmatpush1.msra.mxu0 0.0
    %252 = vmatprep.subr.mxu0 0.0
    %253 = vmatpush1.msra.mxu0 0.0
    %254 = vmatprep.mubr.f32.mxu0 0.0
    %255 = vmatmul.mubr.f32.gmra.mrb[0].mxu0 %v169
    %v256 = vpop.f32.mrb[0].mxu0
    %v257 = vadd.f32 0.0, %v256
    %v258 = vpop.f32.mrb[0].mxu0
    %v259 = vadd.f32 0.0, %v258
    %260 = vmatprep.mubr.f32.mxu0 0.0
    %261 = vmatmul.mubr.f32.gmra.mrb[0].mxu0 %v172
    %v262 = vpop.f32.mrb[0].mxu0
    %v263 = vadd.f32 0.0, %v262
    %v264 = vpop.f32.mrb[0].mxu0
    %v265 = vadd.f32 0.0, %v264
    %266 = vmatprep.mubr.f32.mxu0 0.0
    %267 = vmatmul.mubr.f32.gmra.mrb[0].mxu0 %v175
    %v268 = vpop.f32.mrb[0].mxu0
    %v269 = vadd.f32 0.0, %v268
    %v270 = vpop.f32.mrb[0].mxu0
    %v271 = vadd.f32 0.0, %v270
    %272 = vdwg.mxu0
    %273 = vmatprep.subr.mxu0 %v158
    %274 = vmatpush1.msra.mxu0 %v157
    %275 = vmatprep.subr.mxu0 %v162
    %276 = vmatpush1.msra.mxu0 %v161
    %277 = vmatprep.subr.mxu0 %v188
    %278 = vmatpush1.msra.mxu0 %v185
    %279 = vmatprep.subr.mxu0 0.0
    %280 = vmatpush1.msra.mxu0 0.0
    %281 = vmatprep.subr.mxu0 0.0
    %282 = vmatpush1.msra.mxu0 0.0
    %283 = vmatprep.subr.mxu0 0.0
    %284 = vmatpush1.msra.mxu0 0.0
    %285 = vmatprep.subr.mxu0 0.0
    %286 = vmatpush1.msra.mxu0 0.0
    %287 = vmatprep.subr.mxu0 0.0
    %288 = vmatpush1.msra.mxu0 0.0
    %289 = vmatprep.subr.mxu0 0.0
    %290 = vmatpush1.msra.mxu0 0.0
    %291 = vmatprep.subr.mxu0 0.0
    %292 = vmatpush1.msra.mxu0 0.0
    %293 = vmatprep.subr.mxu0 0.0
    %294 = vmatpush1.msra.mxu0 0.0
    %295 = vmatprep.subr.mxu0 0.0
    %296 = vmatpush1.msra.mxu0 0.0
    %297 = vmatprep.subr.mxu0 0.0
    %298 = vmatpush1.msra.mxu0 0.0
    %299 = vmatprep.subr.mxu0 0.0
    %300 = vmatpush1.msra.mxu0 0.0
    %301 = vmatprep.subr.mxu0 0.0
    %302 = vmatpush1.msra.mxu0 0.0
    %303 = vmatprep.subr.mxu0 0.0
    %304 = vmatpush1.msra.mxu0 0.0
    %305 = vmatprep.subr.mxu0 0.0
    %306 = vmatpush1.msra.mxu0 0.0
    %307 = vmatprep.subr.mxu0 0.0
    %308 = vmatpush1.msra.mxu0 0.0
    %309 = vmatprep.subr.mxu0 0.0
    %310 = vmatpush1.msra.mxu0 0.0
    %311 = vmatprep.subr.mxu0 0.0
    %312 = vmatpush1.msra.mxu0 0.0
    %313 = vmatprep.subr.mxu0 0.0
    %314 = vmatpush1.msra.mxu0 0.0
    %315 = vmatprep.subr.mxu0 0.0
    %316 = vmatpush1.msra.mxu0 0.0
    %317 = vmatprep.subr.mxu0 0.0
    %318 = vmatpush1.msra.mxu0 0.0
    %319 = vmatprep.subr.mxu0 0.0
    %320 = vmatpush1.msra.mxu0 0.0
    %321 = vmatprep.subr.mxu0 0.0
    %322 = vmatpush1.msra.mxu0 0.0
    %323 = vmatprep.subr.mxu0 0.0
    %324 = vmatpush1.msra.mxu0 0.0
    %325 = vmatprep.subr.mxu0 0.0
    %326 = vmatpush1.msra.mxu0 0.0
    %327 = vmatprep.subr.mxu0 0.0
    %328 = vmatpush1.msra.mxu0 0.0
    %329 = vmatprep.subr.mxu0 0.0
    %330 = vmatpush1.msra.mxu0 0.0
    %331 = vmatprep.subr.mxu0 0.0
    %332 = vmatpush1.msra.mxu0 0.0
    %333 = vmatprep.subr.mxu0 0.0
    %334 = vmatpush1.msra.mxu0 0.0
    %335 = vmatprep.subr.mxu0 0.0
    %336 = vmatpush1.msra.mxu0 0.0
    %337 = vmatprep.mubr.f32.mxu0 0.0
    %338 = vmatmul.mubr.f32.gmra.mrb[0].mxu0 %v169
    %v339 = vpop.f32.mrb[0].mxu0
    %v340 = vadd.f32 0.0, %v339
    %v341 = vpop.f32.mrb[0].mxu0
    %v342 = vadd.f32 0.0, %v341
    %343 = vmatprep.mubr.f32.mxu0 0.0
    %344 = vmatmul.mubr.f32.gmra.mrb[0].mxu0 %v172
    %v345 = vpop.f32.mrb[0].mxu0
    %v346 = vadd.f32 0.0, %v345
    %v347 = vpop.f32.mrb[0].mxu0
    %v348 = vadd.f32 0.0, %v347
    %349 = vmatprep.mubr.f32.mxu0 0.0
    %350 = vmatmul.mubr.f32.gmra.mrb[0].mxu0 %v175
    %v351 = vpop.f32.mrb[0].mxu0
    %v352 = vadd.f32 0.0, %v351
    %v353 = vpop.f32.mrb[0].mxu0
    %v354 = vadd.f32 0.0, %v353
    %355 = vdwg.mxu0
    %357 = vset.pattern.permute.xlu0 0
    %358 = vperm.xlu0 %357, %v152
    %v359 = vpop.permute.xlu0 %358
    %362 = vset.pattern.permute.xlu0 0
    %363 = vperm.xlu0 %362, %v153
    %v364 = vpop.permute.xlu0 %363
    %367 = vset.pattern.permute.xlu0 0
    %368 = vperm.xlu0 %367, %v154
    %v369 = vpop.permute.xlu0 %368
    %v371 = vadd.f32 %v257, %v359
    %v372 = vadd.f32 %v263, %v364
    %v373 = vadd.f32 %v269, %v369
    %v374 = vtanh.pop %v371
    %v375 = vtanh.pop %v372
    %v376 = vtanh.pop %v373
    %v377 = vmul.f32 %v374, %v374
    %v378 = vmul.f32 %v375, %v375
    %v379 = vmul.f32 %v376, %v376
    %v380 = vsub.f32 1.0, %v377
    %v381 = vsub.f32 1.0, %v378
    %v382 = vsub.f32 1.0, %v379
    %v383 = vmul.f32 %v380, %v340
    %v384 = vmul.f32 %v381, %v346
    %v385 = vmul.f32 %v382, %v352
    %386 = vst [vmem:[#allocation2] sm:$0xff] %v374
    %387 = vst [vmem:[#allocation2 + $0x20] sm:$0xff] %v375
    %388 = vst [vmem:[#allocation2 + $0x40] sm:$0xf] %v376
    %v389 = vmul.f32 %v380, %v259
    %v390 = vmul.f32 %v381, %v265
    %v391 = vmul.f32 %v382, %v271
    %392 = vst [vmem:[#allocation2 + $0x8] sm:$0xff] %v389
    %393 = vst [vmem:[#allocation2 + $0x28] sm:$0xff] %v390
    %394 = vst [vmem:[#allocation2 + $0x48] sm:$0xf] %v391
    %395 = vst [vmem:[#allocation2 + $0x10] sm:$0xff] %v383
    %396 = vst [vmem:[#allocation2 + $0x30] sm:$0xff] %v384
    %397 = vst [vmem:[#allocation2 + $0x50] sm:$0xf] %v385
    %v398 = vmul.f32 %v380, %v342
    %v399 = vmul.f32 %v381, %v348
    %v400 = vmul.f32 %v382, %v354
    %v401 = vmul.f32 %v374, 2.0
    %v402 = vmul.f32 %v375, 2.0
    %v403 = vmul.f32 %v376, 2.0
    %v404 = vmul.f32 %v383, %v340
    %v405 = vmul.f32 %v384, %v346
    %v406 = vmul.f32 %v385, %v352
    %v407 = vmul.f32 %v401, %v404
    %v408 = vmul.f32 %v402, %v405
    %v409 = vmul.f32 %v403, %v406
    %v410 = vsub.f32 %v398, %v407
    %v411 = vsub.f32 %v399, %v408
    %v412 = vsub.f32 %v400, %v409
    %413 = vst [vmem:[#allocation2 + $0x18] sm:$0xff] %v410
    %414 = vst [vmem:[#allocation2 + $0x38] sm:$0xff] %v411
    %415 = vst [vmem:[#allocation2 + $0x58] sm:$0xf] %v412
    %s416 = scalar_lea.vmem %s3, 24
    %v417 = vld [vmem:[%s416] sm:$0xff]
    %v418 = vld [vmem:[%s416 + $0x8] sm:$0xff]
    %v419 = vld [vmem:[%s416 + $0x10] sm:$0xf]
    %s420 = scalar_lea.vmem %s4, 24
    %v421 = vld [vmem:[%s420] sm:$0xff]
    %v422 = vld [vmem:[%s420 + $0x8] sm:$0xff]
    %v423 = vld [vmem:[%s420 + $0x10] sm:$0xf]
    %v424 = vld [vmem:[#allocation2] sm:$0xff]
    %v425 = vld [vmem:[#allocation2 + $0x8] sm:$0xff]
    %v426 = vld [vmem:[#allocation2 + $0x10] sm:$0xff]
    %v427 = vld [vmem:[#allocation2 + $0x18] sm:$0xff]
    %v428 = vld [vmem:[#allocation2 + $0x20] sm:$0xff]
    %v429 = vld [vmem:[#allocation2 + $0x28] sm:$0xff]
    %v430 = vld [vmem:[#allocation2 + $0x30] sm:$0xff]
    %v431 = vld [vmem:[#allocation2 + $0x38] sm:$0xff]
    %v432 = vld [vmem:[#allocation2 + $0x40] sm:$0xf]
    %v433 = vld [vmem:[#allocation2 + $0x48] sm:$0xf]
    %v434 = vld [vmem:[#allocation2 + $0x50] sm:$0xf]
    %v435 = vld [vmem:[#allocation2 + $0x58] sm:$0xf]
    %v437 = vsel %vm167, %v417, 0
    %v440 = vsel %vm167, %v418, 0
    %v443 = vsel %vm167, %v419, 0
    %v446 = vsel %vm177, %v432, 0
    %v449 = vsel %vm177, %v433, 0
    %v452 = vsel %vm177, %v434, 0
    %v455 = vsel %vm177, %v435, 0
    %457 = vmatprep.subr.mxu0 %v425
    %458 = vmatpush1.msra.mxu0 %v424
    %459 = vmatprep.subr.mxu0 %v429
    %460 = vmatpush1.msra.mxu0 %v428
    %461 = vmatprep.subr.mxu0 %v449
    %462 = vmatpush1.msra.mxu0 %v446
    %463 = vmatprep.subr.mxu0 0.0
    %464 = vmatpush1.msra.mxu0 0.0
    %465 = vmatprep.subr.mxu0 0.0
    %466 = vmatpush1.msra.mxu0 0.0
    %467 = vmatprep.subr.mxu0 0.0
    %468 = vmatpush1.msra.mxu0 0.0
    %469 = vmatprep.subr.mxu0 0.0
    %470 = vmatpush1.msra.mxu0 0.0
    %471 = vmatprep.subr.mxu0 0.0
    %472 = vmatpush1.msra.mxu0 0.0
    %473 = vmatprep.subr.mxu0 0.0
    %474 = vmatpush1.msra.mxu0 0.0
    %475 = vmatprep.subr.mxu0 0.0
    %476 = vmatpush1.msra.mxu0 0.0
    %477 = vmatprep.subr.mxu0 0.0
    %478 = vmatpush1.msra.mxu0 0.0
    %479 = vmatprep.subr.mxu0 0.0
    %480 = vmatpush1.msra.mxu0 0.0
    %481 = vmatprep.subr.mxu0 0.0
    %482 = vmatpush1.msra.mxu0 0.0
    %483 = vmatprep.subr.mxu0 0.0
    %484 = vmatpush1.msra.mxu0 0.0
    %485 = vmatprep.subr.mxu0 0.0
    %486 = vmatpush1.msra.mxu0 0.0
    %487 = vmatprep.subr.mxu0 0.0
    %488 = vmatpush1.msra.mxu0 0.0
    %489 = vmatprep.subr.mxu0 0.0
    %490 = vmatpush1.msra.mxu0 0.0
    %491 = vmatprep.subr.mxu0 0.0
    %492 = vmatpush1.msra.mxu0 0.0
    %493 = vmatprep.subr.mxu0 0.0
    %494 = vmatpush1.msra.mxu0 0.0
    %495 = vmatprep.subr.mxu0 0.0
    %496 = vmatpush1.msra.mxu0 0.0
    %497 = vmatprep.subr.mxu0 0.0
    %498 = vmatpush1.msra.mxu0 0.0
    %499 = vmatprep.subr.mxu0 0.0
    %500 = vmatpush1.msra.mxu0 0.0
    %501 = vmatprep.subr.mxu0 0.0
    %502 = vmatpush1.msra.mxu0 0.0
    %503 = vmatprep.subr.mxu0 0.0
    %504 = vmatpush1.msra.mxu0 0.0
    %505 = vmatprep.subr.mxu0 0.0
    %506 = vmatpush1.msra.mxu0 0.0
    %507 = vmatprep.subr.mxu0 0.0
    %508 = vmatpush1.msra.mxu0 0.0
    %509 = vmatprep.subr.mxu0 0.0
    %510 = vmatpush1.msra.mxu0 0.0
    %511 = vmatprep.subr.mxu0 0.0
    %512 = vmatpush1.msra.mxu0 0.0
    %513 = vmatprep.subr.mxu0 0.0
    %514 = vmatpush1.msra.mxu0 0.0
    %515 = vmatprep.subr.mxu0 0.0
    %516 = vmatpush1.msra.mxu0 0.0
    %517 = vmatprep.subr.mxu0 0.0
    %518 = vmatpush1.msra.mxu0 0.0
    %519 = vmatprep.subr.mxu0 0.0
    %520 = vmatpush1.msra.mxu0 0.0
    %521 = vmatprep.mubr.f32.mxu0 0.0
    %522 = vmatmul.mubr.f32.gmra.mrb[0].mxu0 %v437
    %v523 = vpop.f32.mrb[0].mxu0
    %v524 = vadd.f32 0.0, %v523
    %v525 = vpop.f32.mrb[0].mxu0
    %v526 = vadd.f32 0.0, %v525
    %527 = vmatprep.mubr.f32.mxu0 0.0
    %528 = vmatmul.mubr.f32.gmra.mrb[0].mxu0 %v440
    %v529 = vpop.f32.mrb[0].mxu0
    %v530 = vadd.f32 0.0, %v529
    %v531 = vpop.f32.mrb[0].mxu0
    %v532 = vadd.f32 0.0, %v531
    %533 = vmatprep.mubr.f32.mxu0 0.0
    %534 = vmatmul.mubr.f32.gmra.mrb[0].mxu0 %v443
    %v535 = vpop.f32.mrb[0].mxu0
    %v536 = vadd.f32 0.0, %v535
    %v537 = vpop.f32.mrb[0].mxu0
    %v538 = vadd.f32 0.0, %v537
    %539 = vdwg.mxu0
    %540 = vmatprep.subr.mxu0 %v427
    %541 = vmatpush1.msra.mxu0 %v426
    %542 = vmatprep.subr.mxu0 %v431
    %543 = vmatpush1.msra.mxu0 %v430
    %544 = vmatprep.subr.mxu0 %v455
    %545 = vmatpush1.msra.mxu0 %v452
    %546 = vmatprep.subr.mxu0 0.0
    %547 = vmatpush1.msra.mxu0 0.0
    %548 = vmatprep.subr.mxu0 0.0
    %549 = vmatpush1.msra.mxu0 0.0
    %550 = vmatprep.subr.mxu0 0.0
    %551 = vmatpush1.msra.mxu0 0.0
    %552 = vmatprep.subr.mxu0 0.0
    %553 = vmatpush1.msra.mxu0 0.0
    %554 = vmatprep.subr.mxu0 0.0
    %555 = vmatpush1.msra.mxu0 0.0
    %556 = vmatprep.subr.mxu0 0.0
    %557 = vmatpush1.msra.mxu0 0.0
    %558 = vmatprep.subr.mxu0 0.0
    %559 = vmatpush1.msra.mxu0 0.0
    %560 = vmatprep.subr.mxu0 0.0
    %561 = vmatpush1.msra.mxu0 0.0
    %562 = vmatprep.subr.mxu0 0.0
    %563 = vmatpush1.msra.mxu0 0.0
    %564 = vmatprep.subr.mxu0 0.0
    %565 = vmatpush1.msra.mxu0 0.0
    %566 = vmatprep.subr.mxu0 0.0
    %567 = vmatpush1.msra.mxu0 0.0
    %568 = vmatprep.subr.mxu0 0.0
    %569 = vmatpush1.msra.mxu0 0.0
    %570 = vmatprep.subr.mxu0 0.0
    %571 = vmatpush1.msra.mxu0 0.0
    %572 = vmatprep.subr.mxu0 0.0
    %573 = vmatpush1.msra.mxu0 0.0
    %574 = vmatprep.subr.mxu0 0.0
    %575 = vmatpush1.msra.mxu0 0.0
    %576 = vmatprep.subr.mxu0 0.0
    %577 = vmatpush1.msra.mxu0 0.0
    %578 = vmatprep.subr.mxu0 0.0
    %579 = vmatpush1.msra.mxu0 0.0
    %580 = vmatprep.subr.mxu0 0.0
    %581 = vmatpush1.msra.mxu0 0.0
    %582 = vmatprep.subr.mxu0 0.0
    %583 = vmatpush1.msra.mxu0 0.0
    %584 = vmatprep.subr.mxu0 0.0
    %585 = vmatpush1.msra.mxu0 0.0
    %586 = vmatprep.subr.mxu0 0.0
    %587 = vmatpush1.msra.mxu0 0.0
    %588 = vmatprep.subr.mxu0 0.0
    %589 = vmatpush1.msra.mxu0 0.0
    %590 = vmatprep.subr.mxu0 0.0
    %591 = vmatpush1.msra.mxu0 0.0
    %592 = vmatprep.subr.mxu0 0.0
    %593 = vmatpush1.msra.mxu0 0.0
    %594 = vmatprep.subr.mxu0 0.0
    %595 = vmatpush1.msra.mxu0 0.0
    %596 = vmatprep.subr.mxu0 0.0
    %597 = vmatpush1.msra.mxu0 0.0
    %598 = vmatprep.subr.mxu0 0.0
    %599 = vmatpush1.msra.mxu0 0.0
    %600 = vmatprep.subr.mxu0 0.0
    %601 = vmatpush1.msra.mxu0 0.0
    %602 = vmatprep.subr.mxu0 0.0
    %603 = vmatpush1.msra.mxu0 0.0
    %604 = vmatprep.mubr.f32.mxu0 0.0
    %605 = vmatmul.mubr.f32.gmra.mrb[0].mxu0 %v437
    %v606 = vpop.f32.mrb[0].mxu0
    %v607 = vadd.f32 0.0, %v606
    %v608 = vpop.f32.mrb[0].mxu0
    %v609 = vadd.f32 0.0, %v608
    %610 = vmatprep.mubr.f32.mxu0 0.0
    %611 = vmatmul.mubr.f32.gmra.mrb[0].mxu0 %v440
    %v612 = vpop.f32.mrb[0].mxu0
    %v613 = vadd.f32 0.0, %v612
    %v614 = vpop.f32.mrb[0].mxu0
    %v615 = vadd.f32 0.0, %v614
    %616 = vmatprep.mubr.f32.mxu0 0.0
    %617 = vmatmul.mubr.f32.gmra.mrb[0].mxu0 %v443
    %v618 = vpop.f32.mrb[0].mxu0
    %v619 = vadd.f32 0.0, %v618
    %v620 = vpop.f32.mrb[0].mxu0
    %v621 = vadd.f32 0.0, %v620
    %622 = vdwg.mxu0
    %624 = vset.pattern.permute.xlu0 0
    %625 = vperm.xlu0 %624, %v421
    %v626 = vpop.permute.xlu0 %625
    %629 = vset.pattern.permute.xlu0 0
    %630 = vperm.xlu0 %629, %v422
    %v631 = vpop.permute.xlu0 %630
    %634 = vset.pattern.permute.xlu0 0
    %635 = vperm.xlu0 %634, %v423
    %v636 = vpop.permute.xlu0 %635
    %v638 = vadd.f32 %v524, %v626
    %v639 = vadd.f32 %v530, %v631
    %v640 = vadd.f32 %v536, %v636
    %v641 = vtanh.pop %v638
    %v642 = vtanh.pop %v639
    %v643 = vtanh.pop %v640
    %v644 = vmul.f32 %v641, %v641
    %v645 = vmul.f32 %v642, %v642
    %v646 = vmul.f32 %v643, %v643
    %v647 = vsub.f32 1.0, %v644
    %v648 = vsub.f32 1.0, %v645
    %v649 = vsub.f32 1.0, %v646
    %v650 = vmul.f32 %v647, %v607
    %v651 = vmul.f32 %v648, %v613
    %v652 = vmul.f32 %v649, %v619
    %653 = vst [vmem:[#allocation2] sm:$0xff] %v641
    %654 = vst [vmem:[#allocation2 + $0x20] sm:$0xff] %v642
    %655 = vst [vmem:[#allocation2 + $0x40] sm:$0xf] %v643
    %v656 = vmul.f32 %v647, %v526
    %v657 = vmul.f32 %v648, %v532
    %v658 = vmul.f32 %v649, %v538
    %659 = vst [vmem:[#allocation2 + $0x8] sm:$0xff] %v656
    %660 = vst [vmem:[#allocation2 + $0x28] sm:$0xff] %v657
    %661 = vst [vmem:[#allocation2 + $0x48] sm:$0xf] %v658
    %662 = vst [vmem:[#allocation2 + $0x10] sm:$0xff] %v650
    %663 = vst [vmem:[#allocation2 + $0x30] sm:$0xff] %v651
    %664 = vst [vmem:[#allocation2 + $0x50] sm:$0xf] %v652
    %v665 = vmul.f32 %v647, %v609
    %v666 = vmul.f32 %v648, %v615
    %v667 = vmul.f32 %v649, %v621
    %v668 = vmul.f32 %v641, 2.0
    %v669 = vmul.f32 %v642, 2.0
    %v670 = vmul.f32 %v643, 2.0
    %v671 = vmul.f32 %v650, %v607
    %v672 = vmul.f32 %v651, %v613
    %v673 = vmul.f32 %v652, %v619
    %v674 = vmul.f32 %v668, %v671
    %v675 = vmul.f32 %v669, %v672
    %v676 = vmul.f32 %v670, %v673
    %v677 = vsub.f32 %v665, %v674
    %v678 = vsub.f32 %v666, %v675
    %v679 = vsub.f32 %v667, %v676
    %680 = vst [vmem:[#allocation2 + $0x18] sm:$0xff] %v677
    %681 = vst [vmem:[#allocation2 + $0x38] sm:$0xff] %v678
    %682 = vst [vmem:[#allocation2 + $0x58] sm:$0xf] %v679
    %s683 = scalar_lea.vmem %s3, 48
    %v684 = vld [vmem:[%s683] sm:$0xff]
    %v685 = vld [vmem:[%s683 + $0x8] sm:$0xff]
    %v686 = vld [vmem:[%s683 + $0x10] sm:$0xf]
    %s687 = scalar_lea.vmem %s4, 48
    %v688 = vld [vmem:[%s687] sm:$0xff]
    %v689 = vld [vmem:[%s687 + $0x8] sm:$0xff]
    %v690 = vld [vmem:[%s687 + $0x10] sm:$0xf]
    %v691 = vld [vmem:[#allocation2] sm:$0xff]
    %v692 = vld [vmem:[#allocation2 + $0x8] sm:$0xff]
    %v693 = vld [vmem:[#allocation2 + $0x10] sm:$0xff]
    %v694 = vld [vmem:[#allocation2 + $0x18] sm:$0xff]
    %v695 = vld [vmem:[#allocation2 + $0x20] sm:$0xff]
    %v696 = vld [vmem:[#allocation2 + $0x28] sm:$0xff]
    %v697 = vld [vmem:[#allocation2 + $0x30] sm:$0xff]
    %v698 = vld [vmem:[#allocation2 + $0x38] sm:$0xff]
    %v699 = vld [vmem:[#allocation2 + $0x40] sm:$0xf]
    %v700 = vld [vmem:[#allocation2 + $0x48] sm:$0xf]
    %v701 = vld [vmem:[#allocation2 + $0x50] sm:$0xf]
    %v702 = vld [vmem:[#allocation2 + $0x58] sm:$0xf]
    %v704 = vsel %vm167, %v684, 0
    %v707 = vsel %vm167, %v685, 0
    %v710 = vsel %vm167, %v686, 0
    %v713 = vsel %vm177, %v699, 0
    %v716 = vsel %vm177, %v700, 0
    %v719 = vsel %vm177, %v701, 0
    %v722 = vsel %vm177, %v702, 0
    %724 = vmatprep.subr.mxu0 %v692
    %725 = vmatpush1.msra.mxu0 %v691
    %726 = vmatprep.subr.mxu0 %v696
    %727 = vmatpush1.msra.mxu0 %v695
    %728 = vmatprep.subr.mxu0 %v716
    %729 = vmatpush1.msra.mxu0 %v713
    %730 = vmatprep.subr.mxu0 0.0
    %731 = vmatpush1.msra.mxu0 0.0
    %732 = vmatprep.subr.mxu0 0.0
    %733 = vmatpush1.msra.mxu0 0.0
    %734 = vmatprep.subr.mxu0 0.0
    %735 = vmatpush1.msra.mxu0 0.0
    %736 = vmatprep.subr.mxu0 0.0
    %737 = vmatpush1.msra.mxu0 0.0
    %738 = vmatprep.subr.mxu0 0.0
    %739 = vmatpush1.msra.mxu0 0.0
    %740 = vmatprep.subr.mxu0 0.0
    %741 = vmatpush1.msra.mxu0 0.0
    %742 = vmatprep.subr.mxu0 0.0
    %743 = vmatpush1.msra.mxu0 0.0
    %744 = vmatprep.subr.mxu0 0.0
    %745 = vmatpush1.msra.mxu0 0.0
    %746 = vmatprep.subr.mxu0 0.0
    %747 = vmatpush1.msra.mxu0 0.0
    %748 = vmatprep.subr.mxu0 0.0
    %749 = vmatpush1.msra.mxu0 0.0
    %750 = vmatprep.subr.mxu0 0.0
    %751 = vmatpush1.msra.mxu0 0.0
    %752 = vmatprep.subr.mxu0 0.0
    %753 = vmatpush1.msra.mxu0 0.0
    %754 = vmatprep.subr.mxu0 0.0
    %755 = vmatpush1.msra.mxu0 0.0
    %756 = vmatprep.subr.mxu0 0.0
    %757 = vmatpush1.msra.mxu0 0.0
    %758 = vmatprep.subr.mxu0 0.0
    %759 = vmatpush1.msra.mxu0 0.0
    %760 = vmatprep.subr.mxu0 0.0
    %761 = vmatpush1.msra.mxu0 0.0
    %762 = vmatprep.subr.mxu0 0.0
    %763 = vmatpush1.msra.mxu0 0.0
    %764 = vmatprep.subr.mxu0 0.0
    %765 = vmatpush1.msra.mxu0 0.0
    %766 = vmatprep.subr.mxu0 0.0
    %767 = vmatpush1.msra.mxu0 0.0
    %768 = vmatprep.subr.mxu0 0.0
    %769 = vmatpush1.msra.mxu0 0.0
    %770 = vmatprep.subr.mxu0 0.0
    %771 = vmatpush1.msra.mxu0 0.0
    %772 = vmatprep.subr.mxu0 0.0
    %773 = vmatpush1.msra.mxu0 0.0
    %774 = vmatprep.subr.mxu0 0.0
    %775 = vmatpush1.msra.mxu0 0.0
    %776 = vmatprep.subr.mxu0 0.0
    %777 = vmatpush1.msra.mxu0 0.0
    %778 = vmatprep.subr.mxu0 0.0
    %779 = vmatpush1.msra.mxu0 0.0
    %780 = vmatprep.subr.mxu0 0.0
    %781 = vmatpush1.msra.mxu0 0.0
    %782 = vmatprep.subr.mxu0 0.0
    %783 = vmatpush1.msra.mxu0 0.0
    %784 = vmatprep.subr.mxu0 0.0
    %785 = vmatpush1.msra.mxu0 0.0
    %786 = vmatprep.subr.mxu0 0.0
    %787 = vmatpush1.msra.mxu0 0.0
    %788 = vmatprep.mubr.f32.mxu0 0.0
    %789 = vmatmul.mubr.f32.gmra.mrb[0].mxu0 %v704
    %v790 = vpop.f32.mrb[0].mxu0
    %v791 = vadd.f32 0.0, %v790
    %v792 = vpop.f32.mrb[0].mxu0
    %v793 = vadd.f32 0.0, %v792
    %794 = vmatprep.mubr.f32.mxu0 0.0
    %795 = vmatmul.mubr.f32.gmra.mrb[0].mxu0 %v707
    %v796 = vpop.f32.mrb[0].mxu0
    %v797 = vadd.f32 0.0, %v796
    %v798 = vpop.f32.mrb[0].mxu0
    %v799 = vadd.f32 0.0, %v798
    %800 = vmatprep.mubr.f32.mxu0 0.0
    %801 = vmatmul.mubr.f32.gmra.mrb[0].mxu0 %v710
    %v802 = vpop.f32.mrb[0].mxu0
    %v803 = vadd.f32 0.0, %v802
    %v804 = vpop.f32.mrb[0].mxu0
    %v805 = vadd.f32 0.0, %v804
    %806 = vdwg.mxu0
    %807 = vmatprep.subr.mxu0 %v694
    %808 = vmatpush1.msra.mxu0 %v693
    %809 = vmatprep.subr.mxu0 %v698
    %810 = vmatpush1.msra.mxu0 %v697
    %811 = vmatprep.subr.mxu0 %v722
    %812 = vmatpush1.msra.mxu0 %v719
    %813 = vmatprep.subr.mxu0 0.0
    %814 = vmatpush1.msra.mxu0 0.0
    %815 = vmatprep.subr.mxu0 0.0
    %816 = vmatpush1.msra.mxu0 0.0
    %817 = vmatprep.subr.mxu0 0.0
    %818 = vmatpush1.msra.mxu0 0.0
    %819 = vmatprep.subr.mxu0 0.0
    %820 = vmatpush1.msra.mxu0 0.0
    %821 = vmatprep.subr.mxu0 0.0
    %822 = vmatpush1.msra.mxu0 0.0
    %823 = vmatprep.subr.mxu0 0.0
    %824 = vmatpush1.msra.mxu0 0.0
    %825 = vmatprep.subr.mxu0 0.0
    %826 = vmatpush1.msra.mxu0 0.0
    %827 = vmatprep.subr.mxu0 0.0
    %828 = vmatpush1.msra.mxu0 0.0
    %829 = vmatprep.subr.mxu0 0.0
    %830 = vmatpush1.msra.mxu0 0.0
    %831 = vmatprep.subr.mxu0 0.0
    %832 = vmatpush1.msra.mxu0 0.0
    %833 = vmatprep.subr.mxu0 0.0
    %834 = vmatpush1.msra.mxu0 0.0
    %835 = vmatprep.subr.mxu0 0.0
    %836 = vmatpush1.msra.mxu0 0.0
    %837 = vmatprep.subr.mxu0 0.0
    %838 = vmatpush1.msra.mxu0 0.0
    %839 = vmatprep.subr.mxu0 0.0
    %840 = vmatpush1.msra.mxu0 0.0
    %841 = vmatprep.subr.mxu0 0.0
    %842 = vmatpush1.msra.mxu0 0.0
    %843 = vmatprep.subr.mxu0 0.0
    %844 = vmatpush1.msra.mxu0 0.0
    %845 = vmatprep.subr.mxu0 0.0
    %846 = vmatpush1.msra.mxu0 0.0
    %847 = vmatprep.subr.mxu0 0.0
    %848 = vmatpush1.msra.mxu0 0.0
    %849 = vmatprep.subr.mxu0 0.0
    %850 = vmatpush1.msra.mxu0 0.0
    %851 = vmatprep.subr.mxu0 0.0
    %852 = vmatpush1.msra.mxu0 0.0
    %853 = vmatprep.subr.mxu0 0.0
    %854 = vmatpush1.msra.mxu0 0.0
    %855 = vmatprep.subr.mxu0 0.0
    %856 = vmatpush1.msra.mxu0 0.0
    %857 = vmatprep.subr.mxu0 0.0
    %858 = vmatpush1.msra.mxu0 0.0
    %859 = vmatprep.subr.mxu0 0.0
    %860 = vmatpush1.msra.mxu0 0.0
    %861 = vmatprep.subr.mxu0 0.0
    %862 = vmatpush1.msra.mxu0 0.0
    %863 = vmatprep.subr.mxu0 0.0
    %864 = vmatpush1.msra.mxu0 0.0
    %865 = vmatprep.subr.mxu0 0.0
    %866 = vmatpush1.msra.mxu0 0.0
    %867 = vmatprep.subr.mxu0 0.0
    %868 = vmatpush1.msra.mxu0 0.0
    %869 = vmatprep.subr.mxu0 0.0
    %870 = vmatpush1.msra.mxu0 0.0
    %871 = vmatprep.mubr.f32.mxu0 0.0
    %872 = vmatmul.mubr.f32.gmra.mrb[0].mxu0 %v704
    %v873 = vpop.f32.mrb[0].mxu0
    %v874 = vadd.f32 0.0, %v873
    %v875 = vpop.f32.mrb[0].mxu0
    %v876 = vadd.f32 0.0, %v875
    %877 = vmatprep.mubr.f32.mxu0 0.0
    %878 = vmatmul.mubr.f32.gmra.mrb[0].mxu0 %v707
    %v879 = vpop.f32.mrb[0].mxu0
    %v880 = vadd.f32 0.0, %v879
    %v881 = vpop.f32.mrb[0].mxu0
    %v882 = vadd.f32 0.0, %v881
    %883 = vmatprep.mubr.f32.mxu0 0.0
    %884 = vmatmul.mubr.f32.gmra.mrb[0].mxu0 %v710
    %v885 = vpop.f32.mrb[0].mxu0
    %v886 = vadd.f32 0.0, %v885
    %v887 = vpop.f32.mrb[0].mxu0
    %v888 = vadd.f32 0.0, %v887
    %889 = vdwg.mxu0
    %891 = vset.pattern.permute.xlu0 0
    %892 = vperm.xlu0 %891, %v688
    %v893 = vpop.permute.xlu0 %892
    %896 = vset.pattern.permute.xlu0 0
    %897 = vperm.xlu0 %896, %v689
    %v898 = vpop.permute.xlu0 %897
    %901 = vset.pattern.permute.xlu0 0
    %902 = vperm.xlu0 %901, %v690
    %v903 = vpop.permute.xlu0 %902
    %v905 = vadd.f32 %v791, %v893
    %v906 = vadd.f32 %v797, %v898
    %v907 = vadd.f32 %v803, %v903
    %v908 = vtanh.pop %v905
    %v909 = vtanh.pop %v906
    %v910 = vtanh.pop %v907
    %v911 = vmul.f32 %v908, %v908
    %v912 = vmul.f32 %v909, %v909
    %v913 = vmul.f32 %v910, %v910
    %v914 = vsub.f32 1.0, %v911
    %v915 = vsub.f32 1.0, %v912
    %v916 = vsub.f32 1.0, %v913
    %v917 = vmul.f32 %v914, %v874
    %v918 = vmul.f32 %v915, %v880
    %v919 = vmul.f32 %v916, %v886
    %920 = vst [vmem:[#allocation2] sm:$0xff] %v908
    %921 = vst [vmem:[#allocation2 + $0x20] sm:$0xff] %v909
    %922 = vst [vmem:[#allocation2 + $0x40] sm:$0xf] %v910
    %v923 = vmul.f32 %v914, %v793
    %v924 = vmul.f32 %v915, %v799
    %v925 = vmul.f32 %v916, %v805
    %926 = vst [vmem:[#allocation2 + $0x8] sm:$0xff] %v923
    %927 = vst [vmem:[#allocation2 + $0x28] sm:$0xff] %v924
    %928 = vst [vmem:[#allocation2 + $0x48] sm:$0xf] %v925
    %929 = vst [vmem:[#allocation2 + $0x10] sm:$0xff] %v917
    %930 = vst [vmem:[#allocation2 + $0x30] sm:$0xff] %v918
    %931 = vst [vmem:[#allocation2 + $0x50] sm:$0xf] %v919
    %v932 = vmul.f32 %v914, %v876
    %v933 = vmul.f32 %v915, %v882
    %v934 = vmul.f32 %v916, %v888
    %v935 = vmul.f32 %v908, 2.0
    %v936 = vmul.f32 %v909, 2.0
    %v937 = vmul.f32 %v910, 2.0
    %v938 = vmul.f32 %v917, %v874
    %v939 = vmul.f32 %v918, %v880
    %v940 = vmul.f32 %v919, %v886
    %v941 = vmul.f32 %v935, %v938
    %v942 = vmul.f32 %v936, %v939
    %v943 = vmul.f32 %v937, %v940
    %v944 = vsub.f32 %v932, %v941
    %v945 = vsub.f32 %v933, %v942
    %v946 = vsub.f32 %v934, %v943
    %947 = vst [vmem:[#allocation2 + $0x18] sm:$0xff] %v944
    %948 = vst [vmem:[#allocation2 + $0x38] sm:$0xff] %v945
    %949 = vst [vmem:[#allocation2 + $0x58] sm:$0xf] %v946
    %s950 = scalar_lea.vmem %s3, 72
    %v951 = vld [vmem:[%s950] sm:$0xff]
    %v952 = vld [vmem:[%s950 + $0x8] sm:$0xff]
    %v953 = vld [vmem:[%s950 + $0x10] sm:$0xf]
    %s954 = scalar_lea.vmem %s4, 72
    %v955 = vld [vmem:[%s954] sm:$0xff]
    %v956 = vld [vmem:[%s954 + $0x8] sm:$0xff]
    %v957 = vld [vmem:[%s954 + $0x10] sm:$0xf]
    %v958 = vld [vmem:[#allocation2] sm:$0xff]
    %v959 = vld [vmem:[#allocation2 + $0x8] sm:$0xff]
    %v960 = vld [vmem:[#allocation2 + $0x10] sm:$0xff]
    %v961 = vld [vmem:[#allocation2 + $0x18] sm:$0xff]
    %v962 = vld [vmem:[#allocation2 + $0x20] sm:$0xff]
    %v963 = vld [vmem:[#allocation2 + $0x28] sm:$0xff]
    %v964 = vld [vmem:[#allocation2 + $0x30] sm:$0xff]
    %v965 = vld [vmem:[#allocation2 + $0x38] sm:$0xff]
    %v966 = vld [vmem:[#allocation2 + $0x40] sm:$0xf]
    %v967 = vld [vmem:[#allocation2 + $0x48] sm:$0xf]
    %v968 = vld [vmem:[#allocation2 + $0x50] sm:$0xf]
    %v969 = vld [vmem:[#allocation2 + $0x58] sm:$0xf]
    %v971 = vsel %vm167, %v951, 0
    %v974 = vsel %vm167, %v952, 0
    %v977 = vsel %vm167, %v953, 0
    %v980 = vsel %vm177, %v966, 0
    %v983 = vsel %vm177, %v967, 0
    %v986 = vsel %vm177, %v968, 0
    %v989 = vsel %vm177, %v969, 0
    %991 = vmatprep.subr.mxu0 %v959
    %992 = vmatpush1.msra.mxu0 %v958
    %993 = vmatprep.subr.mxu0 %v963
    %994 = vmatpush1.msra.mxu0 %v962
    %995 = vmatprep.subr.mxu0 %v983
    %996 = vmatpush1.msra.mxu0 %v980
    %997 = vmatprep.subr.mxu0 0.0
    %998 = vmatpush1.msra.mxu0 0.0
    %999 = vmatprep.subr.mxu0 0.0
    %1000 = vmatpush1.msra.mxu0 0.0
    %1001 = vmatprep.subr.mxu0 0.0
    %1002 = vmatpush1.msra.mxu0 0.0
    %1003 = vmatprep.subr.mxu0 0.0
    %1004 = vmatpush1.msra.mxu0 0.0
    %1005 = vmatprep.subr.mxu0 0.0
    %1006 = vmatpush1.msra.mxu0 0.0
    %1007 = vmatprep.subr.mxu0 0.0
    %1008 = vmatpush1.msra.mxu0 0.0
    %1009 = vmatprep.subr.mxu0 0.0
    %1010 = vmatpush1.msra.mxu0 0.0
    %1011 = vmatprep.subr.mxu0 0.0
    %1012 = vmatpush1.msra.mxu0 0.0
    %1013 = vmatprep.subr.mxu0 0.0
    %1014 = vmatpush1.msra.mxu0 0.0
    %1015 = vmatprep.subr.mxu0 0.0
    %1016 = vmatpush1.msra.mxu0 0.0
    %1017 = vmatprep.subr.mxu0 0.0
    %1018 = vmatpush1.msra.mxu0 0.0
    %1019 = vmatprep.subr.mxu0 0.0
    %1020 = vmatpush1.msra.mxu0 0.0
    %1021 = vmatprep.subr.mxu0 0.0
    %1022 = vmatpush1.msra.mxu0 0.0
    %1023 = vmatprep.subr.mxu0 0.0
    %1024 = vmatpush1.msra.mxu0 0.0
    %1025 = vmatprep.subr.mxu0 0.0
    %1026 = vmatpush1.msra.mxu0 0.0
    %1027 = vmatprep.subr.mxu0 0.0
    %1028 = vmatpush1.msra.mxu0 0.0
    %1029 = vmatprep.subr.mxu0 0.0
    %1030 = vmatpush1.msra.mxu0 0.0
    %1031 = vmatprep.subr.mxu0 0.0
    %1032 = vmatpush1.msra.mxu0 0.0
    %1033 = vmatprep.subr.mxu0 0.0
    %1034 = vmatpush1.msra.mxu0 0.0
    %1035 = vmatprep.subr.mxu0 0.0
    %1036 = vmatpush1.msra.mxu0 0.0
    %1037 = vmatprep.subr.mxu0 0.0
    %1038 = vmatpush1.msra.mxu0 0.0
    %1039 = vmatprep.subr.mxu0 0.0
    %1040 = vmatpush1.msra.mxu0 0.0
    %1041 = vmatprep.subr.mxu0 0.0
    %1042 = vmatpush1.msra.mxu0 0.0
    %1043 = vmatprep.subr.mxu0 0.0
    %1044 = vmatpush1.msra.mxu0 0.0
    %1045 = vmatprep.subr.mxu0 0.0
    %1046 = vmatpush1.msra.mxu0 0.0
    %1047 = vmatprep.subr.mxu0 0.0
    %1048 = vmatpush1.msra.mxu0 0.0
    %1049 = vmatprep.subr.mxu0 0.0
    %1050 = vmatpush1.msra.mxu0 0.0
    %1051 = vmatprep.subr.mxu0 0.0
    %1052 = vmatpush1.msra.mxu0 0.0
    %1053 = vmatprep.subr.mxu0 0.0
    %1054 = vmatpush1.msra.mxu0 0.0
    %1055 = vmatprep.mubr.f32.mxu0 0.0
    %1056 = vmatmul.mubr.f32.gmra.mrb[0].mxu0 %v971
    %v1057 = vpop.f32.mrb[0].mxu0
    %v1058 = vadd.f32 0.0, %v1057
    %v1059 = vpop.f32.mrb[0].mxu0
    %v1060 = vadd.f32 0.0, %v1059
    %1061 = vmatprep.mubr.f32.mxu0 0.0
    %1062 = vmatmul.mubr.f32.gmra.mrb[0].mxu0 %v974
    %v1063 = vpop.f32.mrb[0].mxu0
    %v1064 = vadd.f32 0.0, %v1063
    %v1065 = vpop.f32.mrb[0].mxu0
    %v1066 = vadd.f32 0.0, %v1065
    %1067 = vmatprep.mubr.f32.mxu0 0.0
    %1068 = vmatmul.mubr.f32.gmra.mrb[0].mxu0 %v977
    %v1069 = vpop.f32.mrb[0].mxu0
    %v1070 = vadd.f32 0.0, %v1069
    %v1071 = vpop.f32.mrb[0].mxu0
    %v1072 = vadd.f32 0.0, %v1071
    %1073 = vdwg.mxu0
    %1074 = vmatprep.subr.mxu0 %v961
    %1075 = vmatpush1.msra.mxu0 %v960
    %1076 = vmatprep.subr.mxu0 %v965
    %1077 = vmatpush1.msra.mxu0 %v964
    %1078 = vmatprep.subr.mxu0 %v989
    %1079 = vmatpush1.msra.mxu0 %v986
    %1080 = vmatprep.subr.mxu0 0.0
    %1081 = vmatpush1.msra.mxu0 0.0
    %1082 = vmatprep.subr.mxu0 0.0
    %1083 = vmatpush1.msra.mxu0 0.0
    %1084 = vmatprep.subr.mxu0 0.0
    %1085 = vmatpush1.msra.mxu0 0.0
    %1086 = vmatprep.subr.mxu0 0.0
    %1087 = vmatpush1.msra.mxu0 0.0
    %1088 = vmatprep.subr.mxu0 0.0
    %1089 = vmatpush1.msra.mxu0 0.0
    %1090 = vmatprep.subr.mxu0 0.0
    %1091 = vmatpush1.msra.mxu0 0.0
    %1092 = vmatprep.subr.mxu0 0.0
    %1093 = vmatpush1.msra.mxu0 0.0
    %1094 = vmatprep.subr.mxu0 0.0
    %1095 = vmatpush1.msra.mxu0 0.0
    %1096 = vmatprep.subr.mxu0 0.0
    %1097 = vmatpush1.msra.mxu0 0.0
    %1098 = vmatprep.subr.mxu0 0.0
    %1099 = vmatpush1.msra.mxu0 0.0
    %1100 = vmatprep.subr.mxu0 0.0
    %1101 = vmatpush1.msra.mxu0 0.0
    %1102 = vmatprep.subr.mxu0 0.0
    %1103 = vmatpush1.msra.mxu0 0.0
    %1104 = vmatprep.subr.mxu0 0.0
    %1105 = vmatpush1.msra.mxu0 0.0
    %1106 = vmatprep.subr.mxu0 0.0
    %1107 = vmatpush1.msra.mxu0 0.0
    %1108 = vmatprep.subr.mxu0 0.0
    %1109 = vmatpush1.msra.mxu0 0.0
    %1110 = vmatprep.subr.mxu0 0.0
    %1111 = vmatpush1.msra.mxu0 0.0
    %1112 = vmatprep.subr.mxu0 0.0
    %1113 = vmatpush1.msra.mxu0 0.0
    %1114 = vmatprep.subr.mxu0 0.0
    %1115 = vmatpush1.msra.mxu0 0.0
    %1116 = vmatprep.subr.mxu0 0.0
    %1117 = vmatpush1.msra.mxu0 0.0
    %1118 = vmatprep.subr.mxu0 0.0
    %1119 = vmatpush1.msra.mxu0 0.0
    %1120 = vmatprep.subr.mxu0 0.0
    %1121 = vmatpush1.msra.mxu0 0.0
    %1122 = vmatprep.subr.mxu0 0.0
    %1123 = vmatpush1.msra.mxu0 0.0
    %1124 = vmatprep.subr.mxu0 0.0
    %1125 = vmatpush1.msra.mxu0 0.0
    %1126 = vmatprep.subr.mxu0 0.0
    %1127 = vmatpush1.msra.mxu0 0.0
    %1128 = vmatprep.subr.mxu0 0.0
    %1129 = vmatpush1.msra.mxu0 0.0
    %1130 = vmatprep.subr.mxu0 0.0
    %1131 = vmatpush1.msra.mxu0 0.0
    %1132 = vmatprep.subr.mxu0 0.0
    %1133 = vmatpush1.msra.mxu0 0.0
    %1134 = vmatprep.subr.mxu0 0.0
    %1135 = vmatpush1.msra.mxu0 0.0
    %1136 = vmatprep.subr.mxu0 0.0
    %1137 = vmatpush1.msra.mxu0 0.0
    %1138 = vmatprep.mubr.f32.mxu0 0.0
    %1139 = vmatmul.mubr.f32.gmra.mrb[0].mxu0 %v971
    %v1140 = vpop.f32.mrb[0].mxu0
    %v1141 = vadd.f32 0.0, %v1140
    %v1142 = vpop.f32.mrb[0].mxu0
    %v1143 = vadd.f32 0.0, %v1142
    %1144 = vmatprep.mubr.f32.mxu0 0.0
    %1145 = vmatmul.mubr.f32.gmra.mrb[0].mxu0 %v974
    %v1146 = vpop.f32.mrb[0].mxu0
    %v1147 = vadd.f32 0.0, %v1146
    %v1148 = vpop.f32.mrb[0].mxu0
    %v1149 = vadd.f32 0.0, %v1148
    %1150 = vmatprep.mubr.f32.mxu0 0.0
    %1151 = vmatmul.mubr.f32.gmra.mrb[0].mxu0 %v977
    %v1152 = vpop.f32.mrb[0].mxu0
    %v1153 = vadd.f32 0.0, %v1152
    %v1154 = vpop.f32.mrb[0].mxu0
    %v1155 = vadd.f32 0.0, %v1154
    %1156 = vdwg.mxu0
    %1158 = vset.pattern.permute.xlu0 0
    %1159 = vperm.xlu0 %1158, %v955
    %v1160 = vpop.permute.xlu0 %1159
    %1163 = vset.pattern.permute.xlu0 0
    %1164 = vperm.xlu0 %1163, %v956
    %v1165 = vpop.permute.xlu0 %1164
    %1168 = vset.pattern.permute.xlu0 0
    %1169 = vperm.xlu0 %1168, %v957
    %v1170 = vpop.permute.xlu0 %1169
    %v1172 = vadd.f32 %v1058, %v1160
    %v1173 = vadd.f32 %v1064, %v1165
    %v1174 = vadd.f32 %v1070, %v1170
    %v1175 = vtanh.pop %v1172
    %v1176 = vtanh.pop %v1173
    %v1177 = vtanh.pop %v1174
    %v1178 = vmul.f32 %v1175, %v1175
    %v1179 = vmul.f32 %v1176, %v1176
    %v1180 = vmul.f32 %v1177, %v1177
    %v1181 = vsub.f32 1.0, %v1178
    %v1182 = vsub.f32 1.0, %v1179
    %v1183 = vsub.f32 1.0, %v1180
    %v1184 = vmul.f32 %v1181, %v1141
    %v1185 = vmul.f32 %v1182, %v1147
    %v1186 = vmul.f32 %v1183, %v1153
    %1187 = vst [vmem:[#allocation2] sm:$0xff] %v1175
    %1188 = vst [vmem:[#allocation2 + $0x20] sm:$0xff] %v1176
    %1189 = vst [vmem:[#allocation2 + $0x40] sm:$0xf] %v1177
    %v1190 = vmul.f32 %v1181, %v1060
    %v1191 = vmul.f32 %v1182, %v1066
    %v1192 = vmul.f32 %v1183, %v1072
    %1193 = vst [vmem:[#allocation2 + $0x8] sm:$0xff] %v1190
    %1194 = vst [vmem:[#allocation2 + $0x28] sm:$0xff] %v1191
    %1195 = vst [vmem:[#allocation2 + $0x48] sm:$0xf] %v1192
    %1196 = vst [vmem:[#allocation2 + $0x10] sm:$0xff] %v1184
    %1197 = vst [vmem:[#allocation2 + $0x30] sm:$0xff] %v1185
    %1198 = vst [vmem:[#allocation2 + $0x50] sm:$0xf] %v1186
    %v1199 = vmul.f32 %v1181, %v1143
    %v1200 = vmul.f32 %v1182, %v1149
    %v1201 = vmul.f32 %v1183, %v1155
    %v1202 = vmul.f32 %v1175, 2.0
    %v1203 = vmul.f32 %v1176, 2.0
    %v1204 = vmul.f32 %v1177, 2.0
    %v1205 = vmul.f32 %v1184, %v1141
    %v1206 = vmul.f32 %v1185, %v1147
    %v1207 = vmul.f32 %v1186, %v1153
    %v1208 = vmul.f32 %v1202, %v1205
    %v1209 = vmul.f32 %v1203, %v1206
    %v1210 = vmul.f32 %v1204, %v1207
    %v1211 = vsub.f32 %v1199, %v1208
    %v1212 = vsub.f32 %v1200, %v1209
    %v1213 = vsub.f32 %v1201, %v1210
    %1214 = vst [vmem:[#allocation2 + $0x18] sm:$0xff] %v1211
    %1215 = vst [vmem:[#allocation2 + $0x38] sm:$0xff] %v1212
    %1216 = vst [vmem:[#allocation2 + $0x58] sm:$0xf] %v1213
    %s1217 = scalar_lea.vmem %s3, 96
    %v1218 = vld [vmem:[%s1217] sm:$0xff]
    %v1219 = vld [vmem:[%s1217 + $0x8] sm:$0xff]
    %v1220 = vld [vmem:[%s1217 + $0x10] sm:$0xf]
    %s1221 = scalar_lea.vmem %s4, 96
    %v1222 = vld [vmem:[%s1221] sm:$0xff]
    %v1223 = vld [vmem:[%s1221 + $0x8] sm:$0xff]
    %v1224 = vld [vmem:[%s1221 + $0x10] sm:$0xf]
    %v1225 = vld [vmem:[#allocation2] sm:$0xff]
    %v1226 = vld [vmem:[#allocation2 + $0x8] sm:$0xff]
    %v1227 = vld [vmem:[#allocation2 + $0x10] sm:$0xff]
    %v1228 = vld [vmem:[#allocation2 + $0x18] sm:$0xff]
    %v1229 = vld [vmem:[#allocation2 + $0x20] sm:$0xff]
    %v1230 = vld [vmem:[#allocation2 + $0x28] sm:$0xff]
    %v1231 = vld [vmem:[#allocation2 + $0x30] sm:$0xff]
    %v1232 = vld [vmem:[#allocation2 + $0x38] sm:$0xff]
    %v1233 = vld [vmem:[#allocation2 + $0x40] sm:$0xf]
    %v1234 = vld [vmem:[#allocation2 + $0x48] sm:$0xf]
    %v1235 = vld [vmem:[#allocation2 + $0x50] sm:$0xf]
    %v1236 = vld [vmem:[#allocation2 + $0x58] sm:$0xf]
    %v1238 = vsel %vm167, %v1218, 0
    %v1241 = vsel %vm167, %v1219, 0
    %v1244 = vsel %vm167, %v1220, 0
    %v1247 = vsel %vm177, %v1233, 0
    %v1250 = vsel %vm177, %v1234, 0
    %v1253 = vsel %vm177, %v1235, 0
    %v1256 = vsel %vm177, %v1236, 0
    %1258 = vmatprep.subr.mxu0 %v1226
    %1259 = vmatpush1.msra.mxu0 %v1225
    %1260 = vmatprep.subr.mxu0 %v1230
    %1261 = vmatpush1.msra.mxu0 %v1229
    %1262 = vmatprep.subr.mxu0 %v1250
    %1263 = vmatpush1.msra.mxu0 %v1247
    %1264 = vmatprep.subr.mxu0 0.0
    %1265 = vmatpush1.msra.mxu0 0.0
    %1266 = vmatprep.subr.mxu0 0.0
    %1267 = vmatpush1.msra.mxu0 0.0
    %1268 = vmatprep.subr.mxu0 0.0
    %1269 = vmatpush1.msra.mxu0 0.0
    %1270 = vmatprep.subr.mxu0 0.0
    %1271 = vmatpush1.msra.mxu0 0.0
    %1272 = vmatprep.subr.mxu0 0.0
    %1273 = vmatpush1.msra.mxu0 0.0
    %1274 = vmatprep.subr.mxu0 0.0
    %1275 = vmatpush1.msra.mxu0 0.0
    %1276 = vmatprep.subr.mxu0 0.0
    %1277 = vmatpush1.msra.mxu0 0.0
    %1278 = vmatprep.subr.mxu0 0.0
    %1279 = vmatpush1.msra.mxu0 0.0
    %1280 = vmatprep.subr.mxu0 0.0
    %1281 = vmatpush1.msra.mxu0 0.0
    %1282 = vmatprep.subr.mxu0 0.0
    %1283 = vmatpush1.msra.mxu0 0.0
    %1284 = vmatprep.subr.mxu0 0.0
    %1285 = vmatpush1.msra.mxu0 0.0
    %1286 = vmatprep.subr.mxu0 0.0
    %1287 = vmatpush1.msra.mxu0 0.0
    %1288 = vmatprep.subr.mxu0 0.0
    %1289 = vmatpush1.msra.mxu0 0.0
    %1290 = vmatprep.subr.mxu0 0.0
    %1291 = vmatpush1.msra.mxu0 0.0
    %1292 = vmatprep.subr.mxu0 0.0
    %1293 = vmatpush1.msra.mxu0 0.0
    %1294 = vmatprep.subr.mxu0 0.0
    %1295 = vmatpush1.msra.mxu0 0.0
    %1296 = vmatprep.subr.mxu0 0.0
    %1297 = vmatpush1.msra.mxu0 0.0
    %1298 = vmatprep.subr.mxu0 0.0
    %1299 = vmatpush1.msra.mxu0 0.0
    %1300 = vmatprep.subr.mxu0 0.0
    %1301 = vmatpush1.msra.mxu0 0.0
    %1302 = vmatprep.subr.mxu0 0.0
    %1303 = vmatpush1.msra.mxu0 0.0
    %1304 = vmatprep.subr.mxu0 0.0
    %1305 = vmatpush1.msra.mxu0 0.0
    %1306 = vmatprep.subr.mxu0 0.0
    %1307 = vmatpush1.msra.mxu0 0.0
    %1308 = vmatprep.subr.mxu0 0.0
    %1309 = vmatpush1.msra.mxu0 0.0
    %1310 = vmatprep.subr.mxu0 0.0
    %1311 = vmatpush1.msra.mxu0 0.0
    %1312 = vmatprep.subr.mxu0 0.0
    %1313 = vmatpush1.msra.mxu0 0.0
    %1314 = vmatprep.subr.mxu0 0.0
    %1315 = vmatpush1.msra.mxu0 0.0
    %1316 = vmatprep.subr.mxu0 0.0
    %1317 = vmatpush1.msra.mxu0 0.0
    %1318 = vmatprep.subr.mxu0 0.0
    %1319 = vmatpush1.msra.mxu0 0.0
    %1320 = vmatprep.subr.mxu0 0.0
    %1321 = vmatpush1.msra.mxu0 0.0
    %1322 = vmatprep.mubr.f32.mxu0 0.0
    %1323 = vmatmul.mubr.f32.gmra.mrb[0].mxu0 %v1238
    %v1324 = vpop.f32.mrb[0].mxu0
    %v1325 = vadd.f32 0.0, %v1324
    %v1326 = vpop.f32.mrb[0].mxu0
    %v1327 = vadd.f32 0.0, %v1326
    %1328 = vmatprep.mubr.f32.mxu0 0.0
    %1329 = vmatmul.mubr.f32.gmra.mrb[0].mxu0 %v1241
    %v1330 = vpop.f32.mrb[0].mxu0
    %v1331 = vadd.f32 0.0, %v1330
    %v1332 = vpop.f32.mrb[0].mxu0
    %v1333 = vadd.f32 0.0, %v1332
    %1334 = vmatprep.mubr.f32.mxu0 0.0
    %1335 = vmatmul.mubr.f32.gmra.mrb[0].mxu0 %v1244
    %v1336 = vpop.f32.mrb[0].mxu0
    %v1337 = vadd.f32 0.0, %v1336
    %v1338 = vpop.f32.mrb[0].mxu0
    %v1339 = vadd.f32 0.0, %v1338
    %1340 = vdwg.mxu0
    %1341 = vmatprep.subr.mxu0 %v1228
    %1342 = vmatpush1.msra.mxu0 %v1227
    %1343 = vmatprep.subr.mxu0 %v1232
    %1344 = vmatpush1.msra.mxu0 %v1231
    %1345 = vmatprep.subr.mxu0 %v1256
    %1346 = vmatpush1.msra.mxu0 %v1253
    %1347 = vmatprep.subr.mxu0 0.0
    %1348 = vmatpush1.msra.mxu0 0.0
    %1349 = vmatprep.subr.mxu0 0.0
    %1350 = vmatpush1.msra.mxu0 0.0
    %1351 = vmatprep.subr.mxu0 0.0
    %1352 = vmatpush1.msra.mxu0 0.0
    %1353 = vmatprep.subr.mxu0 0.0
    %1354 = vmatpush1.msra.mxu0 0.0
    %1355 = vmatprep.subr.mxu0 0.0
    %1356 = vmatpush1.msra.mxu0 0.0
    %1357 = vmatprep.subr.mxu0 0.0
    %1358 = vmatpush1.msra.mxu0 0.0
    %1359 = vmatprep.subr.mxu0 0.0
    %1360 = vmatpush1.msra.mxu0 0.0
    %1361 = vmatprep.subr.mxu0 0.0
    %1362 = vmatpush1.msra.mxu0 0.0
    %1363 = vmatprep.subr.mxu0 0.0
    %1364 = vmatpush1.msra.mxu0 0.0
    %1365 = vmatprep.subr.mxu0 0.0
    %1366 = vmatpush1.msra.mxu0 0.0
    %1367 = vmatprep.subr.mxu0 0.0
    %1368 = vmatpush1.msra.mxu0 0.0
    %1369 = vmatprep.subr.mxu0 0.0
    %1370 = vmatpush1.msra.mxu0 0.0
    %1371 = vmatprep.subr.mxu0 0.0
    %1372 = vmatpush1.msra.mxu0 0.0
    %1373 = vmatprep.subr.mxu0 0.0
    %1374 = vmatpush1.msra.mxu0 0.0
    %1375 = vmatprep.subr.mxu0 0.0
    %1376 = vmatpush1.msra.mxu0 0.0
    %1377 = vmatprep.subr.mxu0 0.0
    %1378 = vmatpush1.msra.mxu0 0.0
    %1379 = vmatprep.subr.mxu0 0.0
    %1380 = vmatpush1.msra.mxu0 0.0
    %1381 = vmatprep.subr.mxu0 0.0
    %1382 = vmatpush1.msra.mxu0 0.0
    %1383 = vmatprep.subr.mxu0 0.0
    %1384 = vmatpush1.msra.mxu0 0.0
    %1385 = vmatprep.subr.mxu0 0.0
    %1386 = vmatpush1.msra.mxu0 0.0
    %1387 = vmatprep.subr.mxu0 0.0
    %1388 = vmatpush1.msra.mxu0 0.0
    %1389 = vmatprep.subr.mxu0 0.0
    %1390 = vmatpush1.msra.mxu0 0.0
    %1391 = vmatprep.subr.mxu0 0.0
    %1392 = vmatpush1.msra.mxu0 0.0
    %1393 = vmatprep.subr.mxu0 0.0
    %1394 = vmatpush1.msra.mxu0 0.0
    %1395 = vmatprep.subr.mxu0 0.0
    %1396 = vmatpush1.msra.mxu0 0.0
    %1397 = vmatprep.subr.mxu0 0.0
    %1398 = vmatpush1.msra.mxu0 0.0
    %1399 = vmatprep.subr.mxu0 0.0
    %1400 = vmatpush1.msra.mxu0 0.0
    %1401 = vmatprep.subr.mxu0 0.0
    %1402 = vmatpush1.msra.mxu0 0.0
    %1403 = vmatprep.subr.mxu0 0.0
    %1404 = vmatpush1.msra.mxu0 0.0
    %1405 = vmatprep.mubr.f32.mxu0 0.0
    %1406 = vmatmul.mubr.f32.gmra.mrb[0].mxu0 %v1238
    %v1407 = vpop.f32.mrb[0].mxu0
    %v1408 = vadd.f32 0.0, %v1407
    %v1409 = vpop.f32.mrb[0].mxu0
    %v1410 = vadd.f32 0.0, %v1409
    %1411 = vmatprep.mubr.f32.mxu0 0.0
    %1412 = vmatmul.mubr.f32.gmra.mrb[0].mxu0 %v1241
    %v1413 = vpop.f32.mrb[0].mxu0
    %v1414 = vadd.f32 0.0, %v1413
    %v1415 = vpop.f32.mrb[0].mxu0
    %v1416 = vadd.f32 0.0, %v1415
    %1417 = vmatprep.mubr.f32.mxu0 0.0
    %1418 = vmatmul.mubr.f32.gmra.mrb[0].mxu0 %v1244
    %v1419 = vpop.f32.mrb[0].mxu0
    %v1420 = vadd.f32 0.0, %v1419
    %v1421 = vpop.f32.mrb[0].mxu0
    %v1422 = vadd.f32 0.0, %v1421
    %1423 = vdwg.mxu0
    %1425 = vset.pattern.permute.xlu0 0
    %1426 = vperm.xlu0 %1425, %v1222
    %v1427 = vpop.permute.xlu0 %1426
    %1430 = vset.pattern.permute.xlu0 0
    %1431 = vperm.xlu0 %1430, %v1223
    %v1432 = vpop.permute.xlu0 %1431
    %1435 = vset.pattern.permute.xlu0 0
    %1436 = vperm.xlu0 %1435, %v1224
    %v1437 = vpop.permute.xlu0 %1436
    %v1439 = vadd.f32 %v1325, %v1427
    %v1440 = vadd.f32 %v1331, %v1432
    %v1441 = vadd.f32 %v1337, %v1437
    %v1442 = vtanh.pop %v1439
    %v1443 = vtanh.pop %v1440
    %v1444 = vtanh.pop %v1441
    %v1445 = vmul.f32 %v1442, %v1442
    %v1446 = vmul.f32 %v1443, %v1443
    %v1447 = vmul.f32 %v1444, %v1444
    %v1448 = vsub.f32 1.0, %v1445
    %v1449 = vsub.f32 1.0, %v1446
    %v1450 = vsub.f32 1.0, %v1447
    %v1451 = vmul.f32 %v1448, %v1408
    %v1452 = vmul.f32 %v1449, %v1414
    %v1453 = vmul.f32 %v1450, %v1420
    %1454 = vst [vmem:[#allocation2] sm:$0xff] %v1442
    %1455 = vst [vmem:[#allocation2 + $0x20] sm:$0xff] %v1443
    %1456 = vst [vmem:[#allocation2 + $0x40] sm:$0xf] %v1444
    %v1457 = vmul.f32 %v1448, %v1327
    %v1458 = vmul.f32 %v1449, %v1333
    %v1459 = vmul.f32 %v1450, %v1339
    %1460 = vst [vmem:[#allocation2 + $0x8] sm:$0xff] %v1457
    %1461 = vst [vmem:[#allocation2 + $0x28] sm:$0xff] %v1458
    %1462 = vst [vmem:[#allocation2 + $0x48] sm:$0xf] %v1459
    %1463 = vst [vmem:[#allocation2 + $0x10] sm:$0xff] %v1451
    %1464 = vst [vmem:[#allocation2 + $0x30] sm:$0xff] %v1452
    %1465 = vst [vmem:[#allocation2 + $0x50] sm:$0xf] %v1453
    %v1466 = vmul.f32 %v1448, %v1410
    %v1467 = vmul.f32 %v1449, %v1416
    %v1468 = vmul.f32 %v1450, %v1422
    %v1469 = vmul.f32 %v1442, 2.0
    %v1470 = vmul.f32 %v1443, 2.0
    %v1471 = vmul.f32 %v1444, 2.0
    %v1472 = vmul.f32 %v1451, %v1408
    %v1473 = vmul.f32 %v1452, %v1414
    %v1474 = vmul.f32 %v1453, %v1420
    %v1475 = vmul.f32 %v1469, %v1472
    %v1476 = vmul.f32 %v1470, %v1473
    %v1477 = vmul.f32 %v1471, %v1474
    %v1478 = vsub.f32 %v1466, %v1475
    %v1479 = vsub.f32 %v1467, %v1476
    %v1480 = vsub.f32 %v1468, %v1477
    %1481 = vst [vmem:[#allocation2 + $0x18] sm:$0xff] %v1478
    %1482 = vst [vmem:[#allocation2 + $0x38] sm:$0xff] %v1479
    %1483 = vst [vmem:[#allocation2 + $0x58] sm:$0xf] %v1480
    %s1484 = scalar_lea.vmem %s3, 120
    %v1485 = vld [vmem:[%s1484] sm:$0xff]
    %v1486 = vld [vmem:[%s1484 + $0x8] sm:$0xff]
    %v1487 = vld [vmem:[%s1484 + $0x10] sm:$0xf]
    %s1488 = scalar_lea.vmem %s4, 120
    %v1489 = vld [vmem:[%s1488] sm:$0xff]
    %v1490 = vld [vmem:[%s1488 + $0x8] sm:$0xff]
    %v1491 = vld [vmem:[%s1488 + $0x10] sm:$0xf]
    %v1492 = vld [vmem:[#allocation2] sm:$0xff]
    %v1493 = vld [vmem:[#allocation2 + $0x8] sm:$0xff]
    %v1494 = vld [vmem:[#allocation2 + $0x10] sm:$0xff]
    %v1495 = vld [vmem:[#allocation2 + $0x18] sm:$0xff]
    %v1496 = vld [vmem:[#allocation2 + $0x20] sm:$0xff]
    %v1497 = vld [vmem:[#allocation2 + $0x28] sm:$0xff]
    %v1498 = vld [vmem:[#allocation2 + $0x30] sm:$0xff]
    %v1499 = vld [vmem:[#allocation2 + $0x38] sm:$0xff]
    %v1500 = vld [vmem:[#allocation2 + $0x40] sm:$0xf]
    %v1501 = vld [vmem:[#allocation2 + $0x48] sm:$0xf]
    %v1502 = vld [vmem:[#allocation2 + $0x50] sm:$0xf]
    %v1503 = vld [vmem:[#allocation2 + $0x58] sm:$0xf]
    %v1505 = vsel %vm167, %v1485, 0
    %v1508 = vsel %vm167, %v1486, 0
    %v1511 = vsel %vm167, %v1487, 0
    %v1514 = vsel %vm177, %v1500, 0
    %v1517 = vsel %vm177, %v1501, 0
    %v1520 = vsel %vm177, %v1502, 0
    %v1523 = vsel %vm177, %v1503, 0
    %1525 = vmatprep.subr.mxu0 %v1493
    %1526 = vmatpush1.msra.mxu0 %v1492
    %1527 = vmatprep.subr.mxu0 %v1497
    %1528 = vmatpush1.msra.mxu0 %v1496
    %1529 = vmatprep.subr.mxu0 %v1517
    %1530 = vmatpush1.msra.mxu0 %v1514
    %1531 = vmatprep.subr.mxu0 0.0
    %1532 = vmatpush1.msra.mxu0 0.0
    %1533 = vmatprep.subr.mxu0 0.0
    %1534 = vmatpush1.msra.mxu0 0.0
    %1535 = vmatprep.subr.mxu0 0.0
    %1536 = vmatpush1.msra.mxu0 0.0
    %1537 = vmatprep.subr.mxu0 0.0
    %1538 = vmatpush1.msra.mxu0 0.0
    %1539 = vmatprep.subr.mxu0 0.0
    %1540 = vmatpush1.msra.mxu0 0.0
    %1541 = vmatprep.subr.mxu0 0.0
    %1542 = vmatpush1.msra.mxu0 0.0
    %1543 = vmatprep.subr.mxu0 0.0
    %1544 = vmatpush1.msra.mxu0 0.0
    %1545 = vmatprep.subr.mxu0 0.0
    %1546 = vmatpush1.msra.mxu0 0.0
    %1547 = vmatprep.subr.mxu0 0.0
    %1548 = vmatpush1.msra.mxu0 0.0
    %1549 = vmatprep.subr.mxu0 0.0
    %1550 = vmatpush1.msra.mxu0 0.0
    %1551 = vmatprep.subr.mxu0 0.0
    %1552 = vmatpush1.msra.mxu0 0.0
    %1553 = vmatprep.subr.mxu0 0.0
    %1554 = vmatpush1.msra.mxu0 0.0
    %1555 = vmatprep.subr.mxu0 0.0
    %1556 = vmatpush1.msra.mxu0 0.0
    %1557 = vmatprep.subr.mxu0 0.0
    %1558 = vmatpush1.msra.mxu0 0.0
    %1559 = vmatprep.subr.mxu0 0.0
    %1560 = vmatpush1.msra.mxu0 0.0
    %1561 = vmatprep.subr.mxu0 0.0
    %1562 = vmatpush1.msra.mxu0 0.0
    %1563 = vmatprep.subr.mxu0 0.0
    %1564 = vmatpush1.msra.mxu0 0.0
    %1565 = vmatprep.subr.mxu0 0.0
    %1566 = vmatpush1.msra.mxu0 0.0
    %1567 = vmatprep.subr.mxu0 0.0
    %1568 = vmatpush1.msra.mxu0 0.0
    %1569 = vmatprep.subr.mxu0 0.0
    %1570 = vmatpush1.msra.mxu0 0.0
    %1571 = vmatprep.subr.mxu0 0.0
    %1572 = vmatpush1.msra.mxu0 0.0
    %1573 = vmatprep.subr.mxu0 0.0
    %1574 = vmatpush1.msra.mxu0 0.0
    %1575 = vmatprep.subr.mxu0 0.0
    %1576 = vmatpush1.msra.mxu0 0.0
    %1577 = vmatprep.subr.mxu0 0.0
    %1578 = vmatpush1.msra.mxu0 0.0
    %1579 = vmatprep.subr.mxu0 0.0
    %1580 = vmatpush1.msra.mxu0 0.0
    %1581 = vmatprep.subr.mxu0 0.0
    %1582 = vmatpush1.msra.mxu0 0.0
    %1583 = vmatprep.subr.mxu0 0.0
    %1584 = vmatpush1.msra.mxu0 0.0
    %1585 = vmatprep.subr.mxu0 0.0
    %1586 = vmatpush1.msra.mxu0 0.0
    %1587 = vmatprep.subr.mxu0 0.0
    %1588 = vmatpush1.msra.mxu0 0.0
    %1589 = vmatprep.mubr.f32.mxu0 0.0
    %1590 = vmatmul.mubr.f32.gmra.mrb[0].mxu0 %v1505
    %v1591 = vpop.f32.mrb[0].mxu0
    %v1592 = vadd.f32 0.0, %v1591
    %v1593 = vpop.f32.mrb[0].mxu0
    %v1594 = vadd.f32 0.0, %v1593
    %1595 = vmatprep.mubr.f32.mxu0 0.0
    %1596 = vmatmul.mubr.f32.gmra.mrb[0].mxu0 %v1508
    %v1597 = vpop.f32.mrb[0].mxu0
    %v1598 = vadd.f32 0.0, %v1597
    %v1599 = vpop.f32.mrb[0].mxu0
    %v1600 = vadd.f32 0.0, %v1599
    %1601 = vmatprep.mubr.f32.mxu0 0.0
    %1602 = vmatmul.mubr.f32.gmra.mrb[0].mxu0 %v1511
    %v1603 = vpop.f32.mrb[0].mxu0
    %v1604 = vadd.f32 0.0, %v1603
    %v1605 = vpop.f32.mrb[0].mxu0
    %v1606 = vadd.f32 0.0, %v1605
    %1607 = vdwg.mxu0
    %1608 = vmatprep.subr.mxu0 %v1495
    %1609 = vmatpush1.msra.mxu0 %v1494
    %1610 = vmatprep.subr.mxu0 %v1499
    %1611 = vmatpush1.msra.mxu0 %v1498
    %1612 = vmatprep.subr.mxu0 %v1523
    %1613 = vmatpush1.msra.mxu0 %v1520
    %1614 = vmatprep.subr.mxu0 0.0
    %1615 = vmatpush1.msra.mxu0 0.0
    %1616 = vmatprep.subr.mxu0 0.0
    %1617 = vmatpush1.msra.mxu0 0.0
    %1618 = vmatprep.subr.mxu0 0.0
    %1619 = vmatpush1.msra.mxu0 0.0
    %1620 = vmatprep.subr.mxu0 0.0
    %1621 = vmatpush1.msra.mxu0 0.0
    %1622 = vmatprep.subr.mxu0 0.0
    %1623 = vmatpush1.msra.mxu0 0.0
    %1624 = vmatprep.subr.mxu0 0.0
    %1625 = vmatpush1.msra.mxu0 0.0
    %1626 = vmatprep.subr.mxu0 0.0
    %1627 = vmatpush1.msra.mxu0 0.0
    %1628 = vmatprep.subr.mxu0 0.0
    %1629 = vmatpush1.msra.mxu0 0.0
    %1630 = vmatprep.subr.mxu0 0.0
    %1631 = vmatpush1.msra.mxu0 0.0
    %1632 = vmatprep.subr.mxu0 0.0
    %1633 = vmatpush1.msra.mxu0 0.0
    %1634 = vmatprep.subr.mxu0 0.0
    %1635 = vmatpush1.msra.mxu0 0.0
    %1636 = vmatprep.subr.mxu0 0.0
    %1637 = vmatpush1.msra.mxu0 0.0
    %1638 = vmatprep.subr.mxu0 0.0
    %1639 = vmatpush1.msra.mxu0 0.0
    %1640 = vmatprep.subr.mxu0 0.0
    %1641 = vmatpush1.msra.mxu0 0.0
    %1642 = vmatprep.subr.mxu0 0.0
    %1643 = vmatpush1.msra.mxu0 0.0
    %1644 = vmatprep.subr.mxu0 0.0
    %1645 = vmatpush1.msra.mxu0 0.0
    %1646 = vmatprep.subr.mxu0 0.0
    %1647 = vmatpush1.msra.mxu0 0.0
    %1648 = vmatprep.subr.mxu0 0.0
    %1649 = vmatpush1.msra.mxu0 0.0
    %1650 = vmatprep.subr.mxu0 0.0
    %1651 = vmatpush1.msra.mxu0 0.0
    %1652 = vmatprep.subr.mxu0 0.0
    %1653 = vmatpush1.msra.mxu0 0.0
    %1654 = vmatprep.subr.mxu0 0.0
    %1655 = vmatpush1.msra.mxu0 0.0
    %1656 = vmatprep.subr.mxu0 0.0
    %1657 = vmatpush1.msra.mxu0 0.0
    %1658 = vmatprep.subr.mxu0 0.0
    %1659 = vmatpush1.msra.mxu0 0.0
    %1660 = vmatprep.subr.mxu0 0.0
    %1661 = vmatpush1.msra.mxu0 0.0
    %1662 = vmatprep.subr.mxu0 0.0
    %1663 = vmatpush1.msra.mxu0 0.0
    %1664 = vmatprep.subr.mxu0 0.0
    %1665 = vmatpush1.msra.mxu0 0.0
    %1666 = vmatprep.subr.mxu0 0.0
    %1667 = vmatpush1.msra.mxu0 0.0
    %1668 = vmatprep.subr.mxu0 0.0
    %1669 = vmatpush1.msra.mxu0 0.0
    %1670 = vmatprep.subr.mxu0 0.0
    %1671 = vmatpush1.msra.mxu0 0.0
    %1672 = vmatprep.mubr.f32.mxu0 0.0
    %1673 = vmatmul.mubr.f32.gmra.mrb[0].mxu0 %v1505
    %v1674 = vpop.f32.mrb[0].mxu0
    %v1675 = vadd.f32 0.0, %v1674
    %v1676 = vpop.f32.mrb[0].mxu0
    %v1677 = vadd.f32 0.0, %v1676
    %1678 = vmatprep.mubr.f32.mxu0 0.0
    %1679 = vmatmul.mubr.f32.gmra.mrb[0].mxu0 %v1508
    %v1680 = vpop.f32.mrb[0].mxu0
    %v1681 = vadd.f32 0.0, %v1680
    %v1682 = vpop.f32.mrb[0].mxu0
    %v1683 = vadd.f32 0.0, %v1682
    %1684 = vmatprep.mubr.f32.mxu0 0.0
    %1685 = vmatmul.mubr.f32.gmra.mrb[0].mxu0 %v1511
    %v1686 = vpop.f32.mrb[0].mxu0
    %v1687 = vadd.f32 0.0, %v1686
    %v1688 = vpop.f32.mrb[0].mxu0
    %v1689 = vadd.f32 0.0, %v1688
    %1690 = vdwg.mxu0
    %1692 = vset.pattern.permute.xlu0 0
    %1693 = vperm.xlu0 %1692, %v1489
    %v1694 = vpop.permute.xlu0 %1693
    %1697 = vset.pattern.permute.xlu0 0
    %1698 = vperm.xlu0 %1697, %v1490
    %v1699 = vpop.permute.xlu0 %1698
    %1702 = vset.pattern.permute.xlu0 0
    %1703 = vperm.xlu0 %1702, %v1491
    %v1704 = vpop.permute.xlu0 %1703
    %v1706 = vadd.f32 %v1592, %v1694
    %v1707 = vadd.f32 %v1598, %v1699
    %v1708 = vadd.f32 %v1604, %v1704
    %v1709 = vtanh.pop %v1706
    %v1710 = vtanh.pop %v1707
    %v1711 = vtanh.pop %v1708
    %v1712 = vmul.f32 %v1709, %v1709
    %v1713 = vmul.f32 %v1710, %v1710
    %v1714 = vmul.f32 %v1711, %v1711
    %v1715 = vsub.f32 1.0, %v1712
    %v1716 = vsub.f32 1.0, %v1713
    %v1717 = vsub.f32 1.0, %v1714
    %v1718 = vmul.f32 %v1715, %v1675
    %v1719 = vmul.f32 %v1716, %v1681
    %v1720 = vmul.f32 %v1717, %v1687
    %1721 = vst [vmem:[#allocation2] sm:$0xff] %v1709
    %1722 = vst [vmem:[#allocation2 + $0x20] sm:$0xff] %v1710
    %1723 = vst [vmem:[#allocation2 + $0x40] sm:$0xf] %v1711
    %v1724 = vmul.f32 %v1715, %v1594
    %v1725 = vmul.f32 %v1716, %v1600
    %v1726 = vmul.f32 %v1717, %v1606
    %1727 = vst [vmem:[#allocation2 + $0x8] sm:$0xff] %v1724
    %1728 = vst [vmem:[#allocation2 + $0x28] sm:$0xff] %v1725
    %1729 = vst [vmem:[#allocation2 + $0x48] sm:$0xf] %v1726
    %1730 = vst [vmem:[#allocation2 + $0x10] sm:$0xff] %v1718
    %1731 = vst [vmem:[#allocation2 + $0x30] sm:$0xff] %v1719
    %1732 = vst [vmem:[#allocation2 + $0x50] sm:$0xf] %v1720
    %v1733 = vmul.f32 %v1715, %v1677
    %v1734 = vmul.f32 %v1716, %v1683
    %v1735 = vmul.f32 %v1717, %v1689
    %v1736 = vmul.f32 %v1709, 2.0
    %v1737 = vmul.f32 %v1710, 2.0
    %v1738 = vmul.f32 %v1711, 2.0
    %v1739 = vmul.f32 %v1718, %v1675
    %v1740 = vmul.f32 %v1719, %v1681
    %v1741 = vmul.f32 %v1720, %v1687
    %v1742 = vmul.f32 %v1736, %v1739
    %v1743 = vmul.f32 %v1737, %v1740
    %v1744 = vmul.f32 %v1738, %v1741
    %v1745 = vsub.f32 %v1733, %v1742
    %v1746 = vsub.f32 %v1734, %v1743
    %v1747 = vsub.f32 %v1735, %v1744
    %1748 = vst [vmem:[#allocation2 + $0x18] sm:$0xff] %v1745
    %1749 = vst [vmem:[#allocation2 + $0x38] sm:$0xff] %v1746
    %1750 = vst [vmem:[#allocation2 + $0x58] sm:$0xf] %v1747
    %s1751 = scalar_lea.vmem %s3, 144
    %v1752 = vld [vmem:[%s1751] sm:$0xff]
    %v1753 = vld [vmem:[%s1751 + $0x8] sm:$0xff]
    %v1754 = vld [vmem:[%s1751 + $0x10] sm:$0xf]
    %s1755 = scalar_lea.vmem %s4, 144
    %v1756 = vld [vmem:[%s1755] sm:$0xff]
    %v1757 = vld [vmem:[%s1755 + $0x8] sm:$0xff]
    %v1758 = vld [vmem:[%s1755 + $0x10] sm:$0xf]
    %v1759 = vld [vmem:[#allocation2] sm:$0xff]
    %v1760 = vld [vmem:[#allocation2 + $0x8] sm:$0xff]
    %v1761 = vld [vmem:[#allocation2 + $0x10] sm:$0xff]
    %v1762 = vld [vmem:[#allocation2 + $0x18] sm:$0xff]
    %v1763 = vld [vmem:[#allocation2 + $0x20] sm:$0xff]
    %v1764 = vld [vmem:[#allocation2 + $0x28] sm:$0xff]
    %v1765 = vld [vmem:[#allocation2 + $0x30] sm:$0xff]
    %v1766 = vld [vmem:[#allocation2 + $0x38] sm:$0xff]
    %v1767 = vld [vmem:[#allocation2 + $0x40] sm:$0xf]
    %v1768 = vld [vmem:[#allocation2 + $0x48] sm:$0xf]
    %v1769 = vld [vmem:[#allocation2 + $0x50] sm:$0xf]
    %v1770 = vld [vmem:[#allocation2 + $0x58] sm:$0xf]
    %v1772 = vsel %vm167, %v1752, 0
    %v1775 = vsel %vm167, %v1753, 0
    %v1778 = vsel %vm167, %v1754, 0
    %v1781 = vsel %vm177, %v1767, 0
    %v1784 = vsel %vm177, %v1768, 0
    %v1787 = vsel %vm177, %v1769, 0
    %v1790 = vsel %vm177, %v1770, 0
    %1792 = vmatprep.subr.mxu0 %v1760
    %1793 = vmatpush1.msra.mxu0 %v1759
    %1794 = vmatprep.subr.mxu0 %v1764
    %1795 = vmatpush1.msra.mxu0 %v1763
    %1796 = vmatprep.subr.mxu0 %v1784
    %1797 = vmatpush1.msra.mxu0 %v1781
    %1798 = vmatprep.subr.mxu0 0.0
    %1799 = vmatpush1.msra.mxu0 0.0
    %1800 = vmatprep.subr.mxu0 0.0
    %1801 = vmatpush1.msra.mxu0 0.0
    %1802 = vmatprep.subr.mxu0 0.0
    %1803 = vmatpush1.msra.mxu0 0.0
    %1804 = vmatprep.subr.mxu0 0.0
    %1805 = vmatpush1.msra.mxu0 0.0
    %1806 = vmatprep.subr.mxu0 0.0
    %1807 = vmatpush1.msra.mxu0 0.0
    %1808 = vmatprep.subr.mxu0 0.0
    %1809 = vmatpush1.msra.mxu0 0.0
    %1810 = vmatprep.subr.mxu0 0.0
    %1811 = vmatpush1.msra.mxu0 0.0
    %1812 = vmatprep.subr.mxu0 0.0
    %1813 = vmatpush1.msra.mxu0 0.0
    %1814 = vmatprep.subr.mxu0 0.0
    %1815 = vmatpush1.msra.mxu0 0.0
    %1816 = vmatprep.subr.mxu0 0.0
    %1817 = vmatpush1.msra.mxu0 0.0
    %1818 = vmatprep.subr.mxu0 0.0
    %1819 = vmatpush1.msra.mxu0 0.0
    %1820 = vmatprep.subr.mxu0 0.0
    %1821 = vmatpush1.msra.mxu0 0.0
    %1822 = vmatprep.subr.mxu0 0.0
    %1823 = vmatpush1.msra.mxu0 0.0
    %1824 = vmatprep.subr.mxu0 0.0
    %1825 = vmatpush1.msra.mxu0 0.0
    %1826 = vmatprep.subr.mxu0 0.0
    %1827 = vmatpush1.msra.mxu0 0.0
    %1828 = vmatprep.subr.mxu0 0.0
    %1829 = vmatpush1.msra.mxu0 0.0
    %1830 = vmatprep.subr.mxu0 0.0
    %1831 = vmatpush1.msra.mxu0 0.0
    %1832 = vmatprep.subr.mxu0 0.0
    %1833 = vmatpush1.msra.mxu0 0.0
    %1834 = vmatprep.subr.mxu0 0.0
    %1835 = vmatpush1.msra.mxu0 0.0
    %1836 = vmatprep.subr.mxu0 0.0
    %1837 = vmatpush1.msra.mxu0 0.0
    %1838 = vmatprep.subr.mxu0 0.0
    %1839 = vmatpush1.msra.mxu0 0.0
    %1840 = vmatprep.subr.mxu0 0.0
    %1841 = vmatpush1.msra.mxu0 0.0
    %1842 = vmatprep.subr.mxu0 0.0
    %1843 = vmatpush1.msra.mxu0 0.0
    %1844 = vmatprep.subr.mxu0 0.0
    %1845 = vmatpush1.msra.mxu0 0.0
    %1846 = vmatprep.subr.mxu0 0.0
    %1847 = vmatpush1.msra.mxu0 0.0
    %1848 = vmatprep.subr.mxu0 0.0
    %1849 = vmatpush1.msra.mxu0 0.0
    %1850 = vmatprep.subr.mxu0 0.0
    %1851 = vmatpush1.msra.mxu0 0.0
    %1852 = vmatprep.subr.mxu0 0.0
    %1853 = vmatpush1.msra.mxu0 0.0
    %1854 = vmatprep.subr.mxu0 0.0
    %1855 = vmatpush1.msra.mxu0 0.0
    %1856 = vmatprep.mubr.f32.mxu0 0.0
    %1857 = vmatmul.mubr.f32.gmra.mrb[0].mxu0 %v1772
    %v1858 = vpop.f32.mrb[0].mxu0
    %v1859 = vadd.f32 0.0, %v1858
    %v1860 = vpop.f32.mrb[0].mxu0
    %v1861 = vadd.f32 0.0, %v1860
    %1862 = vmatprep.mubr.f32.mxu0 0.0
    %1863 = vmatmul.mubr.f32.gmra.mrb[0].mxu0 %v1775
    %v1864 = vpop.f32.mrb[0].mxu0
    %v1865 = vadd.f32 0.0, %v1864
    %v1866 = vpop.f32.mrb[0].mxu0
    %v1867 = vadd.f32 0.0, %v1866
    %1868 = vmatprep.mubr.f32.mxu0 0.0
    %1869 = vmatmul.mubr.f32.gmra.mrb[0].mxu0 %v1778
    %v1870 = vpop.f32.mrb[0].mxu0
    %v1871 = vadd.f32 0.0, %v1870
    %v1872 = vpop.f32.mrb[0].mxu0
    %v1873 = vadd.f32 0.0, %v1872
    %1874 = vdwg.mxu0
    %1875 = vmatprep.subr.mxu0 %v1762
    %1876 = vmatpush1.msra.mxu0 %v1761
    %1877 = vmatprep.subr.mxu0 %v1766
    %1878 = vmatpush1.msra.mxu0 %v1765
    %1879 = vmatprep.subr.mxu0 %v1790
    %1880 = vmatpush1.msra.mxu0 %v1787
    %1881 = vmatprep.subr.mxu0 0.0
    %1882 = vmatpush1.msra.mxu0 0.0
    %1883 = vmatprep.subr.mxu0 0.0
    %1884 = vmatpush1.msra.mxu0 0.0
    %1885 = vmatprep.subr.mxu0 0.0
    %1886 = vmatpush1.msra.mxu0 0.0
    %1887 = vmatprep.subr.mxu0 0.0
    %1888 = vmatpush1.msra.mxu0 0.0
    %1889 = vmatprep.subr.mxu0 0.0
    %1890 = vmatpush1.msra.mxu0 0.0
    %1891 = vmatprep.subr.mxu0 0.0
    %1892 = vmatpush1.msra.mxu0 0.0
    %1893 = vmatprep.subr.mxu0 0.0
    %1894 = vmatpush1.msra.mxu0 0.0
    %1895 = vmatprep.subr.mxu0 0.0
    %1896 = vmatpush1.msra.mxu0 0.0
    %1897 = vmatprep.subr.mxu0 0.0
    %1898 = vmatpush1.msra.mxu0 0.0
    %1899 = vmatprep.subr.mxu0 0.0
    %1900 = vmatpush1.msra.mxu0 0.0
    %1901 = vmatprep.subr.mxu0 0.0
    %1902 = vmatpush1.msra.mxu0 0.0
    %1903 = vmatprep.subr.mxu0 0.0
    %1904 = vmatpush1.msra.mxu0 0.0
    %1905 = vmatprep.subr.mxu0 0.0
    %1906 = vmatpush1.msra.mxu0 0.0
    %1907 = vmatprep.subr.mxu0 0.0
    %1908 = vmatpush1.msra.mxu0 0.0
    %1909 = vmatprep.subr.mxu0 0.0
    %1910 = vmatpush1.msra.mxu0 0.0
    %1911 = vmatprep.subr.mxu0 0.0
    %1912 = vmatpush1.msra.mxu0 0.0
    %1913 = vmatprep.subr.mxu0 0.0
    %1914 = vmatpush1.msra.mxu0 0.0
    %1915 = vmatprep.subr.mxu0 0.0
    %1916 = vmatpush1.msra.mxu0 0.0
    %1917 = vmatprep.subr.mxu0 0.0
    %1918 = vmatpush1.msra.mxu0 0.0
    %1919 = vmatprep.subr.mxu0 0.0
    %1920 = vmatpush1.msra.mxu0 0.0
    %1921 = vmatprep.subr.mxu0 0.0
    %1922 = vmatpush1.msra.mxu0 0.0
    %1923 = vmatprep.subr.mxu0 0.0
    %1924 = vmatpush1.msra.mxu0 0.0
    %1925 = vmatprep.subr.mxu0 0.0
    %1926 = vmatpush1.msra.mxu0 0.0
    %1927 = vmatprep.subr.mxu0 0.0
    %1928 = vmatpush1.msra.mxu0 0.0
    %1929 = vmatprep.subr.mxu0 0.0
    %1930 = vmatpush1.msra.mxu0 0.0
    %1931 = vmatprep.subr.mxu0 0.0
    %1932 = vmatpush1.msra.mxu0 0.0
    %1933 = vmatprep.subr.mxu0 0.0
    %1934 = vmatpush1.msra.mxu0 0.0
    %1935 = vmatprep.subr.mxu0 0.0
    %1936 = vmatpush1.msra.mxu0 0.0
    %1937 = vmatprep.subr.mxu0 0.0
    %1938 = vmatpush1.msra.mxu0 0.0
    %1939 = vmatprep.mubr.f32.mxu0 0.0
    %1940 = vmatmul.mubr.f32.gmra.mrb[0].mxu0 %v1772
    %v1941 = vpop.f32.mrb[0].mxu0
    %v1942 = vadd.f32 0.0, %v1941
    %v1943 = vpop.f32.mrb[0].mxu0
    %v1944 = vadd.f32 0.0, %v1943
    %1945 = vmatprep.mubr.f32.mxu0 0.0
    %1946 = vmatmul.mubr.f32.gmra.mrb[0].mxu0 %v1775
    %v1947 = vpop.f32.mrb[0].mxu0
    %v1948 = vadd.f32 0.0, %v1947
    %v1949 = vpop.f32.mrb[0].mxu0
    %v1950 = vadd.f32 0.0, %v1949
    %1951 = vmatprep.mubr.f32.mxu0 0.0
    %1952 = vmatmul.mubr.f32.gmra.mrb[0].mxu0 %v1778
    %v1953 = vpop.f32.mrb[0].mxu0
    %v1954 = vadd.f32 0.0, %v1953
    %v1955 = vpop.f32.mrb[0].mxu0
    %v1956 = vadd.f32 0.0, %v1955
    %1957 = vdwg.mxu0
    %1959 = vset.pattern.permute.xlu0 0
    %1960 = vperm.xlu0 %1959, %v1756
    %v1961 = vpop.permute.xlu0 %1960
    %1964 = vset.pattern.permute.xlu0 0
    %1965 = vperm.xlu0 %1964, %v1757
    %v1966 = vpop.permute.xlu0 %1965
    %1969 = vset.pattern.permute.xlu0 0
    %1970 = vperm.xlu0 %1969, %v1758
    %v1971 = vpop.permute.xlu0 %1970
    %v1973 = vadd.f32 %v1859, %v1961
    %v1974 = vadd.f32 %v1865, %v1966
    %v1975 = vadd.f32 %v1871, %v1971
    %v1976 = vtanh.pop %v1973
    %v1977 = vtanh.pop %v1974
    %v1978 = vtanh.pop %v1975
    %v1979 = vmul.f32 %v1976, %v1976
    %v1980 = vmul.f32 %v1977, %v1977
    %v1981 = vmul.f32 %v1978, %v1978
    %v1982 = vsub.f32 1.0, %v1979
    %v1983 = vsub.f32 1.0, %v1980
    %v1984 = vsub.f32 1.0, %v1981
    %v1985 = vmul.f32 %v1982, %v1942
    %v1986 = vmul.f32 %v1983, %v1948
    %v1987 = vmul.f32 %v1984, %v1954
    %1988 = vst [vmem:[#allocation2] sm:$0xff] %v1976
    %1989 = vst [vmem:[#allocation2 + $0x20] sm:$0xff] %v1977
    %1990 = vst [vmem:[#allocation2 + $0x40] sm:$0xf] %v1978
    %v1991 = vmul.f32 %v1982, %v1861
    %v1992 = vmul.f32 %v1983, %v1867
    %v1993 = vmul.f32 %v1984, %v1873
    %1994 = vst [vmem:[#allocation2 + $0x8] sm:$0xff] %v1991
    %1995 = vst [vmem:[#allocation2 + $0x28] sm:$0xff] %v1992
    %1996 = vst [vmem:[#allocation2 + $0x48] sm:$0xf] %v1993
    %1997 = vst [vmem:[#allocation2 + $0x10] sm:$0xff] %v1985
    %1998 = vst [vmem:[#allocation2 + $0x30] sm:$0xff] %v1986
    %1999 = vst [vmem:[#allocation2 + $0x50] sm:$0xf] %v1987
    %v2000 = vmul.f32 %v1982, %v1944
    %v2001 = vmul.f32 %v1983, %v1950
    %v2002 = vmul.f32 %v1984, %v1956
    %v2003 = vmul.f32 %v1976, 2.0
    %v2004 = vmul.f32 %v1977, 2.0
    %v2005 = vmul.f32 %v1978, 2.0
    %v2006 = vmul.f32 %v1985, %v1942
    %v2007 = vmul.f32 %v1986, %v1948
    %v2008 = vmul.f32 %v1987, %v1954
    %v2009 = vmul.f32 %v2003, %v2006
    %v2010 = vmul.f32 %v2004, %v2007
    %v2011 = vmul.f32 %v2005, %v2008
    %v2012 = vsub.f32 %v2000, %v2009
    %v2013 = vsub.f32 %v2001, %v2010
    %v2014 = vsub.f32 %v2002, %v2011
    %2015 = vst [vmem:[#allocation2 + $0x18] sm:$0xff] %v2012
    %2016 = vst [vmem:[#allocation2 + $0x38] sm:$0xff] %v2013
    %2017 = vst [vmem:[#allocation2 + $0x58] sm:$0xf] %v2014
    %s2018 = scalar_lea.vmem %s3, 168
    %v2019 = vld [vmem:[%s2018] sm:$0xff]
    %v2020 = vld [vmem:[%s2018 + $0x8] sm:$0xff]
    %v2021 = vld [vmem:[%s2018 + $0x10] sm:$0xf]
    %s2022 = scalar_lea.vmem %s4, 168
    %v2023 = vld [vmem:[%s2022] sm:$0xff]
    %v2024 = vld [vmem:[%s2022 + $0x8] sm:$0xff]
    %v2025 = vld [vmem:[%s2022 + $0x10] sm:$0xf]
    %v2026 = vld [vmem:[#allocation2] sm:$0xff]
    %v2027 = vld [vmem:[#allocation2 + $0x8] sm:$0xff]
    %v2028 = vld [vmem:[#allocation2 + $0x10] sm:$0xff]
    %v2029 = vld [vmem:[#allocation2 + $0x18] sm:$0xff]
    %v2030 = vld [vmem:[#allocation2 + $0x20] sm:$0xff]
    %v2031 = vld [vmem:[#allocation2 + $0x28] sm:$0xff]
    %v2032 = vld [vmem:[#allocation2 + $0x30] sm:$0xff]
    %v2033 = vld [vmem:[#allocation2 + $0x38] sm:$0xff]
    %v2034 = vld [vmem:[#allocation2 + $0x40] sm:$0xf]
    %v2035 = vld [vmem:[#allocation2 + $0x48] sm:$0xf]
    %v2036 = vld [vmem:[#allocation2 + $0x50] sm:$0xf]
    %v2037 = vld [vmem:[#allocation2 + $0x58] sm:$0xf]
    %v2039 = vsel %vm167, %v2019, 0
    %v2042 = vsel %vm167, %v2020, 0
    %v2045 = vsel %vm167, %v2021, 0
    %v2048 = vsel %vm177, %v2034, 0
    %v2051 = vsel %vm177, %v2035, 0
    %v2054 = vsel %vm177, %v2036, 0
    %v2057 = vsel %vm177, %v2037, 0
    %2059 = vmatprep.subr.mxu0 %v2027
    %2060 = vmatpush1.msra.mxu0 %v2026
    %2061 = vmatprep.subr.mxu0 %v2031
    %2062 = vmatpush1.msra.mxu0 %v2030
    %2063 = vmatprep.subr.mxu0 %v2051
    %2064 = vmatpush1.msra.mxu0 %v2048
    %2065 = vmatprep.subr.mxu0 0.0
    %2066 = vmatpush1.msra.mxu0 0.0
    %2067 = vmatprep.subr.mxu0 0.0
    %2068 = vmatpush1.msra.mxu0 0.0
    %2069 = vmatprep.subr.mxu0 0.0
    %2070 = vmatpush1.msra.mxu0 0.0
    %2071 = vmatprep.subr.mxu0 0.0
    %2072 = vmatpush1.msra.mxu0 0.0
    %2073 = vmatprep.subr.mxu0 0.0
    %2074 = vmatpush1.msra.mxu0 0.0
    %2075 = vmatprep.subr.mxu0 0.0
    %2076 = vmatpush1.msra.mxu0 0.0
    %2077 = vmatprep.subr.mxu0 0.0
    %2078 = vmatpush1.msra.mxu0 0.0
    %2079 = vmatprep.subr.mxu0 0.0
    %2080 = vmatpush1.msra.mxu0 0.0
    %2081 = vmatprep.subr.mxu0 0.0
    %2082 = vmatpush1.msra.mxu0 0.0
    %2083 = vmatprep.subr.mxu0 0.0
    %2084 = vmatpush1.msra.mxu0 0.0
    %2085 = vmatprep.subr.mxu0 0.0
    %2086 = vmatpush1.msra.mxu0 0.0
    %2087 = vmatprep.subr.mxu0 0.0
    %2088 = vmatpush1.msra.mxu0 0.0
    %2089 = vmatprep.subr.mxu0 0.0
    %2090 = vmatpush1.msra.mxu0 0.0
    %2091 = vmatprep.subr.mxu0 0.0
    %2092 = vmatpush1.msra.mxu0 0.0
    %2093 = vmatprep.subr.mxu0 0.0
    %2094 = vmatpush1.msra.mxu0 0.0
    %2095 = vmatprep.subr.mxu0 0.0
    %2096 = vmatpush1.msra.mxu0 0.0
    %2097 = vmatprep.subr.mxu0 0.0
    %2098 = vmatpush1.msra.mxu0 0.0
    %2099 = vmatprep.subr.mxu0 0.0
    %2100 = vmatpush1.msra.mxu0 0.0
    %2101 = vmatprep.subr.mxu0 0.0
    %2102 = vmatpush1.msra.mxu0 0.0
    %2103 = vmatprep.subr.mxu0 0.0
    %2104 = vmatpush1.msra.mxu0 0.0
    %2105 = vmatprep.subr.mxu0 0.0
    %2106 = vmatpush1.msra.mxu0 0.0
    %2107 = vmatprep.subr.mxu0 0.0
    %2108 = vmatpush1.msra.mxu0 0.0
    %2109 = vmatprep.subr.mxu0 0.0
    %2110 = vmatpush1.msra.mxu0 0.0
    %2111 = vmatprep.subr.mxu0 0.0
    %2112 = vmatpush1.msra.mxu0 0.0
    %2113 = vmatprep.subr.mxu0 0.0
    %2114 = vmatpush1.msra.mxu0 0.0
    %2115 = vmatprep.subr.mxu0 0.0
    %2116 = vmatpush1.msra.mxu0 0.0
    %2117 = vmatprep.subr.mxu0 0.0
    %2118 = vmatpush1.msra.mxu0 0.0
    %2119 = vmatprep.subr.mxu0 0.0
    %2120 = vmatpush1.msra.mxu0 0.0
    %2121 = vmatprep.subr.mxu0 0.0
    %2122 = vmatpush1.msra.mxu0 0.0
    %2123 = vmatprep.mubr.f32.mxu0 0.0
    %2124 = vmatmul.mubr.f32.gmra.mrb[0].mxu0 %v2039
    %v2125 = vpop.f32.mrb[0].mxu0
    %v2126 = vadd.f32 0.0, %v2125
    %v2127 = vpop.f32.mrb[0].mxu0
    %v2128 = vadd.f32 0.0, %v2127
    %2129 = vmatprep.mubr.f32.mxu0 0.0
    %2130 = vmatmul.mubr.f32.gmra.mrb[0].mxu0 %v2042
    %v2131 = vpop.f32.mrb[0].mxu0
    %v2132 = vadd.f32 0.0, %v2131
    %v2133 = vpop.f32.mrb[0].mxu0
    %v2134 = vadd.f32 0.0, %v2133
    %2135 = vmatprep.mubr.f32.mxu0 0.0
    %2136 = vmatmul.mubr.f32.gmra.mrb[0].mxu0 %v2045
    %v2137 = vpop.f32.mrb[0].mxu0
    %v2138 = vadd.f32 0.0, %v2137
    %v2139 = vpop.f32.mrb[0].mxu0
    %v2140 = vadd.f32 0.0, %v2139
    %2141 = vdwg.mxu0
    %2142 = vmatprep.subr.mxu0 %v2029
    %2143 = vmatpush1.msra.mxu0 %v2028
    %2144 = vmatprep.subr.mxu0 %v2033
    %2145 = vmatpush1.msra.mxu0 %v2032
    %2146 = vmatprep.subr.mxu0 %v2057
    %2147 = vmatpush1.msra.mxu0 %v2054
    %2148 = vmatprep.subr.mxu0 0.0
    %2149 = vmatpush1.msra.mxu0 0.0
    %2150 = vmatprep.subr.mxu0 0.0
    %2151 = vmatpush1.msra.mxu0 0.0
    %2152 = vmatprep.subr.mxu0 0.0
    %2153 = vmatpush1.msra.mxu0 0.0
    %2154 = vmatprep.subr.mxu0 0.0
    %2155 = vmatpush1.msra.mxu0 0.0
    %2156 = vmatprep.subr.mxu0 0.0
    %2157 = vmatpush1.msra.mxu0 0.0
    %2158 = vmatprep.subr.mxu0 0.0
    %2159 = vmatpush1.msra.mxu0 0.0
    %2160 = vmatprep.subr.mxu0 0.0
    %2161 = vmatpush1.msra.mxu0 0.0
    %2162 = vmatprep.subr.mxu0 0.0
    %2163 = vmatpush1.msra.mxu0 0.0
    %2164 = vmatprep.subr.mxu0 0.0
    %2165 = vmatpush1.msra.mxu0 0.0
    %2166 = vmatprep.subr.mxu0 0.0
    %2167 = vmatpush1.msra.mxu0 0.0
    %2168 = vmatprep.subr.mxu0 0.0
    %2169 = vmatpush1.msra.mxu0 0.0
    %2170 = vmatprep.subr.mxu0 0.0
    %2171 = vmatpush1.msra.mxu0 0.0
    %2172 = vmatprep.subr.mxu0 0.0
    %2173 = vmatpush1.msra.mxu0 0.0
    %2174 = vmatprep.subr.mxu0 0.0
    %2175 = vmatpush1.msra.mxu0 0.0
    %2176 = vmatprep.subr.mxu0 0.0
    %2177 = vmatpush1.msra.mxu0 0.0
    %2178 = vmatprep.subr.mxu0 0.0
    %2179 = vmatpush1.msra.mxu0 0.0
    %2180 = vmatprep.subr.mxu0 0.0
    %2181 = vmatpush1.msra.mxu0 0.0
    %2182 = vmatprep.subr.mxu0 0.0
    %2183 = vmatpush1.msra.mxu0 0.0
    %2184 = vmatprep.subr.mxu0 0.0
    %2185 = vmatpush1.msra.mxu0 0.0
    %2186 = vmatprep.subr.mxu0 0.0
    %2187 = vmatpush1.msra.mxu0 0.0
    %2188 = vmatprep.subr.mxu0 0.0
    %2189 = vmatpush1.msra.mxu0 0.0
    %2190 = vmatprep.subr.mxu0 0.0
    %2191 = vmatpush1.msra.mxu0 0.0
    %2192 = vmatprep.subr.mxu0 0.0
    %2193 = vmatpush1.msra.mxu0 0.0
    %2194 = vmatprep.subr.mxu0 0.0
    %2195 = vmatpush1.msra.mxu0 0.0
    %2196 = vmatprep.subr.mxu0 0.0
    %2197 = vmatpush1.msra.mxu0 0.0
    %2198 = vmatprep.subr.mxu0 0.0
    %2199 = vmatpush1.msra.mxu0 0.0
    %2200 = vmatprep.subr.mxu0 0.0
    %2201 = vmatpush1.msra.mxu0 0.0
    %2202 = vmatprep.subr.mxu0 0.0
    %2203 = vmatpush1.msra.mxu0 0.0
    %2204 = vmatprep.subr.mxu0 0.0
    %2205 = vmatpush1.msra.mxu0 0.0
    %2206 = vmatprep.mubr.f32.mxu0 0.0
    %2207 = vmatmul.mubr.f32.gmra.mrb[0].mxu0 %v2039
    %v2208 = vpop.f32.mrb[0].mxu0
    %v2209 = vadd.f32 0.0, %v2208
    %v2210 = vpop.f32.mrb[0].mxu0
    %v2211 = vadd.f32 0.0, %v2210
    %2212 = vmatprep.mubr.f32.mxu0 0.0
    %2213 = vmatmul.mubr.f32.gmra.mrb[0].mxu0 %v2042
    %v2214 = vpop.f32.mrb[0].mxu0
    %v2215 = vadd.f32 0.0, %v2214
    %v2216 = vpop.f32.mrb[0].mxu0
    %v2217 = vadd.f32 0.0, %v2216
    %2218 = vmatprep.mubr.f32.mxu0 0.0
    %2219 = vmatmul.mubr.f32.gmra.mrb[0].mxu0 %v2045
    %v2220 = vpop.f32.mrb[0].mxu0
    %v2221 = vadd.f32 0.0, %v2220
    %v2222 = vpop.f32.mrb[0].mxu0
    %v2223 = vadd.f32 0.0, %v2222
    %2224 = vdwg.mxu0
    %2226 = vset.pattern.permute.xlu0 0
    %2227 = vperm.xlu0 %2226, %v2023
    %v2228 = vpop.permute.xlu0 %2227
    %2231 = vset.pattern.permute.xlu0 0
    %2232 = vperm.xlu0 %2231, %v2024
    %v2233 = vpop.permute.xlu0 %2232
    %2236 = vset.pattern.permute.xlu0 0
    %2237 = vperm.xlu0 %2236, %v2025
    %v2238 = vpop.permute.xlu0 %2237
    %v2240 = vadd.f32 %v2126, %v2228
    %v2241 = vadd.f32 %v2132, %v2233
    %v2242 = vadd.f32 %v2138, %v2238
    %v2243 = vtanh.pop %v2240
    %v2244 = vtanh.pop %v2241
    %v2245 = vtanh.pop %v2242
    %v2246 = vmul.f32 %v2243, %v2243
    %v2247 = vmul.f32 %v2244, %v2244
    %v2248 = vmul.f32 %v2245, %v2245
    %v2249 = vsub.f32 1.0, %v2246
    %v2250 = vsub.f32 1.0, %v2247
    %v2251 = vsub.f32 1.0, %v2248
    %v2252 = vmul.f32 %v2249, %v2209
    %v2253 = vmul.f32 %v2250, %v2215
    %v2254 = vmul.f32 %v2251, %v2221
    %2255 = vst [vmem:[#allocation2] sm:$0xff] %v2243
    %2256 = vst [vmem:[#allocation2 + $0x20] sm:$0xff] %v2244
    %2257 = vst [vmem:[#allocation2 + $0x40] sm:$0xf] %v2245
    %v2258 = vmul.f32 %v2249, %v2128
    %v2259 = vmul.f32 %v2250, %v2134
    %v2260 = vmul.f32 %v2251, %v2140
    %2261 = vst [vmem:[#allocation2 + $0x8] sm:$0xff] %v2258
    %2262 = vst [vmem:[#allocation2 + $0x28] sm:$0xff] %v2259
    %2263 = vst [vmem:[#allocation2 + $0x48] sm:$0xf] %v2260
    %2264 = vst [vmem:[#allocation2 + $0x10] sm:$0xff] %v2252
    %2265 = vst [vmem:[#allocation2 + $0x30] sm:$0xff] %v2253
    %2266 = vst [vmem:[#allocation2 + $0x50] sm:$0xf] %v2254
    %v2267 = vmul.f32 %v2249, %v2211
    %v2268 = vmul.f32 %v2250, %v2217
    %v2269 = vmul.f32 %v2251, %v2223
    %v2270 = vmul.f32 %v2243, 2.0
    %v2271 = vmul.f32 %v2244, 2.0
    %v2272 = vmul.f32 %v2245, 2.0
    %v2273 = vmul.f32 %v2252, %v2209
    %v2274 = vmul.f32 %v2253, %v2215
    %v2275 = vmul.f32 %v2254, %v2221
    %v2276 = vmul.f32 %v2270, %v2273
    %v2277 = vmul.f32 %v2271, %v2274
    %v2278 = vmul.f32 %v2272, %v2275
    %v2279 = vsub.f32 %v2267, %v2276
    %v2280 = vsub.f32 %v2268, %v2277
    %v2281 = vsub.f32 %v2269, %v2278
    %2282 = vst [vmem:[#allocation2 + $0x18] sm:$0xff] %v2279
    %2283 = vst [vmem:[#allocation2 + $0x38] sm:$0xff] %v2280
    %2284 = vst [vmem:[#allocation2 + $0x58] sm:$0xf] %v2281
    %v2285 = vld [vmem:[%s5] sm:$0x1]
    %v2286 = vld [vmem:[#allocation3] sm:$0x1]
    %v2287 = vld [vmem:[#allocation2] sm:$0xff]
    %v2288 = vld [vmem:[#allocation2 + $0x8] sm:$0xff]
    %v2289 = vld [vmem:[#allocation2 + $0x10] sm:$0xff]
    %v2290 = vld [vmem:[#allocation2 + $0x18] sm:$0xff]
    %v2291 = vld [vmem:[#allocation2 + $0x20] sm:$0xff]
    %v2292 = vld [vmem:[#allocation2 + $0x28] sm:$0xff]
    %v2293 = vld [vmem:[#allocation2 + $0x30] sm:$0xff]
    %v2294 = vld [vmem:[#allocation2 + $0x38] sm:$0xff]
    %v2295 = vld [vmem:[#allocation2 + $0x40] sm:$0xf]
    %v2296 = vld [vmem:[#allocation2 + $0x48] sm:$0xf]
    %v2297 = vld [vmem:[#allocation2 + $0x50] sm:$0xf]
    %v2298 = vld [vmem:[#allocation2 + $0x58] sm:$0xf]
    %v2300 = vsel %vm167, %v2285, 0
    %v2303 = vsel %vm177, %v2295, 0
    %v2306 = vsel %vm177, %v2296, 0
    %v2309 = vsel %vm177, %v2297, 0
    %v2312 = vsel %vm177, %v2298, 0
    %2314 = vmatprep.subr.mxu0 %v2288
    %2315 = vmatpush1.msra.mxu0 %v2287
    %2316 = vmatprep.subr.mxu0 %v2292
    %2317 = vmatpush1.msra.mxu0 %v2291
    %2318 = vmatprep.subr.mxu0 %v2306
    %2319 = vmatpush1.msra.mxu0 %v2303
    %2320 = vmatprep.subr.mxu0 0.0
    %2321 = vmatpush1.msra.mxu0 0.0
    %2322 = vmatprep.subr.mxu0 0.0
    %2323 = vmatpush1.msra.mxu0 0.0
    %2324 = vmatprep.subr.mxu0 0.0
    %2325 = vmatpush1.msra.mxu0 0.0
    %2326 = vmatprep.subr.mxu0 0.0
    %2327 = vmatpush1.msra.mxu0 0.0
    %2328 = vmatprep.subr.mxu0 0.0
    %2329 = vmatpush1.msra.mxu0 0.0
    %2330 = vmatprep.subr.mxu0 0.0
    %2331 = vmatpush1.msra.mxu0 0.0
    %2332 = vmatprep.subr.mxu0 0.0
    %2333 = vmatpush1.msra.mxu0 0.0
    %2334 = vmatprep.subr.mxu0 0.0
    %2335 = vmatpush1.msra.mxu0 0.0
    %2336 = vmatprep.subr.mxu0 0.0
    %2337 = vmatpush1.msra.mxu0 0.0
    %2338 = vmatprep.subr.mxu0 0.0
    %2339 = vmatpush1.msra.mxu0 0.0
    %2340 = vmatprep.subr.mxu0 0.0
    %2341 = vmatpush1.msra.mxu0 0.0
    %2342 = vmatprep.subr.mxu0 0.0
    %2343 = vmatpush1.msra.mxu0 0.0
    %2344 = vmatprep.subr.mxu0 0.0
    %2345 = vmatpush1.msra.mxu0 0.0
    %2346 = vmatprep.subr.mxu0 0.0
    %2347 = vmatpush1.msra.mxu0 0.0
    %2348 = vmatprep.subr.mxu0 0.0
    %2349 = vmatpush1.msra.mxu0 0.0
    %2350 = vmatprep.subr.mxu0 0.0
    %2351 = vmatpush1.msra.mxu0 0.0
    %2352 = vmatprep.subr.mxu0 0.0
    %2353 = vmatpush1.msra.mxu0 0.0
    %2354 = vmatprep.subr.mxu0 0.0
    %2355 = vmatpush1.msra.mxu0 0.0
    %2356 = vmatprep.subr.mxu0 0.0
    %2357 = vmatpush1.msra.mxu0 0.0
    %2358 = vmatprep.subr.mxu0 0.0
    %2359 = vmatpush1.msra.mxu0 0.0
    %2360 = vmatprep.subr.mxu0 0.0
    %2361 = vmatpush1.msra.mxu0 0.0
    %2362 = vmatprep.subr.mxu0 0.0
    %2363 = vmatpush1.msra.mxu0 0.0
    %2364 = vmatprep.subr.mxu0 0.0
    %2365 = vmatpush1.msra.mxu0 0.0
    %2366 = vmatprep.subr.mxu0 0.0
    %2367 = vmatpush1.msra.mxu0 0.0
    %2368 = vmatprep.subr.mxu0 0.0
    %2369 = vmatpush1.msra.mxu0 0.0
    %2370 = vmatprep.subr.mxu0 0.0
    %2371 = vmatpush1.msra.mxu0 0.0
    %2372 = vmatprep.subr.mxu0 0.0
    %2373 = vmatpush1.msra.mxu0 0.0
    %2374 = vmatprep.subr.mxu0 0.0
    %2375 = vmatpush1.msra.mxu0 0.0
    %2376 = vmatprep.subr.mxu0 0.0
    %2377 = vmatpush1.msra.mxu0 0.0
    %2378 = vmatprep.mubr.f32.mxu0 0.0
    %2379 = vmatmul.mubr.f32.gmra.mrb[0].mxu0 %v2300
    %v2380 = vpop.f32.mrb[0].mxu0
    %v2381 = vadd.f32 0.0, %v2380
    %v2382 = vpop.f32.mrb[0].mxu0
    %v2383 = vadd.f32 0.0, %v2382
    %2384 = vdwg.mxu0
    %2385 = vmatprep.subr.mxu0 %v2290
    %2386 = vmatpush1.msra.mxu0 %v2289
    %2387 = vmatprep.subr.mxu0 %v2294
    %2388 = vmatpush1.msra.mxu0 %v2293
    %2389 = vmatprep.subr.mxu0 %v2312
    %2390 = vmatpush1.msra.mxu0 %v2309
    %2391 = vmatprep.subr.mxu0 0.0
    %2392 = vmatpush1.msra.mxu0 0.0
    %2393 = vmatprep.subr.mxu0 0.0
    %2394 = vmatpush1.msra.mxu0 0.0
    %2395 = vmatprep.subr.mxu0 0.0
    %2396 = vmatpush1.msra.mxu0 0.0
    %2397 = vmatprep.subr.mxu0 0.0
    %2398 = vmatpush1.msra.mxu0 0.0
    %2399 = vmatprep.subr.mxu0 0.0
    %2400 = vmatpush1.msra.mxu0 0.0
    %2401 = vmatprep.subr.mxu0 0.0
    %2402 = vmatpush1.msra.mxu0 0.0
    %2403 = vmatprep.subr.mxu0 0.0
    %2404 = vmatpush1.msra.mxu0 0.0
    %2405 = vmatprep.subr.mxu0 0.0
    %2406 = vmatpush1.msra.mxu0 0.0
    %2407 = vmatprep.subr.mxu0 0.0
    %2408 = vmatpush1.msra.mxu0 0.0
    %2409 = vmatprep.subr.mxu0 0.0
    %2410 = vmatpush1.msra.mxu0 0.0
    %2411 = vmatprep.subr.mxu0 0.0
    %2412 = vmatpush1.msra.mxu0 0.0
    %2413 = vmatprep.subr.mxu0 0.0
    %2414 = vmatpush1.msra.mxu0 0.0
    %2415 = vmatprep.subr.mxu0 0.0
    %2416 = vmatpush1.msra.mxu0 0.0
    %2417 = vmatprep.subr.mxu0 0.0
    %2418 = vmatpush1.msra.mxu0 0.0
    %2419 = vmatprep.subr.mxu0 0.0
    %2420 = vmatpush1.msra.mxu0 0.0
    %2421 = vmatprep.subr.mxu0 0.0
    %2422 = vmatpush1.msra.mxu0 0.0
    %2423 = vmatprep.subr.mxu0 0.0
    %2424 = vmatpush1.msra.mxu0 0.0
    %2425 = vmatprep.subr.mxu0 0.0
    %2426 = vmatpush1.msra.mxu0 0.0
    %2427 = vmatprep.subr.mxu0 0.0
    %2428 = vmatpush1.msra.mxu0 0.0
    %2429 = vmatprep.subr.mxu0 0.0
    %2430 = vmatpush1.msra.mxu0 0.0
    %2431 = vmatprep.subr.mxu0 0.0
    %2432 = vmatpush1.msra.mxu0 0.0
    %2433 = vmatprep.subr.mxu0 0.0
    %2434 = vmatpush1.msra.mxu0 0.0
    %2435 = vmatprep.subr.mxu0 0.0
    %2436 = vmatpush1.msra.mxu0 0.0
    %2437 = vmatprep.subr.mxu0 0.0
    %2438 = vmatpush1.msra.mxu0 0.0
    %2439 = vmatprep.subr.mxu0 0.0
    %2440 = vmatpush1.msra.mxu0 0.0
    %2441 = vmatprep.subr.mxu0 0.0
    %2442 = vmatpush1.msra.mxu0 0.0
    %2443 = vmatprep.subr.mxu0 0.0
    %2444 = vmatpush1.msra.mxu0 0.0
    %2445 = vmatprep.subr.mxu0 0.0
    %2446 = vmatpush1.msra.mxu0 0.0
    %2447 = vmatprep.subr.mxu0 0.0
    %2448 = vmatpush1.msra.mxu0 0.0
    %2449 = vmatprep.mubr.f32.mxu0 0.0
    %2450 = vmatmul.mubr.f32.gmra.mrb[0].mxu0 %v2300
    %v2451 = vpop.f32.mrb[0].mxu0
    %v2452 = vadd.f32 0.0, %v2451
    %v2453 = vpop.f32.mrb[0].mxu0
    %v2454 = vadd.f32 0.0, %v2453
    %2455 = vdwg.mxu0
    %2457 = vset.pattern.permute.xlu0 0
    %2458 = vperm.xlu0 %2457, %v2286
    %v2459 = vpop.permute.xlu0 %2458
    %v2461 = vlaneseq
    %v2462 = vshrl.u32 %v2461, 7
    %v2463 = vsub.s32 0, %v2462
    %v2464 = vrot.slane %v2459, %v2463
    %v2465 = vadd.f32 %v2381, %v2464
    %v2466 = vmul.f32 %v29, 0.5
    %v2467 = vmul.f32 %v2466, %v29
    %v2469 = vrot.slane %v2383, 7
    %v2471 = vadd.f32 %v2467, %v2469
    %v2472 = vmul.f32 %v2454, 0.5
    %v2474 = vrot.slane %v2472, 7
    %v2476 = vadd.f32 %v2471, %v2474
    %v2478 = vrot.slane %v2452, 7
    %v2480 = vmul.f32 %v2466, %v2478
    %v2481 = vadd.f32 %v2476, %v2480
    %v2482 = vmul.f32 %v2452, %v2452
    %v2483 = vmul.f32 %v2482, 0.06944445
    %v2485 = vrot.slane %v2483, 7
    %v2487 = vsub.f32 %v2481, %v2485
    %2488 = vst [vmem:[#allocation4] sm:$0x1] %v2465
    %2489 = vst [vmem:[#allocation4] sm:$0x2] %v2487
    // Predicated region
    $region30: #{tpu_custom_call.1} parent=1 // pred_check
      _
    $region31: #{tpu_custom_call.1} parent=1 // pred_check_branch
      %2491 = sbr.rel (0) target = $region33
    $region32: #{tpu_custom_call.1} parent=1 // pred_region
      %s2493 = ssub.s32 32, 32
      %2494 = vsyncadd [#allocation5], %s2493
      %s2496 = sshll.u32 [#allocation4], 4
      %s2497 = int_to_ptr.vmem [resolvable:$true] %s2496
      %2499 = dma.vmem_to_hbm [thread:$0]  %s2497, 32, %s7, [#allocation5]
    $region33: #{tpu_custom_call.1} parent=1 // pred_fallthru
      _
    // Predicated region
    $region34: #{tpu_custom_call.1} parent=1 // pred_check
      _
    $region35: #{tpu_custom_call.1} parent=1 // pred_check_branch
      %2501 = sbr.rel (0) target = $region37
    $region36: #{tpu_custom_call.1} parent=1 // pred_region
      %2502 = dma.done [#allocation5], 32
    $region37: #{tpu_custom_call.1} parent=1 // pred_fallthru
      _
    %2503 = vsyncpa [#allocation5], 1

</llo_original>
